<compile_context>
chip_gen: v7x
topology: tpu7x:2x2x1
jax: 0.10.0
libtpu: 0.0.40
codegen_flags: <defaults>
</compile_context>

<pallas_src>
import jax
import jax.numpy as jnp
from jax.experimental import pallas as pl
from jax.experimental.pallas import tpu as pltpu

NEG_BIAS = -1e30          # finite large-negative mask sentinel (no inf/NaN)
_SCAL_W = 128             # lane-dense width of the packed-scalars block
_VMEM = pl.BlockSpec(memory_space=pltpu.MemorySpace.VMEM)


# ----------------------------------------------------------------------------
# Fused Pallas kernel: GRU cells + action head + value head
# ----------------------------------------------------------------------------
def fused_policy_kernel(x_ref, ha_ref, hc_ref,
                        w_ih_ref, b_ih_ref,
                        w_hh_a_ref, b_hh_a_ref,
                        w_hh_c_ref, b_hh_c_ref,
                        wp_ref, bp_ref,
                        wv_ref, bv_ref,
                        mask_bias_ref, gumbel_ref,
                        out_ref):
    B = x_ref.shape[0]
    H = ha_ref.shape[1]
    Ap = mask_bias_ref.shape[1]
    scal_w = out_ref.shape[1] - 2 * H - Ap

    x = x_ref[...]
    ha = ha_ref[...]
    hc = hc_ref[...]

    # Weights are stored/streamed as bf16 (halves HBM bytes of the dominant
    # transfer); upcast in VMEM, accumulate in f32 on the MXU.
    w_ih = w_ih_ref[...].astype(jnp.float32)
    w_hh_a = w_hh_a_ref[...].astype(jnp.float32)
    w_hh_c = w_hh_c_ref[...].astype(jnp.float32)
    wp = wp_ref[...].astype(jnp.float32)

    # ---- GRU cells (PyTorch nn.GRUCell semantics) --------------------------
    # one wide MXU pass over the shared feature path: (B, F) @ (F, 6H)
    gi = jnp.dot(x, w_ih, preferred_element_type=jnp.float32) + b_ih_ref[...]
    # hidden-path matmuls back-to-back so weight loads pipeline
    gh_a = jnp.dot(ha, w_hh_a, preferred_element_type=jnp.float32) + b_hh_a_ref[...]
    gh_c = jnp.dot(hc, w_hh_c, preferred_element_type=jnp.float32) + b_hh_c_ref[...]

    def gru_update(gi3, gh3, h):
        # gate slices are lane-aligned when H % 128 == 0 (H = 128 here)
        r = jax.nn.sigmoid(gi3[:, :H] + gh3[:, :H])
        z = jax.nn.sigmoid(gi3[:, H:2 * H] + gh3[:, H:2 * H])
        n = jnp.tanh(gi3[:, 2 * H:3 * H] + r * gh3[:, 2 * H:3 * H])
        return (1.0 - z) * n + z * h

    h_a = gru_update(gi[:, :3 * H], gh_a, ha)
    h_c = gru_update(gi[:, 3 * H:], gh_c, hc)

    # ---- ActionNet: masked categorical -------------------------------------
    logits = jnp.dot(h_a, wp, preferred_element_type=jnp.float32) + bp_ref[...]
    masked = logits + mask_bias_ref[...]          # additive mask bias (0 / -1e30)
    m = jnp.max(masked, axis=1, keepdims=True)
    shifted = masked - m
    e = jnp.exp(shifted)
    denom = jnp.sum(e, axis=1, keepdims=True)
    # approx reciprocal on the (otherwise idle) EUP slot; error ~2^-12 rel.
    probs = e * pl.reciprocal(denom, approx=True)
    log_probs = shifted - jnp.log(denom)

    # masked/padded lanes: probs == 0 exactly, log_probs finite (~ -1e30),
    # so no where-guards are needed for entropy / log-prob gather.
    entropy = -jnp.sum(log_probs * probs, axis=1, keepdims=True)

    # Gumbel-max sampling (== Categorical.sample) + log-prob gather
    scores = log_probs + gumbel_ref[...]          # masked lanes stay ~ -1e30
    smax = jnp.max(scores, axis=1, keepdims=True)
    lane = jax.lax.broadcasted_iota(jnp.int32, (B, Ap), 1)
    cand = jnp.where(scores >= smax, lane, Ap)
    action = jnp.min(cand, axis=1, keepdims=True)          # first argmax
    onehot = (lane == action).astype(jnp.float32)
    log_prob = jnp.sum(log_probs * onehot, axis=1, keepdims=True)

    # ---- ValueNet: VPU multiply + lane reduction (no N=1 MXU pass) ----------
    value = jnp.sum(h_c * wv_ref[...], axis=1, keepdims=True) + bv_ref[...]

    # ---- single lane-dense output slab --------------------------------------
    out_ref[:, :H] = h_a
    out_ref[:, H:2 * H] = h_c
    out_ref[:, 2 * H:2 * H + Ap] = probs
    # iota/where scalar packing kept (robust lowering; negligible at these sizes)
    sl = jax.lax.broadcasted_iota(jnp.int32, (B, scal_w), 1)
    out_ref[:, 2 * H + Ap:] = jnp.where(
        sl == 0, action.astype(jnp.float32),
        jnp.where(sl == 1, log_prob,
                  jnp.where(sl == 2, entropy,
                            jnp.where(sl == 3, value, 0.0))))


# ----------------------------------------------------------------------------
# Wrappers
# ----------------------------------------------------------------------------
def pack_params(params, action_size):
    """One-time repack of PyTorch-layout parameters into the fused layout.

    Matmul weights are stored in bfloat16 (the kernel is HBM-bound; this
    halves the dominant transfer); biases / value row stay f32.
    Returns an arrays-only dict (safe to pass through jax.jit).
    """
    A = int(action_size)
    Ap = max(128, ((A + 127) // 128) * 128)        # pad action dim to 128 lanes
    return {
        # shared feature path: [actor r,z,n | critic r,z,n] along the out dim
        "w_ih_cat_t": jnp.concatenate(
            [params["actor_w_ih_t"], params["critic_w_ih_t"]],
            axis=1).astype(jnp.bfloat16),
        "b_ih_cat": jnp.concatenate(
            [params["actor_b_ih"], params["critic_b_ih"]], axis=1),
        "w_hh_a_t": params["actor_w_hh_t"].astype(jnp.bfloat16),
        "b_hh_a": params["actor_b_hh"],
        "w_hh_c_t": params["critic_w_hh_t"].astype(jnp.bfloat16),
        "b_hh_c": params["critic_b_hh"],
        # policy linear padded to Ap output lanes (padding killed by mask bias)
        "wp_t": jnp.pad(params["policy_w_t"],
                        ((0, 0), (0, Ap - A))).astype(jnp.bfloat16),
        "bp": jnp.pad(params["policy_b"], ((0, 0), (0, Ap - A))),
        # value linear as a row for the VPU reduction (tiny; kept f32)
        "wv_row": params["value_w_t"].T,           # (1, H)
        "bv": params["value_b"],                   # (1, 1)
    }


@jax.jit
def forward(obs, weights, mask, gumbel, states=None):
    """Full GRURecurrentActorCriticPolicy.forward (single fused pallas_call).

    jitted so mask/gumbel padding, output slicing and the int32 cast fuse with
    the surrounding program (no extra per-step dispatches).
    """
    B = obs.shape[0]
    H = weights["w_hh_a_t"].shape[0]
    Ap = weights["wp_t"].shape[1]
    A = mask.shape[1]
    x = obs.reshape(B, -1).astype(jnp.float32)     # FlattenExtractor
    if states is None:
        h_actor = jnp.zeros((B, H), jnp.float32)
        h_critic = jnp.zeros((B, H), jnp.float32)
    else:
        h_actor, h_critic = states

    # additive mask bias (0 for allowed, -1e30 for disallowed / padded lanes)
    mask_bias = jnp.full((B, Ap), NEG_BIAS, jnp.float32).at[:, :A].set(
        jnp.where(mask, jnp.float32(0.0), jnp.float32(NEG_BIAS)))
    gum = jnp.zeros((B, Ap), jnp.float32).at[:, :A].set(
        gumbel.astype(jnp.float32))

    out = pl.pallas_call(
        fused_policy_kernel,
        out_shape=jax.ShapeDtypeStruct((B, 2 * H + Ap + _SCAL_W), jnp.float32),
        in_specs=[_VMEM] * 15,
        out_specs=_VMEM,
    )(x, h_actor, h_critic,
      weights["w_ih_cat_t"], weights["b_ih_cat"],
      weights["w_hh_a_t"], weights["b_hh_a"],
      weights["w_hh_c_t"], weights["b_hh_c"],
      weights["wp_t"], weights["bp"],
      weights["wv_row"], weights["bv"],
      mask_bias, gum)

    h_a = out[:, :H]
    h_c = out[:, H:2 * H]
    policy = out[:, 2 * H:2 * H + A]
    scal = out[:, 2 * H + Ap:]
    action = scal[:, 0].astype(jnp.int32)          # small ints exact in f32
    log_prob = scal[:, 1]
    entropy = scal[:, 2]
    value = scal[:, 3:4]                           # (B, 1) like torch ValueNet
    return action, policy, log_prob, entropy, value, [h_a, h_c]


# ----------------------------------------------------------------------------
# Pure-JAX reference (torch-faithful semantics, for correctness check)
# ----------------------------------------------------------------------------
def _gru_ref(x, h, w_ih_t, w_hh_t, b_ih, b_hh):
    H = h.shape[1]
    gi = x @ w_ih_t + b_ih
    gh = h @ w_hh_t + b_hh
    r = jax.nn.sigmoid(gi[:, :H] + gh[:, :H])
    z = jax.nn.sigmoid(gi[:, H:2 * H] + gh[:, H:2 * H])
    n = jnp.tanh(gi[:, 2 * H:] + r * gh[:, 2 * H:])
    return (1.0 - z) * n + z * h


def forward_ref(obs, params, mask, gumbel):
    B = obs.shape[0]
    x = obs.reshape(B, -1).astype(jnp.float32)
    H = params["actor_w_hh_t"].shape[0]
    h0 = jnp.zeros((B, H), jnp.float32)
    ha = _gru_ref(x, h0, params["actor_w_ih_t"], params["actor_w_hh_t"],
                  params["actor_b_ih"], params["actor_b_hh"])
    hc = _gru_ref(x, h0, params["critic_w_ih_t"], params["critic_w_hh_t"],
                  params["critic_b_ih"], params["critic_b_hh"])
    logits = ha @ params["policy_w_t"] + params["policy_b"]
    neg = jnp.finfo(jnp.float32).min
    masked = jnp.where(mask, logits, neg)
    log_probs = jax.nn.log_softmax(masked, axis=1)
    probs = jnp.exp(log_probs)
    entropy = -jnp.sum(jnp.where(mask, log_probs * probs, 0.0), axis=1)
    scores = jnp.where(mask, log_probs + gumbel, neg)
    action = jnp.argmax(scores, axis=1)
    log_prob = jnp.take_along_axis(log_probs, action[:, None], axis=1)[:, 0]
    value = jnp.sum(hc * params["value_w_t"].T, axis=1, keepdims=True) \
        + params["value_b"]
    return action, probs, log_prob, entropy, value, ha, hc


# ----------------------------------------------------------------------------
# Parameter init (PyTorch default uniform(-1/sqrt(fan), 1/sqrt(fan)))
# ----------------------------------------------------------------------------
def init_params(key, feature_size, action_size, hidden_size):
    ks = jax.random.split(key, 12)
    kg = 1.0 / jnp.sqrt(hidden_size)
    kp = 1.0 / jnp.sqrt(hidden_size)

    def u(k, shape, bound):
        return jax.random.uniform(k, shape, jnp.float32, -bound, bound)

    return {
        # actor GRUCell (stored transposed: (in, 3H) / (H, 3H); biases (1, 3H))
        "actor_w_ih_t": u(ks[0], (feature_size, 3 * hidden_size), kg),
        "actor_w_hh_t": u(ks[1], (hidden_size, 3 * hidden_size), kg),
        "actor_b_ih":   u(ks[2], (1, 3 * hidden_size), kg),
        "actor_b_hh":   u(ks[3], (1, 3 * hidden_size), kg),
        # critic GRUCell
        "critic_w_ih_t": u(ks[4], (feature_size, 3 * hidden_size), kg),
        "critic_w_hh_t": u(ks[5], (hidden_size, 3 * hidden_size), kg),
        "critic_b_ih":   u(ks[6], (1, 3 * hidden_size), kg),
        "critic_b_hh":   u(ks[7], (1, 3 * hidden_size), kg),
        # ActionNet linear (hidden -> action), transposed
        "policy_w_t": u(ks[8], (hidden_size, action_size), kp),
        "policy_b":   u(ks[9], (1, action_size), kp),
        # ValueNet linear (hidden -> 1), transposed
        "value_w_t": u(ks[10], (hidden_size, 1), kp),
        "value_b":   u(ks[11], (1, 1), kp),
    }


def _bf16_quantized_ref_params(params):
    """Reference params with the kernel's bf16 weight quantisation applied,
    so the correctness check isolates kernel math from quantisation error."""
    q = dict(params)
    for name in ("actor_w_ih_t", "actor_w_hh_t",
                 "critic_w_ih_t", "critic_w_hh_t", "policy_w_t"):
        q[name] = params[name].astype(jnp.bfloat16).astype(jnp.float32)
    return q


# ----------------------------------------------------------------------------
if __name__ == "__main__":
    B, C, Hs, Ws = 2, 4, 16, 16          # obs NCHW
    feature_size = C * Hs * Ws            # 1024
    action_size = 8
    hidden_size = 128                     # module default; keeps gates lane-aligned

    root = jax.random.PRNGKey(0)
    k_obs, k_par, k_gum = jax.random.split(root, 3)

    obs = jax.random.normal(k_obs, (B, C, Hs, Ws), jnp.float32)
    params = init_params(k_par, feature_size, action_size, hidden_size)
    packed = pack_params(params, action_size)

    # action mask: disallow the last two actions for every batch element
    # (note: an all-False row would make the categorical undefined, exactly as
    #  it is undefined in the torch module; not guarded here)
    mask = jnp.ones((B, action_size), jnp.bool_).at[:, -2:].set(False)

    # Gumbel noise for sampling (shared between kernel and reference)
    u = jax.random.uniform(k_gum, (B, action_size), jnp.float32,
                           minval=1e-6, maxval=1.0 - 1e-6)
    gumbel = -jnp.log(-jnp.log(u))

    outs = forward(obs, packed, mask, gumbel, states=None)
    outs = jax.block_until_ready(outs)
    action, policy, log_prob, entropy, value, (hidden_actor, hidden_critic) = outs

    # verify against pure-JAX reference run with the same bf16-quantised
    # weights (tolerance covers MXU-vs-XLA accumulation order over K=1024 and
    # the approx reciprocal in the softmax)
    ref_params = _bf16_quantized_ref_params(params)
    ra, rp, rlp, rent, rval, rha, rhc = forward_ref(obs, ref_params, mask, gumbel)
    assert jnp.array_equal(action, ra.astype(jnp.int32))
    for got, want in [(policy, rp), (log_prob, rlp), (entropy, rent),
                      (value, rval), (hidden_actor, rha), (hidden_critic, rhc)]:
        assert jnp.allclose(got, want, rtol=5e-3, atol=5e-3), (got, want)
    # masked actions never get probability / never sampled
    assert jnp.all(policy[:, -2:] == 0.0)

    print("KERNEL_OK")
</pallas_src>

<mosaic_0001>
module attributes {stable_mosaic.version = 11 : i64} {
  func.func @fused_policy_kernel(%arg0: memref<2x1024xf32, #tpu.memory_space<vmem>>, %arg1: memref<2x128xf32, #tpu.memory_space<vmem>>, %arg2: memref<2x128xf32, #tpu.memory_space<vmem>>, %arg3: memref<1024x768xbf16, #tpu.memory_space<vmem>>, %arg4: memref<1x768xf32, #tpu.memory_space<vmem>>, %arg5: memref<128x384xbf16, #tpu.memory_space<vmem>>, %arg6: memref<1x384xf32, #tpu.memory_space<vmem>>, %arg7: memref<128x384xbf16, #tpu.memory_space<vmem>>, %arg8: memref<1x384xf32, #tpu.memory_space<vmem>>, %arg9: memref<128x128xbf16, #tpu.memory_space<vmem>>, %arg10: memref<1x128xf32, #tpu.memory_space<vmem>>, %arg11: memref<1x128xf32, #tpu.memory_space<vmem>>, %arg12: memref<1x1xf32, #tpu.memory_space<vmem>>, %arg13: memref<2x128xf32, #tpu.memory_space<vmem>>, %arg14: memref<2x128xf32, #tpu.memory_space<vmem>>, %arg15: memref<2x512xf32, #tpu.memory_space<vmem>>) attributes {dimension_semantics = [], scalar_prefetch = 0 : i64, scratch_operands = 0 : i64, tpu.core_type = #tpu.core_type<tc>} {
    %c0 = arith.constant 0 : index
    %c0_0 = arith.constant 0 : index
    %0 = vector.load %arg0[%c0, %c0_0] : memref<2x1024xf32, #tpu.memory_space<vmem>>, vector<2x1024xf32>
    %c0_1 = arith.constant 0 : index
    %c0_2 = arith.constant 0 : index
    %1 = vector.load %arg1[%c0_1, %c0_2] : memref<2x128xf32, #tpu.memory_space<vmem>>, vector<2x128xf32>
    %c0_3 = arith.constant 0 : index
    %c0_4 = arith.constant 0 : index
    %2 = vector.load %arg2[%c0_3, %c0_4] : memref<2x128xf32, #tpu.memory_space<vmem>>, vector<2x128xf32>
    %c0_5 = arith.constant 0 : index
    %c0_6 = arith.constant 0 : index
    %3 = vector.load %arg3[%c0_5, %c0_6] : memref<1024x768xbf16, #tpu.memory_space<vmem>>, vector<1024x768xbf16>
    %4 = arith.extf %3 : vector<1024x768xbf16> to vector<1024x768xf32>
    %c0_7 = arith.constant 0 : index
    %c0_8 = arith.constant 0 : index
    %5 = vector.load %arg5[%c0_7, %c0_8] : memref<128x384xbf16, #tpu.memory_space<vmem>>, vector<128x384xbf16>
    %6 = arith.extf %5 : vector<128x384xbf16> to vector<128x384xf32>
    %c0_9 = arith.constant 0 : index
    %c0_10 = arith.constant 0 : index
    %7 = vector.load %arg7[%c0_9, %c0_10] : memref<128x384xbf16, #tpu.memory_space<vmem>>, vector<128x384xbf16>
    %8 = arith.extf %7 : vector<128x384xbf16> to vector<128x384xf32>
    %c0_11 = arith.constant 0 : index
    %c0_12 = arith.constant 0 : index
    %9 = vector.load %arg9[%c0_11, %c0_12] : memref<128x128xbf16, #tpu.memory_space<vmem>>, vector<128x128xbf16>
    %10 = arith.extf %9 : vector<128x128xbf16> to vector<128x128xf32>
    %cst = arith.constant dense<0.000000e+00> : vector<2x768xf32>
    %11 = tpu.matmul %0, %4, %cst {dimension_numbers = #tpu.dot_dimension_numbers<[1], [0], [0], [1], [0, 0, 1, 1], [], []>} : vector<2x1024xf32>, vector<1024x768xf32>, vector<2x768xf32> -> vector<2x768xf32>
    %c0_13 = arith.constant 0 : index
    %c0_14 = arith.constant 0 : index
    %12 = vector.load %arg4[%c0_13, %c0_14] : memref<1x768xf32, #tpu.memory_space<vmem>>, vector<1x768xf32>
    %13 = vector.broadcast %12 : vector<1x768xf32> to vector<2x768xf32>
    %14 = arith.addf %11, %13 : vector<2x768xf32>
    %cst_15 = arith.constant dense<0.000000e+00> : vector<2x384xf32>
    %15 = tpu.matmul %1, %6, %cst_15 {dimension_numbers = #tpu.dot_dimension_numbers<[1], [0], [0], [1], [0, 0, 1, 1], [], []>} : vector<2x128xf32>, vector<128x384xf32>, vector<2x384xf32> -> vector<2x384xf32>
    %c0_16 = arith.constant 0 : index
    %c0_17 = arith.constant 0 : index
    %16 = vector.load %arg6[%c0_16, %c0_17] : memref<1x384xf32, #tpu.memory_space<vmem>>, vector<1x384xf32>
    %17 = vector.broadcast %16 : vector<1x384xf32> to vector<2x384xf32>
    %18 = arith.addf %15, %17 : vector<2x384xf32>
    %cst_18 = arith.constant dense<0.000000e+00> : vector<2x384xf32>
    %19 = tpu.matmul %2, %8, %cst_18 {dimension_numbers = #tpu.dot_dimension_numbers<[1], [0], [0], [1], [0, 0, 1, 1], [], []>} : vector<2x128xf32>, vector<128x384xf32>, vector<2x384xf32> -> vector<2x384xf32>
    %c0_19 = arith.constant 0 : index
    %c0_20 = arith.constant 0 : index
    %20 = vector.load %arg8[%c0_19, %c0_20] : memref<1x384xf32, #tpu.memory_space<vmem>>, vector<1x384xf32>
    %21 = vector.broadcast %20 : vector<1x384xf32> to vector<2x384xf32>
    %22 = arith.addf %19, %21 : vector<2x384xf32>
    %23 = vector.extract_strided_slice %14 {offsets = [0, 0], sizes = [2, 384], strides = [1, 1]} : vector<2x768xf32> to vector<2x384xf32>
    %24 = vector.extract_strided_slice %23 {offsets = [0, 0], sizes = [2, 128], strides = [1, 1]} : vector<2x384xf32> to vector<2x128xf32>
    %25 = vector.extract_strided_slice %18 {offsets = [0, 0], sizes = [2, 128], strides = [1, 1]} : vector<2x384xf32> to vector<2x128xf32>
    %26 = arith.addf %24, %25 : vector<2x128xf32>
    %27 = arith.negf %26 : vector<2x128xf32>
    %28 = math.exp %27 : vector<2x128xf32>
    %cst_21 = arith.constant 1.000000e+00 : f32
    %29 = vector.broadcast %cst_21 : f32 to vector<2x128xf32>
    %30 = arith.addf %29, %28 : vector<2x128xf32>
    %31 = arith.divf %29, %30 : vector<2x128xf32>
    %32 = vector.extract_strided_slice %23 {offsets = [0, 128], sizes = [2, 128], strides = [1, 1]} : vector<2x384xf32> to vector<2x128xf32>
    %33 = vector.extract_strided_slice %18 {offsets = [0, 128], sizes = [2, 128], strides = [1, 1]} : vector<2x384xf32> to vector<2x128xf32>
    %34 = arith.addf %32, %33 : vector<2x128xf32>
    %35 = arith.negf %34 : vector<2x128xf32>
    %36 = math.exp %35 : vector<2x128xf32>
    %cst_22 = arith.constant 1.000000e+00 : f32
    %37 = vector.broadcast %cst_22 : f32 to vector<2x128xf32>
    %38 = arith.addf %37, %36 : vector<2x128xf32>
    %39 = arith.divf %37, %38 : vector<2x128xf32>
    %40 = vector.extract_strided_slice %23 {offsets = [0, 256], sizes = [2, 128], strides = [1, 1]} : vector<2x384xf32> to vector<2x128xf32>
    %41 = vector.extract_strided_slice %18 {offsets = [0, 256], sizes = [2, 128], strides = [1, 1]} : vector<2x384xf32> to vector<2x128xf32>
    %42 = arith.mulf %31, %41 : vector<2x128xf32>
    %43 = arith.addf %40, %42 : vector<2x128xf32>
    %44 = math.tanh %43 : vector<2x128xf32>
    %cst_23 = arith.constant 1.000000e+00 : f32
    %45 = vector.broadcast %cst_23 : f32 to vector<2x128xf32>
    %46 = arith.subf %45, %39 : vector<2x128xf32>
    %47 = arith.mulf %46, %44 : vector<2x128xf32>
    %48 = arith.mulf %39, %1 : vector<2x128xf32>
    %49 = arith.addf %47, %48 : vector<2x128xf32>
    %50 = vector.extract_strided_slice %14 {offsets = [0, 384], sizes = [2, 384], strides = [1, 1]} : vector<2x768xf32> to vector<2x384xf32>
    %51 = vector.extract_strided_slice %50 {offsets = [0, 0], sizes = [2, 128], strides = [1, 1]} : vector<2x384xf32> to vector<2x128xf32>
    %52 = vector.extract_strided_slice %22 {offsets = [0, 0], sizes = [2, 128], strides = [1, 1]} : vector<2x384xf32> to vector<2x128xf32>
    %53 = arith.addf %51, %52 : vector<2x128xf32>
    %54 = arith.negf %53 : vector<2x128xf32>
    %55 = math.exp %54 : vector<2x128xf32>
    %cst_24 = arith.constant 1.000000e+00 : f32
    %56 = vector.broadcast %cst_24 : f32 to vector<2x128xf32>
    %57 = arith.addf %56, %55 : vector<2x128xf32>
    %58 = arith.divf %56, %57 : vector<2x128xf32>
    %59 = vector.extract_strided_slice %50 {offsets = [0, 128], sizes = [2, 128], strides = [1, 1]} : vector<2x384xf32> to vector<2x128xf32>
    %60 = vector.extract_strided_slice %22 {offsets = [0, 128], sizes = [2, 128], strides = [1, 1]} : vector<2x384xf32> to vector<2x128xf32>
    %61 = arith.addf %59, %60 : vector<2x128xf32>
    %62 = arith.negf %61 : vector<2x128xf32>
    %63 = math.exp %62 : vector<2x128xf32>
    %cst_25 = arith.constant 1.000000e+00 : f32
    %64 = vector.broadcast %cst_25 : f32 to vector<2x128xf32>
    %65 = arith.addf %64, %63 : vector<2x128xf32>
    %66 = arith.divf %64, %65 : vector<2x128xf32>
    %67 = vector.extract_strided_slice %50 {offsets = [0, 256], sizes = [2, 128], strides = [1, 1]} : vector<2x384xf32> to vector<2x128xf32>
    %68 = vector.extract_strided_slice %22 {offsets = [0, 256], sizes = [2, 128], strides = [1, 1]} : vector<2x384xf32> to vector<2x128xf32>
    %69 = arith.mulf %58, %68 : vector<2x128xf32>
    %70 = arith.addf %67, %69 : vector<2x128xf32>
    %71 = math.tanh %70 : vector<2x128xf32>
    %cst_26 = arith.constant 1.000000e+00 : f32
    %72 = vector.broadcast %cst_26 : f32 to vector<2x128xf32>
    %73 = arith.subf %72, %66 : vector<2x128xf32>
    %74 = arith.mulf %73, %71 : vector<2x128xf32>
    %75 = arith.mulf %66, %2 : vector<2x128xf32>
    %76 = arith.addf %74, %75 : vector<2x128xf32>
    %cst_27 = arith.constant dense<0.000000e+00> : vector<2x128xf32>
    %77 = tpu.matmul %49, %10, %cst_27 {dimension_numbers = #tpu.dot_dimension_numbers<[1], [0], [0], [1], [0, 0, 1, 1], [], []>} : vector<2x128xf32>, vector<128x128xf32>, vector<2x128xf32> -> vector<2x128xf32>
    %c0_28 = arith.constant 0 : index
    %c0_29 = arith.constant 0 : index
    %78 = vector.load %arg10[%c0_28, %c0_29] : memref<1x128xf32, #tpu.memory_space<vmem>>, vector<1x128xf32>
    %79 = vector.broadcast %78 : vector<1x128xf32> to vector<2x128xf32>
    %80 = arith.addf %77, %79 : vector<2x128xf32>
    %c0_30 = arith.constant 0 : index
    %c0_31 = arith.constant 0 : index
    %81 = vector.load %arg13[%c0_30, %c0_31] : memref<2x128xf32, #tpu.memory_space<vmem>>, vector<2x128xf32>
    %82 = arith.addf %80, %81 : vector<2x128xf32>
    %cst_32 = arith.constant dense<0xFF800000> : vector<2xf32>
    %83 = vector.multi_reduction <maximumf>, %82, %cst_32 [1] : vector<2x128xf32> to vector<2xf32>
    %84 = vector.shape_cast %83 : vector<2xf32> to vector<2x1xf32>
    %85 = vector.broadcast %84 : vector<2x1xf32> to vector<2x128xf32>
    %86 = arith.subf %82, %85 : vector<2x128xf32>
    %87 = math.exp %86 : vector<2x128xf32>
    %cst_33 = arith.constant dense<0.000000e+00> : vector<2xf32>
    %88 = vector.multi_reduction <add>, %87, %cst_33 [1] : vector<2x128xf32> to vector<2xf32>
    %89 = vector.shape_cast %88 : vector<2xf32> to vector<2x1xf32>
    %90 = tpu.reciprocal %89 {approx = true} : vector<2x1xf32> -> vector<2x1xf32>
    %91 = vector.broadcast %90 : vector<2x1xf32> to vector<2x128xf32>
    %92 = arith.mulf %87, %91 : vector<2x128xf32>
    %93 = math.log %89 : vector<2x1xf32>
    %94 = vector.broadcast %93 : vector<2x1xf32> to vector<2x128xf32>
    %95 = arith.subf %86, %94 : vector<2x128xf32>
    %96 = arith.mulf %95, %92 : vector<2x128xf32>
    %cst_34 = arith.constant dense<0.000000e+00> : vector<2xf32>
    %97 = vector.multi_reduction <add>, %96, %cst_34 [1] : vector<2x128xf32> to vector<2xf32>
    %98 = vector.shape_cast %97 : vector<2xf32> to vector<2x1xf32>
    %cst_35 = arith.constant 0.000000e+00 : f32
    %99 = vector.broadcast %cst_35 : f32 to vector<2x1xf32>
    %100 = arith.subf %99, %98 : vector<2x1xf32>
    %c0_36 = arith.constant 0 : index
    %c0_37 = arith.constant 0 : index
    %101 = vector.load %arg14[%c0_36, %c0_37] : memref<2x128xf32, #tpu.memory_space<vmem>>, vector<2x128xf32>
    %102 = arith.addf %95, %101 : vector<2x128xf32>
    %cst_38 = arith.constant dense<0xFF800000> : vector<2xf32>
    %103 = vector.multi_reduction <maximumf>, %102, %cst_38 [1] : vector<2x128xf32> to vector<2xf32>
    %104 = vector.shape_cast %103 : vector<2xf32> to vector<2x1xf32>
    %105 = tpu.iota {dimensions = array<i32: 1>} : vector<2x128xi32>
    %106 = vector.broadcast %104 : vector<2x1xf32> to vector<2x128xf32>
    %107 = arith.cmpf oge, %102, %106 : vector<2x128xf32>
    %c128_i32 = arith.constant 128 : i32
    %108 = vector.broadcast %c128_i32 : i32 to vector<2x128xi32>
    %109 = arith.select %107, %105, %108 : vector<2x128xi1>, vector<2x128xi32>
    %cst_39 = arith.constant dense<2147483647> : vector<2xi32>
    %110 = vector.multi_reduction <minsi>, %109, %cst_39 [1] : vector<2x128xi32> to vector<2xi32>
    %111 = vector.shape_cast %110 : vector<2xi32> to vector<2x1xi32>
    %112 = vector.broadcast %111 : vector<2x1xi32> to vector<2x128xi32>
    %113 = arith.cmpi eq, %105, %112 : vector<2x128xi32>
    %114 = arith.extui %113 : vector<2x128xi1> to vector<2x128xi32>
    %115 = arith.sitofp %114 : vector<2x128xi32> to vector<2x128xf32>
    %116 = arith.mulf %95, %115 : vector<2x128xf32>
    %cst_40 = arith.constant dense<0.000000e+00> : vector<2xf32>
    %117 = vector.multi_reduction <add>, %116, %cst_40 [1] : vector<2x128xf32> to vector<2xf32>
    %118 = vector.shape_cast %117 : vector<2xf32> to vector<2x1xf32>
    %c0_41 = arith.constant 0 : index
    %c0_42 = arith.constant 0 : index
    %119 = vector.load %arg11[%c0_41, %c0_42] : memref<1x128xf32, #tpu.memory_space<vmem>>, vector<1x128xf32>
    %120 = vector.broadcast %119 : vector<1x128xf32> to vector<2x128xf32>
    %121 = arith.mulf %76, %120 : vector<2x128xf32>
    %cst_43 = arith.constant dense<0.000000e+00> : vector<2xf32>
    %122 = vector.multi_reduction <add>, %121, %cst_43 [1] : vector<2x128xf32> to vector<2xf32>
    %123 = vector.shape_cast %122 : vector<2xf32> to vector<2x1xf32>
    %c0_44 = arith.constant 0 : index
    %c0_45 = arith.constant 0 : index
    %124 = vector.load %arg12[%c0_44, %c0_45] : memref<1x1xf32, #tpu.memory_space<vmem>>, vector<1x1xf32>
    %125 = vector.broadcast %124 : vector<1x1xf32> to vector<2x1xf32>
    %126 = arith.addf %123, %125 : vector<2x1xf32>
    %c0_46 = arith.constant 0 : index
    %c0_47 = arith.constant 0 : index
    %127 = vector.load %arg15[%c0_46, %c0_47] : memref<2x512xf32, #tpu.memory_space<vmem>>, vector<2x128xf32>
    tpu.vector_store %arg15[%c0_46, %c0_47], %49 {strides = array<i32>} : memref<2x512xf32, #tpu.memory_space<vmem>>, vector<2x128xf32>,
    %c0_48 = arith.constant 0 : index
    %c128 = arith.constant 128 : index
    %128 = vector.load %arg15[%c0_48, %c128] : memref<2x512xf32, #tpu.memory_space<vmem>>, vector<2x128xf32>
    tpu.vector_store %arg15[%c0_48, %c128], %76 {strides = array<i32>} : memref<2x512xf32, #tpu.memory_space<vmem>>, vector<2x128xf32>,
    %c0_49 = arith.constant 0 : index
    %c256 = arith.constant 256 : index
    %129 = vector.load %arg15[%c0_49, %c256] : memref<2x512xf32, #tpu.memory_space<vmem>>, vector<2x128xf32>
    tpu.vector_store %arg15[%c0_49, %c256], %92 {strides = array<i32>} : memref<2x512xf32, #tpu.memory_space<vmem>>, vector<2x128xf32>,
    %130 = tpu.iota {dimensions = array<i32: 1>} : vector<2x128xi32>
    %c0_i32 = arith.constant 0 : i32
    %131 = vector.broadcast %c0_i32 : i32 to vector<2x128xi32>
    %132 = arith.cmpi eq, %130, %131 : vector<2x128xi32>
    %133 = arith.sitofp %111 : vector<2x1xi32> to vector<2x1xf32>
    %c1_i32 = arith.constant 1 : i32
    %134 = vector.broadcast %c1_i32 : i32 to vector<2x128xi32>
    %135 = arith.cmpi eq, %130, %134 : vector<2x128xi32>
    %c2_i32 = arith.constant 2 : i32
    %136 = vector.broadcast %c2_i32 : i32 to vector<2x128xi32>
    %137 = arith.cmpi eq, %130, %136 : vector<2x128xi32>
    %c3_i32 = arith.constant 3 : i32
    %138 = vector.broadcast %c3_i32 : i32 to vector<2x128xi32>
    %139 = arith.cmpi eq, %130, %138 : vector<2x128xi32>
    %cst_50 = arith.constant 0.000000e+00 : f32
    %140 = vector.shape_cast %126 : vector<2x1xf32> to vector<2x1xf32>
    %141 = vector.broadcast %140 : vector<2x1xf32> to vector<2x128xf32>
    %142 = vector.broadcast %cst_50 : f32 to vector<2x128xf32>
    %143 = arith.select %139, %141, %142 : vector<2x128xi1>, vector<2x128xf32>
    %144 = vector.shape_cast %100 : vector<2x1xf32> to vector<2x1xf32>
    %145 = vector.broadcast %144 : vector<2x1xf32> to vector<2x128xf32>
    %146 = arith.select %137, %145, %143 : vector<2x128xi1>, vector<2x128xf32>
    %147 = vector.shape_cast %118 : vector<2x1xf32> to vector<2x1xf32>
    %148 = vector.broadcast %147 : vector<2x1xf32> to vector<2x128xf32>
    %149 = arith.select %135, %148, %146 : vector<2x128xi1>, vector<2x128xf32>
    %150 = vector.shape_cast %133 : vector<2x1xf32> to vector<2x1xf32>
    %151 = vector.broadcast %150 : vector<2x1xf32> to vector<2x128xf32>
    %152 = arith.select %132, %151, %149 : vector<2x128xi1>, vector<2x128xf32>
    %c0_51 = arith.constant 0 : index
    %c384 = arith.constant 384 : index
    %153 = vector.load %arg15[%c0_51, %c384] : memref<2x512xf32, #tpu.memory_space<vmem>>, vector<2x128xf32>
    tpu.vector_store %arg15[%c0_51, %c384], %152 {strides = array<i32>} : memref<2x512xf32, #tpu.memory_space<vmem>>, vector<2x128xf32>,
    return
  }
}

</mosaic_0001>

<llo_original>
// kernel: forward.1
$region0: #{forward.1}
  #allocation0 [shape = 'u32[]', space=smem, size = 0x4, offset = 0x4, fixed_abs, tag = 'smem constant byte address 0x4 - core index']
  #allocation1 [shape = 'u32[144,128]{1,0:T(1,128)}', space=vmem, size = 0x12000, scoped, tag = 'internal scratch']
  #allocation2 [shape = 'f32[1,1]{1,0:T(1,128)S(1)}', space=vmem, size = 0x200, scoped, tag = 'scoped memory for forward.1']
  %s0 = inlined_call_operand.vmem [shape: f32[2,1024], index: 0, kind: input, shape index: {}]
  %s1 = inlined_call_operand.vmem [shape: f32[2,128], index: 1, kind: input, shape index: {}, may-alias: {1,2}]
  %s2 = inlined_call_operand.vmem [shape: f32[2,128], index: 2, kind: input, shape index: {}, may-alias: {1,2}]
  %s3 = inlined_call_operand.hbm [shape: bf16[1024,768], index: 3, kind: input, shape index: {}]
  %s4 = inlined_call_operand.hbm [shape: f32[1,768], index: 4, kind: input, shape index: {}]
  %s5 = inlined_call_operand.hbm [shape: bf16[128,384], index: 5, kind: input, shape index: {}]
  %s6 = inlined_call_operand.hbm [shape: f32[1,384], index: 6, kind: input, shape index: {}]
  %s7 = inlined_call_operand.hbm [shape: bf16[128,384], index: 7, kind: input, shape index: {}]
  %s8 = inlined_call_operand.hbm [shape: f32[1,384], index: 8, kind: input, shape index: {}]
  %s9 = inlined_call_operand.hbm [shape: bf16[128,128], index: 9, kind: input, shape index: {}]
  %s10 = inlined_call_operand.hbm [shape: f32[1,128], index: 10, kind: input, shape index: {}]
  %s11 = inlined_call_operand.hbm [shape: f32[1,128], index: 11, kind: input, shape index: {}]
  %s12 = inlined_call_operand.<no memory space> [shape: f32[1,1], index: 12, kind: input, shape index: {}]
  %s13 = inlined_call_operand.vmem [shape: f32[2,128], index: 13, kind: input, shape index: {}]
  %s14 = inlined_call_operand.vmem [shape: f32[2,128], index: 14, kind: input, shape index: {}]
  %s15 = inlined_call_operand.vmem [shape: f32[2,512], index: 15, kind: output, shape index: {}]
  %s16 = sld [smem:[#allocation0]]
  $region106: #{forward.1} parent=0
    _
  %s18 = ssub.s32 1, %s16
  %s19 = scalar_select 0, %s18, %s16
  %v20 = vstv %s12
  %21 = vst [vmem:[#allocation2] sm:$0x1] %v20
  $region1: #{forward.1} parent=0
    #allocation3 [shape = 'u8[1572864]{0}', space=vmem, size = 0x180000, scoped, tag = 'input window, operand 3, single buffered']
    #allocation4 [shape = 's32[1]{0}', space=sflag, size = 0x4, scoped, tag = 'scoped memory for forward.1']
    #allocation5 [shape = 'u8[3072]{0}', space=vmem, size = 0xc00, scoped, tag = 'input window, operand 4, single buffered']
    #allocation6 [shape = 's32[1]{0}', space=sflag, size = 0x4, scoped, tag = 'scoped memory for forward.1']
    #allocation7 [shape = 'u8[98304]{0}', space=vmem, size = 0x18000, scoped, tag = 'input window, operand 5, single buffered']
    #allocation8 [shape = 'u8[1536]{0}', space=vmem, size = 0x800, scoped, tag = 'input window, operand 6, single buffered']
    #allocation9 [shape = 's32[1]{0}', space=sflag, size = 0x4, scoped, tag = 'scoped memory for forward.1']
    #allocation10 [shape = 'u8[98304]{0}', space=vmem, size = 0x18000, scoped, tag = 'input window, operand 7, single buffered']
    #allocation11 [shape = 'u8[1536]{0}', space=vmem, size = 0x800, scoped, tag = 'input window, operand 8, single buffered']
    #allocation12 [shape = 's32[1]{0}', space=sflag, size = 0x4, scoped, tag = 'scoped memory for forward.1']
    #allocation13 [shape = 'u8[32768]{0}', space=vmem, size = 0x8000, scoped, tag = 'input window, operand 9, single buffered']
    #allocation14 [shape = 'u8[512]{0}', space=vmem, size = 0x400, scoped, tag = 'input window, operand 10, single buffered']
    #allocation15 [shape = 's32[1]{0}', space=sflag, size = 0x4, scoped, tag = 'scoped memory for forward.1']
    #allocation16 [shape = 'u8[512]{0}', space=vmem, size = 0x400, scoped, tag = 'input window, operand 11, single buffered']
    %22 = vsyncpa [#allocation4], 0
    %23 = vsyncpa [#allocation6], 0
    %24 = vsyncpa [#allocation9], 0
    %25 = vsyncpa [#allocation12], 0
    %26 = vsyncpa [#allocation15], 0
    // Predicated region
    $region2: #{forward.1} parent=1 // pred_check
      _
    $region3: #{forward.1} parent=1 // pred_check_branch
      %28 = sbr.rel (0) target = $region5
    $region4: #{forward.1} parent=1 // pred_region
      _
    $region5: #{forward.1} parent=1 // pred_fallthru
      _
    // Predicated region
    $region6: #{forward.1} parent=1 // pred_check
      _
    $region7: #{forward.1} parent=1 // pred_check_branch
      %30 = sbr.rel (0) target = $region9
    $region8: #{forward.1} parent=1 // pred_region
      _
    $region9: #{forward.1} parent=1 // pred_fallthru
      _
    // Predicated region
    $region10: #{forward.1} parent=1 // pred_check
      _
    $region11: #{forward.1} parent=1 // pred_check_branch
      %32 = sbr.rel (0) target = $region13
    $region12: #{forward.1} parent=1 // pred_region
      _
    $region13: #{forward.1} parent=1 // pred_fallthru
      _
    // Predicated region
    $region14: #{forward.1} parent=1 // pred_check
      _
    $region15: #{forward.1} parent=1 // pred_check_branch
      %34 = sbr.rel (0) target = $region17
    $region16: #{forward.1} parent=1 // pred_region
      %s36 = ssub.s32 49152, 49152
      %37 = vsyncadd [#allocation4], %s36
      %s38 = sshll.u32 [#allocation3], 4
      %s39 = int_to_ptr.vmem [resolvable:$true] %s38
      %44 = dma.hbm_to_vmem [thread:$0]  %s3, 49152, %s39, [#allocation4], 384, 384, 24
    $region17: #{forward.1} parent=1 // pred_fallthru
      _
    // Predicated region
    $region18: #{forward.1} parent=1 // pred_check
      _
    $region19: #{forward.1} parent=1 // pred_check_branch
      %46 = sbr.rel (0) target = $region21
    $region20: #{forward.1} parent=1 // pred_region
      %s48 = ssub.s32 96, 96
      %49 = vsyncadd [#allocation6], %s48
      %s51 = sshll.u32 [#allocation5], 4
      %s52 = int_to_ptr.vmem [resolvable:$true] %s51
      %54 = dma.hbm_to_vmem [thread:$0]  %s4, 96, %s52, [#allocation6]
    $region21: #{forward.1} parent=1 // pred_fallthru
      _
    // Predicated region
    $region22: #{forward.1} parent=1 // pred_check
      _
    $region23: #{forward.1} parent=1 // pred_check_branch
      %56 = sbr.rel (0) target = $region25
    $region24: #{forward.1} parent=1 // pred_region
      %s58 = ssub.s32 3072, 3072
      %59 = vsyncadd [#allocation6], %s58
      %s60 = sshll.u32 [#allocation7], 4
      %s61 = int_to_ptr.vmem [resolvable:$true] %s60
      %66 = dma.hbm_to_vmem [thread:$0]  %s5, 3072, %s61, [#allocation6], 192, 192, 12
    $region25: #{forward.1} parent=1 // pred_fallthru
      _
    // Predicated region
    $region26: #{forward.1} parent=1 // pred_check
      _
    $region27: #{forward.1} parent=1 // pred_check_branch
      %68 = sbr.rel (0) target = $region29
    $region28: #{forward.1} parent=1 // pred_region
      %s70 = ssub.s32 48, 48
      %71 = vsyncadd [#allocation9], %s70
      %s73 = sshll.u32 [#allocation8], 4
      %s74 = int_to_ptr.vmem [resolvable:$true] %s73
      %76 = dma.hbm_to_vmem [thread:$0]  %s6, 48, %s74, [#allocation9]
    $region29: #{forward.1} parent=1 // pred_fallthru
      _
    // Predicated region
    $region30: #{forward.1} parent=1 // pred_check
      _
    $region31: #{forward.1} parent=1 // pred_check_branch
      %78 = sbr.rel (0) target = $region33
    $region32: #{forward.1} parent=1 // pred_region
      %s80 = ssub.s32 3072, 3072
      %81 = vsyncadd [#allocation9], %s80
      %s82 = sshll.u32 [#allocation10], 4
      %s83 = int_to_ptr.vmem [resolvable:$true] %s82
      %88 = dma.hbm_to_vmem [thread:$0]  %s7, 3072, %s83, [#allocation9], 192, 192, 12
    $region33: #{forward.1} parent=1 // pred_fallthru
      _
    // Predicated region
    $region34: #{forward.1} parent=1 // pred_check
      _
    $region35: #{forward.1} parent=1 // pred_check_branch
      %90 = sbr.rel (0) target = $region37
    $region36: #{forward.1} parent=1 // pred_region
      %s92 = ssub.s32 48, 48
      %93 = vsyncadd [#allocation12], %s92
      %s95 = sshll.u32 [#allocation11], 4
      %s96 = int_to_ptr.vmem [resolvable:$true] %s95
      %98 = dma.hbm_to_vmem [thread:$0]  %s8, 48, %s96, [#allocation12]
    $region37: #{forward.1} parent=1 // pred_fallthru
      _
    // Predicated region
    $region38: #{forward.1} parent=1 // pred_check
      _
    $region39: #{forward.1} parent=1 // pred_check_branch
      %100 = sbr.rel (0) target = $region41
    $region40: #{forward.1} parent=1 // pred_region
      %s102 = ssub.s32 1024, 1024
      %103 = vsyncadd [#allocation12], %s102
      %s104 = sshll.u32 [#allocation13], 4
      %s105 = int_to_ptr.vmem [resolvable:$true] %s104
      %110 = dma.hbm_to_vmem [thread:$0]  %s9, 1024, %s105, [#allocation12], 64, 64, 4
    $region41: #{forward.1} parent=1 // pred_fallthru
      _
    // Predicated region
    $region42: #{forward.1} parent=1 // pred_check
      _
    $region43: #{forward.1} parent=1 // pred_check_branch
      %112 = sbr.rel (0) target = $region45
    $region44: #{forward.1} parent=1 // pred_region
      %s114 = ssub.s32 16, 16
      %115 = vsyncadd [#allocation15], %s114
      %s117 = sshll.u32 [#allocation14], 4
      %s118 = int_to_ptr.vmem [resolvable:$true] %s117
      %120 = dma.hbm_to_vmem [thread:$0]  %s10, 16, %s118, [#allocation15]
    $region45: #{forward.1} parent=1 // pred_fallthru
      _
    // Predicated region
    $region46: #{forward.1} parent=1 // pred_check
      _
    $region47: #{forward.1} parent=1 // pred_check_branch
      %122 = sbr.rel (0) target = $region49
    $region48: #{forward.1} parent=1 // pred_region
      %s124 = ssub.s32 16, 16
      %125 = vsyncadd [#allocation15], %s124
      %s127 = sshll.u32 [#allocation16], 4
      %s128 = int_to_ptr.vmem [resolvable:$true] %s127
      %130 = dma.hbm_to_vmem [thread:$0]  %s11, 16, %s128, [#allocation15]
    $region49: #{forward.1} parent=1 // pred_fallthru
      _
    // Predicated region
    $region50: #{forward.1} parent=1 // pred_check
      _
    $region51: #{forward.1} parent=1 // pred_check_branch
      %132 = sbr.rel (0) target = $region53
    $region52: #{forward.1} parent=1 // pred_region
      _
    $region53: #{forward.1} parent=1 // pred_fallthru
      _
    // Predicated region
    $region54: #{forward.1} parent=1 // pred_check
      _
    $region55: #{forward.1} parent=1 // pred_check_branch
      %134 = sbr.rel (0) target = $region57
    $region56: #{forward.1} parent=1 // pred_region
      _
    $region57: #{forward.1} parent=1 // pred_fallthru
      _
    // Predicated region
    $region58: #{forward.1} parent=1 // pred_check
      _
    $region59: #{forward.1} parent=1 // pred_check_branch
      %136 = sbr.rel (0) target = $region61
    $region60: #{forward.1} parent=1 // pred_region
      _
    $region61: #{forward.1} parent=1 // pred_fallthru
      _
    // Predicated region
    $region62: #{forward.1} parent=1 // pred_check
      _
    $region63: #{forward.1} parent=1 // pred_check_branch
      %138 = sbr.rel (0) target = $region65
    $region64: #{forward.1} parent=1 // pred_region
      %139 = dma.done [#allocation4], 49152
    $region65: #{forward.1} parent=1 // pred_fallthru
      _
    // Predicated region
    $region66: #{forward.1} parent=1 // pred_check
      _
    $region67: #{forward.1} parent=1 // pred_check_branch
      %141 = sbr.rel (0) target = $region69
    $region68: #{forward.1} parent=1 // pred_region
      %142 = dma.done [#allocation6], 96
    $region69: #{forward.1} parent=1 // pred_fallthru
      _
    // Predicated region
    $region70: #{forward.1} parent=1 // pred_check
      _
    $region71: #{forward.1} parent=1 // pred_check_branch
      %144 = sbr.rel (0) target = $region73
    $region72: #{forward.1} parent=1 // pred_region
      %145 = dma.done [#allocation6], 3072
    $region73: #{forward.1} parent=1 // pred_fallthru
      _
    // Predicated region
    $region74: #{forward.1} parent=1 // pred_check
      _
    $region75: #{forward.1} parent=1 // pred_check_branch
      %147 = sbr.rel (0) target = $region77
    $region76: #{forward.1} parent=1 // pred_region
      %148 = dma.done [#allocation9], 48
    $region77: #{forward.1} parent=1 // pred_fallthru
      _
    // Predicated region
    $region78: #{forward.1} parent=1 // pred_check
      _
    $region79: #{forward.1} parent=1 // pred_check_branch
      %150 = sbr.rel (0) target = $region81
    $region80: #{forward.1} parent=1 // pred_region
      %151 = dma.done [#allocation9], 3072
    $region81: #{forward.1} parent=1 // pred_fallthru
      _
    // Predicated region
    $region82: #{forward.1} parent=1 // pred_check
      _
    $region83: #{forward.1} parent=1 // pred_check_branch
      %153 = sbr.rel (0) target = $region85
    $region84: #{forward.1} parent=1 // pred_region
      %154 = dma.done [#allocation12], 48
    $region85: #{forward.1} parent=1 // pred_fallthru
      _
    // Predicated region
    $region86: #{forward.1} parent=1 // pred_check
      _
    $region87: #{forward.1} parent=1 // pred_check_branch
      %156 = sbr.rel (0) target = $region89
    $region88: #{forward.1} parent=1 // pred_region
      %157 = dma.done [#allocation12], 1024
    $region89: #{forward.1} parent=1 // pred_fallthru
      _
    // Predicated region
    $region90: #{forward.1} parent=1 // pred_check
      _
    $region91: #{forward.1} parent=1 // pred_check_branch
      %159 = sbr.rel (0) target = $region93
    $region92: #{forward.1} parent=1 // pred_region
      %160 = dma.done [#allocation15], 16
    $region93: #{forward.1} parent=1 // pred_fallthru
      _
    // Predicated region
    $region94: #{forward.1} parent=1 // pred_check
      _
    $region95: #{forward.1} parent=1 // pred_check_branch
      %162 = sbr.rel (0) target = $region97
    $region96: #{forward.1} parent=1 // pred_region
      %163 = dma.done [#allocation15], 16
    $region97: #{forward.1} parent=1 // pred_fallthru
      _
    %v164 = vld [vmem:[%s0] sm:$0xff]
    %v165 = vld [vmem:[%s0 + $0x8] sm:$0xff]
    %v166 = vld [vmem:[%s1] sm:$0x3]
    %v167 = vld [vmem:[%s2] sm:$0x3]
    %v168 = vld [vmem:[#allocation3] sm:$0xff]
    %v169 = vld [vmem:[#allocation3 + $0x8] sm:$0xff]
    %v170 = vld [vmem:[#allocation3 + $0x10] sm:$0xff]
    %v171 = vld [vmem:[#allocation3 + $0x18] sm:$0xff]
    %v172 = vld [vmem:[#allocation3 + $0x20] sm:$0xff]
    %v173 = vld [vmem:[#allocation3 + $0x28] sm:$0xff]
    %v174 = vld [vmem:[#allocation3 + $0x30] sm:$0xff]
    %v175 = vld [vmem:[#allocation3 + $0x38] sm:$0xff]
    %v176 = vld [vmem:[#allocation3 + $0x40] sm:$0xff]
    %v177 = vld [vmem:[#allocation3 + $0x48] sm:$0xff]
    %v178 = vld [vmem:[#allocation3 + $0x50] sm:$0xff]
    %v179 = vld [vmem:[#allocation3 + $0x58] sm:$0xff]
    %v180 = vld [vmem:[#allocation3 + $0x60] sm:$0xff]
    %v181 = vld [vmem:[#allocation3 + $0x68] sm:$0xff]
    %v182 = vld [vmem:[#allocation3 + $0x70] sm:$0xff]
    %v183 = vld [vmem:[#allocation3 + $0x78] sm:$0xff]
    %v184 = vld [vmem:[#allocation3 + $0x80] sm:$0xff]
    %v185 = vld [vmem:[#allocation3 + $0x88] sm:$0xff]
    %v186 = vld [vmem:[#allocation3 + $0x90] sm:$0xff]
    %v187 = vld [vmem:[#allocation3 + $0x98] sm:$0xff]
    %v188 = vld [vmem:[#allocation3 + $0xa0] sm:$0xff]
    %v189 = vld [vmem:[#allocation3 + $0xa8] sm:$0xff]
    %v190 = vld [vmem:[#allocation3 + $0xb0] sm:$0xff]
    %v191 = vld [vmem:[#allocation3 + $0xb8] sm:$0xff]
    %v192 = vld [vmem:[#allocation3 + $0xc0] sm:$0xff]
    %v193 = vld [vmem:[#allocation3 + $0xc8] sm:$0xff]
    %v194 = vld [vmem:[#allocation3 + $0xd0] sm:$0xff]
    %v195 = vld [vmem:[#allocation3 + $0xd8] sm:$0xff]
    %v196 = vld [vmem:[#allocation3 + $0xe0] sm:$0xff]
    %v197 = vld [vmem:[#allocation3 + $0xe8] sm:$0xff]
    %v198 = vld [vmem:[#allocation3 + $0xf0] sm:$0xff]
    %v199 = vld [vmem:[#allocation3 + $0xf8] sm:$0xff]
    %v200 = vld [vmem:[#allocation3 + $0x100] sm:$0xff]
    %v201 = vld [vmem:[#allocation3 + $0x108] sm:$0xff]
    %v202 = vld [vmem:[#allocation3 + $0x110] sm:$0xff]
    %v203 = vld [vmem:[#allocation3 + $0x118] sm:$0xff]
    %v204 = vld [vmem:[#allocation3 + $0x120] sm:$0xff]
    %v205 = vld [vmem:[#allocation3 + $0x128] sm:$0xff]
    %v206 = vld [vmem:[#allocation3 + $0x130] sm:$0xff]
    %v207 = vld [vmem:[#allocation3 + $0x138] sm:$0xff]
    %v208 = vld [vmem:[#allocation3 + $0x140] sm:$0xff]
    %v209 = vld [vmem:[#allocation3 + $0x148] sm:$0xff]
    %v210 = vld [vmem:[#allocation3 + $0x150] sm:$0xff]
    %v211 = vld [vmem:[#allocation3 + $0x158] sm:$0xff]
    %v212 = vld [vmem:[#allocation3 + $0x160] sm:$0xff]
    %v213 = vld [vmem:[#allocation3 + $0x168] sm:$0xff]
    %v214 = vld [vmem:[#allocation3 + $0x170] sm:$0xff]
    %v215 = vld [vmem:[#allocation3 + $0x178] sm:$0xff]
    %v216 = vld [vmem:[#allocation3 + $0x180] sm:$0xff]
    %v217 = vld [vmem:[#allocation3 + $0x188] sm:$0xff]
    %v218 = vld [vmem:[#allocation3 + $0x190] sm:$0xff]
    %v219 = vld [vmem:[#allocation3 + $0x198] sm:$0xff]
    %v220 = vld [vmem:[#allocation3 + $0x1a0] sm:$0xff]
    %v221 = vld [vmem:[#allocation3 + $0x1a8] sm:$0xff]
    %v222 = vld [vmem:[#allocation3 + $0x1b0] sm:$0xff]
    %v223 = vld [vmem:[#allocation3 + $0x1b8] sm:$0xff]
    %v224 = vld [vmem:[#allocation3 + $0x1c0] sm:$0xff]
    %v225 = vld [vmem:[#allocation3 + $0x1c8] sm:$0xff]
    %v226 = vld [vmem:[#allocation3 + $0x1d0] sm:$0xff]
    %v227 = vld [vmem:[#allocation3 + $0x1d8] sm:$0xff]
    %v228 = vld [vmem:[#allocation3 + $0x1e0] sm:$0xff]
    %v229 = vld [vmem:[#allocation3 + $0x1e8] sm:$0xff]
    %v230 = vld [vmem:[#allocation3 + $0x1f0] sm:$0xff]
    %v231 = vld [vmem:[#allocation3 + $0x1f8] sm:$0xff]
    %v232 = vld [vmem:[#allocation3 + $0x200] sm:$0xff]
    %v233 = vld [vmem:[#allocation3 + $0x208] sm:$0xff]
    %v234 = vld [vmem:[#allocation3 + $0x210] sm:$0xff]
    %v235 = vld [vmem:[#allocation3 + $0x218] sm:$0xff]
    %v236 = vld [vmem:[#allocation3 + $0x220] sm:$0xff]
    %v237 = vld [vmem:[#allocation3 + $0x228] sm:$0xff]
    %v238 = vld [vmem:[#allocation3 + $0x230] sm:$0xff]
    %v239 = vld [vmem:[#allocation3 + $0x238] sm:$0xff]
    %v240 = vld [vmem:[#allocation3 + $0x240] sm:$0xff]
    %v241 = vld [vmem:[#allocation3 + $0x248] sm:$0xff]
    %v242 = vld [vmem:[#allocation3 + $0x250] sm:$0xff]
    %v243 = vld [vmem:[#allocation3 + $0x258] sm:$0xff]
    %v244 = vld [vmem:[#allocation3 + $0x260] sm:$0xff]
    %v245 = vld [vmem:[#allocation3 + $0x268] sm:$0xff]
    %v246 = vld [vmem:[#allocation3 + $0x270] sm:$0xff]
    %v247 = vld [vmem:[#allocation3 + $0x278] sm:$0xff]
    %v248 = vld [vmem:[#allocation3 + $0x280] sm:$0xff]
    %v249 = vld [vmem:[#allocation3 + $0x288] sm:$0xff]
    %v250 = vld [vmem:[#allocation3 + $0x290] sm:$0xff]
    %v251 = vld [vmem:[#allocation3 + $0x298] sm:$0xff]
    %v252 = vld [vmem:[#allocation3 + $0x2a0] sm:$0xff]
    %v253 = vld [vmem:[#allocation3 + $0x2a8] sm:$0xff]
    %v254 = vld [vmem:[#allocation3 + $0x2b0] sm:$0xff]
    %v255 = vld [vmem:[#allocation3 + $0x2b8] sm:$0xff]
    %v256 = vld [vmem:[#allocation3 + $0x2c0] sm:$0xff]
    %v257 = vld [vmem:[#allocation3 + $0x2c8] sm:$0xff]
    %v258 = vld [vmem:[#allocation3 + $0x2d0] sm:$0xff]
    %v259 = vld [vmem:[#allocation3 + $0x2d8] sm:$0xff]
    %v260 = vld [vmem:[#allocation3 + $0x2e0] sm:$0xff]
    %v261 = vld [vmem:[#allocation3 + $0x2e8] sm:$0xff]
    %v262 = vld [vmem:[#allocation3 + $0x2f0] sm:$0xff]
    %v263 = vld [vmem:[#allocation3 + $0x2f8] sm:$0xff]
    %v264 = vld [vmem:[#allocation3 + $0x300] sm:$0xff]
    %v265 = vld [vmem:[#allocation3 + $0x308] sm:$0xff]
    %v266 = vld [vmem:[#allocation3 + $0x310] sm:$0xff]
    %v267 = vld [vmem:[#allocation3 + $0x318] sm:$0xff]
    %v268 = vld [vmem:[#allocation3 + $0x320] sm:$0xff]
    %v269 = vld [vmem:[#allocation3 + $0x328] sm:$0xff]
    %v270 = vld [vmem:[#allocation3 + $0x330] sm:$0xff]
    %v271 = vld [vmem:[#allocation3 + $0x338] sm:$0xff]
    %v272 = vld [vmem:[#allocation3 + $0x340] sm:$0xff]
    %v273 = vld [vmem:[#allocation3 + $0x348] sm:$0xff]
    %v274 = vld [vmem:[#allocation3 + $0x350] sm:$0xff]
    %v275 = vld [vmem:[#allocation3 + $0x358] sm:$0xff]
    %v276 = vld [vmem:[#allocation3 + $0x360] sm:$0xff]
    %v277 = vld [vmem:[#allocation3 + $0x368] sm:$0xff]
    %v278 = vld [vmem:[#allocation3 + $0x370] sm:$0xff]
    %v279 = vld [vmem:[#allocation3 + $0x378] sm:$0xff]
    %v280 = vld [vmem:[#allocation3 + $0x380] sm:$0xff]
    %v281 = vld [vmem:[#allocation3 + $0x388] sm:$0xff]
    %v282 = vld [vmem:[#allocation3 + $0x390] sm:$0xff]
    %v283 = vld [vmem:[#allocation3 + $0x398] sm:$0xff]
    %v284 = vld [vmem:[#allocation3 + $0x3a0] sm:$0xff]
    %v285 = vld [vmem:[#allocation3 + $0x3a8] sm:$0xff]
    %v286 = vld [vmem:[#allocation3 + $0x3b0] sm:$0xff]
    %v287 = vld [vmem:[#allocation3 + $0x3b8] sm:$0xff]
    %v288 = vld [vmem:[#allocation3 + $0x3c0] sm:$0xff]
    %v289 = vld [vmem:[#allocation3 + $0x3c8] sm:$0xff]
    %v290 = vld [vmem:[#allocation3 + $0x3d0] sm:$0xff]
    %v291 = vld [vmem:[#allocation3 + $0x3d8] sm:$0xff]
    %v292 = vld [vmem:[#allocation3 + $0x3e0] sm:$0xff]
    %v293 = vld [vmem:[#allocation3 + $0x3e8] sm:$0xff]
    %v294 = vld [vmem:[#allocation3 + $0x3f0] sm:$0xff]
    %v295 = vld [vmem:[#allocation3 + $0x3f8] sm:$0xff]
    %v296 = vld [vmem:[#allocation3 + $0x400] sm:$0xff]
    %v297 = vld [vmem:[#allocation3 + $0x408] sm:$0xff]
    %v298 = vld [vmem:[#allocation3 + $0x410] sm:$0xff]
    %v299 = vld [vmem:[#allocation3 + $0x418] sm:$0xff]
    %v300 = vld [vmem:[#allocation3 + $0x420] sm:$0xff]
    %v301 = vld [vmem:[#allocation3 + $0x428] sm:$0xff]
    %v302 = vld [vmem:[#allocation3 + $0x430] sm:$0xff]
    %v303 = vld [vmem:[#allocation3 + $0x438] sm:$0xff]
    %v304 = vld [vmem:[#allocation3 + $0x440] sm:$0xff]
    %v305 = vld [vmem:[#allocation3 + $0x448] sm:$0xff]
    %v306 = vld [vmem:[#allocation3 + $0x450] sm:$0xff]
    %v307 = vld [vmem:[#allocation3 + $0x458] sm:$0xff]
    %v308 = vld [vmem:[#allocation3 + $0x460] sm:$0xff]
    %v309 = vld [vmem:[#allocation3 + $0x468] sm:$0xff]
    %v310 = vld [vmem:[#allocation3 + $0x470] sm:$0xff]
    %v311 = vld [vmem:[#allocation3 + $0x478] sm:$0xff]
    %v312 = vld [vmem:[#allocation3 + $0x480] sm:$0xff]
    %v313 = vld [vmem:[#allocation3 + $0x488] sm:$0xff]
    %v314 = vld [vmem:[#allocation3 + $0x490] sm:$0xff]
    %v315 = vld [vmem:[#allocation3 + $0x498] sm:$0xff]
    %v316 = vld [vmem:[#allocation3 + $0x4a0] sm:$0xff]
    %v317 = vld [vmem:[#allocation3 + $0x4a8] sm:$0xff]
    %v318 = vld [vmem:[#allocation3 + $0x4b0] sm:$0xff]
    %v319 = vld [vmem:[#allocation3 + $0x4b8] sm:$0xff]
    %v320 = vld [vmem:[#allocation3 + $0x4c0] sm:$0xff]
    %v321 = vld [vmem:[#allocation3 + $0x4c8] sm:$0xff]
    %v322 = vld [vmem:[#allocation3 + $0x4d0] sm:$0xff]
    %v323 = vld [vmem:[#allocation3 + $0x4d8] sm:$0xff]
    %v324 = vld [vmem:[#allocation3 + $0x4e0] sm:$0xff]
    %v325 = vld [vmem:[#allocation3 + $0x4e8] sm:$0xff]
    %v326 = vld [vmem:[#allocation3 + $0x4f0] sm:$0xff]
    %v327 = vld [vmem:[#allocation3 + $0x4f8] sm:$0xff]
    %v328 = vld [vmem:[#allocation3 + $0x500] sm:$0xff]
    %v329 = vld [vmem:[#allocation3 + $0x508] sm:$0xff]
    %v330 = vld [vmem:[#allocation3 + $0x510] sm:$0xff]
    %v331 = vld [vmem:[#allocation3 + $0x518] sm:$0xff]
    %v332 = vld [vmem:[#allocation3 + $0x520] sm:$0xff]
    %v333 = vld [vmem:[#allocation3 + $0x528] sm:$0xff]
    %v334 = vld [vmem:[#allocation3 + $0x530] sm:$0xff]
    %v335 = vld [vmem:[#allocation3 + $0x538] sm:$0xff]
    %v336 = vld [vmem:[#allocation3 + $0x540] sm:$0xff]
    %v337 = vld [vmem:[#allocation3 + $0x548] sm:$0xff]
    %v338 = vld [vmem:[#allocation3 + $0x550] sm:$0xff]
    %v339 = vld [vmem:[#allocation3 + $0x558] sm:$0xff]
    %v340 = vld [vmem:[#allocation3 + $0x560] sm:$0xff]
    %v341 = vld [vmem:[#allocation3 + $0x568] sm:$0xff]
    %v342 = vld [vmem:[#allocation3 + $0x570] sm:$0xff]
    %v343 = vld [vmem:[#allocation3 + $0x578] sm:$0xff]
    %v344 = vld [vmem:[#allocation3 + $0x580] sm:$0xff]
    %v345 = vld [vmem:[#allocation3 + $0x588] sm:$0xff]
    %v346 = vld [vmem:[#allocation3 + $0x590] sm:$0xff]
    %v347 = vld [vmem:[#allocation3 + $0x598] sm:$0xff]
    %v348 = vld [vmem:[#allocation3 + $0x5a0] sm:$0xff]
    %v349 = vld [vmem:[#allocation3 + $0x5a8] sm:$0xff]
    %v350 = vld [vmem:[#allocation3 + $0x5b0] sm:$0xff]
    %v351 = vld [vmem:[#allocation3 + $0x5b8] sm:$0xff]
    %v352 = vld [vmem:[#allocation3 + $0x5c0] sm:$0xff]
    %v353 = vld [vmem:[#allocation3 + $0x5c8] sm:$0xff]
    %v354 = vld [vmem:[#allocation3 + $0x5d0] sm:$0xff]
    %v355 = vld [vmem:[#allocation3 + $0x5d8] sm:$0xff]
    %v356 = vld [vmem:[#allocation3 + $0x5e0] sm:$0xff]
    %v357 = vld [vmem:[#allocation3 + $0x5e8] sm:$0xff]
    %v358 = vld [vmem:[#allocation3 + $0x5f0] sm:$0xff]
    %v359 = vld [vmem:[#allocation3 + $0x5f8] sm:$0xff]
    %v360 = vld [vmem:[#allocation3 + $0x600] sm:$0xff]
    %v361 = vld [vmem:[#allocation3 + $0x608] sm:$0xff]
    %v362 = vld [vmem:[#allocation3 + $0x610] sm:$0xff]
    %v363 = vld [vmem:[#allocation3 + $0x618] sm:$0xff]
    %v364 = vld [vmem:[#allocation3 + $0x620] sm:$0xff]
    %v365 = vld [vmem:[#allocation3 + $0x628] sm:$0xff]
    %v366 = vld [vmem:[#allocation3 + $0x630] sm:$0xff]
    %v367 = vld [vmem:[#allocation3 + $0x638] sm:$0xff]
    %v368 = vld [vmem:[#allocation3 + $0x640] sm:$0xff]
    %v369 = vld [vmem:[#allocation3 + $0x648] sm:$0xff]
    %v370 = vld [vmem:[#allocation3 + $0x650] sm:$0xff]
    %v371 = vld [vmem:[#allocation3 + $0x658] sm:$0xff]
    %v372 = vld [vmem:[#allocation3 + $0x660] sm:$0xff]
    %v373 = vld [vmem:[#allocation3 + $0x668] sm:$0xff]
    %v374 = vld [vmem:[#allocation3 + $0x670] sm:$0xff]
    %v375 = vld [vmem:[#allocation3 + $0x678] sm:$0xff]
    %v376 = vld [vmem:[#allocation3 + $0x680] sm:$0xff]
    %v377 = vld [vmem:[#allocation3 + $0x688] sm:$0xff]
    %v378 = vld [vmem:[#allocation3 + $0x690] sm:$0xff]
    %v379 = vld [vmem:[#allocation3 + $0x698] sm:$0xff]
    %v380 = vld [vmem:[#allocation3 + $0x6a0] sm:$0xff]
    %v381 = vld [vmem:[#allocation3 + $0x6a8] sm:$0xff]
    %v382 = vld [vmem:[#allocation3 + $0x6b0] sm:$0xff]
    %v383 = vld [vmem:[#allocation3 + $0x6b8] sm:$0xff]
    %v384 = vld [vmem:[#allocation3 + $0x6c0] sm:$0xff]
    %v385 = vld [vmem:[#allocation3 + $0x6c8] sm:$0xff]
    %v386 = vld [vmem:[#allocation3 + $0x6d0] sm:$0xff]
    %v387 = vld [vmem:[#allocation3 + $0x6d8] sm:$0xff]
    %v388 = vld [vmem:[#allocation3 + $0x6e0] sm:$0xff]
    %v389 = vld [vmem:[#allocation3 + $0x6e8] sm:$0xff]
    %v390 = vld [vmem:[#allocation3 + $0x6f0] sm:$0xff]
    %v391 = vld [vmem:[#allocation3 + $0x6f8] sm:$0xff]
    %v392 = vld [vmem:[#allocation3 + $0x700] sm:$0xff]
    %v393 = vld [vmem:[#allocation3 + $0x708] sm:$0xff]
    %v394 = vld [vmem:[#allocation3 + $0x710] sm:$0xff]
    %v395 = vld [vmem:[#allocation3 + $0x718] sm:$0xff]
    %v396 = vld [vmem:[#allocation3 + $0x720] sm:$0xff]
    %v397 = vld [vmem:[#allocation3 + $0x728] sm:$0xff]
    %v398 = vld [vmem:[#allocation3 + $0x730] sm:$0xff]
    %v399 = vld [vmem:[#allocation3 + $0x738] sm:$0xff]
    %v400 = vld [vmem:[#allocation3 + $0x740] sm:$0xff]
    %v401 = vld [vmem:[#allocation3 + $0x748] sm:$0xff]
    %v402 = vld [vmem:[#allocation3 + $0x750] sm:$0xff]
    %v403 = vld [vmem:[#allocation3 + $0x758] sm:$0xff]
    %v404 = vld [vmem:[#allocation3 + $0x760] sm:$0xff]
    %v405 = vld [vmem:[#allocation3 + $0x768] sm:$0xff]
    %v406 = vld [vmem:[#allocation3 + $0x770] sm:$0xff]
    %v407 = vld [vmem:[#allocation3 + $0x778] sm:$0xff]
    %v408 = vld [vmem:[#allocation3 + $0x780] sm:$0xff]
    %v409 = vld [vmem:[#allocation3 + $0x788] sm:$0xff]
    %v410 = vld [vmem:[#allocation3 + $0x790] sm:$0xff]
    %v411 = vld [vmem:[#allocation3 + $0x798] sm:$0xff]
    %v412 = vld [vmem:[#allocation3 + $0x7a0] sm:$0xff]
    %v413 = vld [vmem:[#allocation3 + $0x7a8] sm:$0xff]
    %v414 = vld [vmem:[#allocation3 + $0x7b0] sm:$0xff]
    %v415 = vld [vmem:[#allocation3 + $0x7b8] sm:$0xff]
    %v416 = vld [vmem:[#allocation3 + $0x7c0] sm:$0xff]
    %v417 = vld [vmem:[#allocation3 + $0x7c8] sm:$0xff]
    %v418 = vld [vmem:[#allocation3 + $0x7d0] sm:$0xff]
    %v419 = vld [vmem:[#allocation3 + $0x7d8] sm:$0xff]
    %v420 = vld [vmem:[#allocation3 + $0x7e0] sm:$0xff]
    %v421 = vld [vmem:[#allocation3 + $0x7e8] sm:$0xff]
    %v422 = vld [vmem:[#allocation3 + $0x7f0] sm:$0xff]
    %v423 = vld [vmem:[#allocation3 + $0x7f8] sm:$0xff]
    %v424 = vld [vmem:[#allocation3 + $0x800] sm:$0xff]
    %v425 = vld [vmem:[#allocation3 + $0x808] sm:$0xff]
    %v426 = vld [vmem:[#allocation3 + $0x810] sm:$0xff]
    %v427 = vld [vmem:[#allocation3 + $0x818] sm:$0xff]
    %v428 = vld [vmem:[#allocation3 + $0x820] sm:$0xff]
    %v429 = vld [vmem:[#allocation3 + $0x828] sm:$0xff]
    %v430 = vld [vmem:[#allocation3 + $0x830] sm:$0xff]
    %v431 = vld [vmem:[#allocation3 + $0x838] sm:$0xff]
    %v432 = vld [vmem:[#allocation3 + $0x840] sm:$0xff]
    %v433 = vld [vmem:[#allocation3 + $0x848] sm:$0xff]
    %v434 = vld [vmem:[#allocation3 + $0x850] sm:$0xff]
    %v435 = vld [vmem:[#allocation3 + $0x858] sm:$0xff]
    %v436 = vld [vmem:[#allocation3 + $0x860] sm:$0xff]
    %v437 = vld [vmem:[#allocation3 + $0x868] sm:$0xff]
    %v438 = vld [vmem:[#allocation3 + $0x870] sm:$0xff]
    %v439 = vld [vmem:[#allocation3 + $0x878] sm:$0xff]
    %v440 = vld [vmem:[#allocation3 + $0x880] sm:$0xff]
    %v441 = vld [vmem:[#allocation3 + $0x888] sm:$0xff]
    %v442 = vld [vmem:[#allocation3 + $0x890] sm:$0xff]
    %v443 = vld [vmem:[#allocation3 + $0x898] sm:$0xff]
    %v444 = vld [vmem:[#allocation3 + $0x8a0] sm:$0xff]
    %v445 = vld [vmem:[#allocation3 + $0x8a8] sm:$0xff]
    %v446 = vld [vmem:[#allocation3 + $0x8b0] sm:$0xff]
    %v447 = vld [vmem:[#allocation3 + $0x8b8] sm:$0xff]
    %v448 = vld [vmem:[#allocation3 + $0x8c0] sm:$0xff]
    %v449 = vld [vmem:[#allocation3 + $0x8c8] sm:$0xff]
    %v450 = vld [vmem:[#allocation3 + $0x8d0] sm:$0xff]
    %v451 = vld [vmem:[#allocation3 + $0x8d8] sm:$0xff]
    %v452 = vld [vmem:[#allocation3 + $0x8e0] sm:$0xff]
    %v453 = vld [vmem:[#allocation3 + $0x8e8] sm:$0xff]
    %v454 = vld [vmem:[#allocation3 + $0x8f0] sm:$0xff]
    %v455 = vld [vmem:[#allocation3 + $0x8f8] sm:$0xff]
    %v456 = vld [vmem:[#allocation3 + $0x900] sm:$0xff]
    %v457 = vld [vmem:[#allocation3 + $0x908] sm:$0xff]
    %v458 = vld [vmem:[#allocation3 + $0x910] sm:$0xff]
    %v459 = vld [vmem:[#allocation3 + $0x918] sm:$0xff]
    %v460 = vld [vmem:[#allocation3 + $0x920] sm:$0xff]
    %v461 = vld [vmem:[#allocation3 + $0x928] sm:$0xff]
    %v462 = vld [vmem:[#allocation3 + $0x930] sm:$0xff]
    %v463 = vld [vmem:[#allocation3 + $0x938] sm:$0xff]
    %v464 = vld [vmem:[#allocation3 + $0x940] sm:$0xff]
    %v465 = vld [vmem:[#allocation3 + $0x948] sm:$0xff]
    %v466 = vld [vmem:[#allocation3 + $0x950] sm:$0xff]
    %v467 = vld [vmem:[#allocation3 + $0x958] sm:$0xff]
    %v468 = vld [vmem:[#allocation3 + $0x960] sm:$0xff]
    %v469 = vld [vmem:[#allocation3 + $0x968] sm:$0xff]
    %v470 = vld [vmem:[#allocation3 + $0x970] sm:$0xff]
    %v471 = vld [vmem:[#allocation3 + $0x978] sm:$0xff]
    %v472 = vld [vmem:[#allocation3 + $0x980] sm:$0xff]
    %v473 = vld [vmem:[#allocation3 + $0x988] sm:$0xff]
    %v474 = vld [vmem:[#allocation3 + $0x990] sm:$0xff]
    %v475 = vld [vmem:[#allocation3 + $0x998] sm:$0xff]
    %v476 = vld [vmem:[#allocation3 + $0x9a0] sm:$0xff]
    %v477 = vld [vmem:[#allocation3 + $0x9a8] sm:$0xff]
    %v478 = vld [vmem:[#allocation3 + $0x9b0] sm:$0xff]
    %v479 = vld [vmem:[#allocation3 + $0x9b8] sm:$0xff]
    %v480 = vld [vmem:[#allocation3 + $0x9c0] sm:$0xff]
    %v481 = vld [vmem:[#allocation3 + $0x9c8] sm:$0xff]
    %v482 = vld [vmem:[#allocation3 + $0x9d0] sm:$0xff]
    %v483 = vld [vmem:[#allocation3 + $0x9d8] sm:$0xff]
    %v484 = vld [vmem:[#allocation3 + $0x9e0] sm:$0xff]
    %v485 = vld [vmem:[#allocation3 + $0x9e8] sm:$0xff]
    %v486 = vld [vmem:[#allocation3 + $0x9f0] sm:$0xff]
    %v487 = vld [vmem:[#allocation3 + $0x9f8] sm:$0xff]
    %v488 = vld [vmem:[#allocation3 + $0xa00] sm:$0xff]
    %v489 = vld [vmem:[#allocation3 + $0xa08] sm:$0xff]
    %v490 = vld [vmem:[#allocation3 + $0xa10] sm:$0xff]
    %v491 = vld [vmem:[#allocation3 + $0xa18] sm:$0xff]
    %v492 = vld [vmem:[#allocation3 + $0xa20] sm:$0xff]
    %v493 = vld [vmem:[#allocation3 + $0xa28] sm:$0xff]
    %v494 = vld [vmem:[#allocation3 + $0xa30] sm:$0xff]
    %v495 = vld [vmem:[#allocation3 + $0xa38] sm:$0xff]
    %v496 = vld [vmem:[#allocation3 + $0xa40] sm:$0xff]
    %v497 = vld [vmem:[#allocation3 + $0xa48] sm:$0xff]
    %v498 = vld [vmem:[#allocation3 + $0xa50] sm:$0xff]
    %v499 = vld [vmem:[#allocation3 + $0xa58] sm:$0xff]
    %v500 = vld [vmem:[#allocation3 + $0xa60] sm:$0xff]
    %v501 = vld [vmem:[#allocation3 + $0xa68] sm:$0xff]
    %v502 = vld [vmem:[#allocation3 + $0xa70] sm:$0xff]
    %v503 = vld [vmem:[#allocation3 + $0xa78] sm:$0xff]
    %v504 = vld [vmem:[#allocation3 + $0xa80] sm:$0xff]
    %v505 = vld [vmem:[#allocation3 + $0xa88] sm:$0xff]
    %v506 = vld [vmem:[#allocation3 + $0xa90] sm:$0xff]
    %v507 = vld [vmem:[#allocation3 + $0xa98] sm:$0xff]
    %v508 = vld [vmem:[#allocation3 + $0xaa0] sm:$0xff]
    %v509 = vld [vmem:[#allocation3 + $0xaa8] sm:$0xff]
    %v510 = vld [vmem:[#allocation3 + $0xab0] sm:$0xff]
    %v511 = vld [vmem:[#allocation3 + $0xab8] sm:$0xff]
    %v512 = vld [vmem:[#allocation3 + $0xac0] sm:$0xff]
    %v513 = vld [vmem:[#allocation3 + $0xac8] sm:$0xff]
    %v514 = vld [vmem:[#allocation3 + $0xad0] sm:$0xff]
    %v515 = vld [vmem:[#allocation3 + $0xad8] sm:$0xff]
    %v516 = vld [vmem:[#allocation3 + $0xae0] sm:$0xff]
    %v517 = vld [vmem:[#allocation3 + $0xae8] sm:$0xff]
    %v518 = vld [vmem:[#allocation3 + $0xaf0] sm:$0xff]
    %v519 = vld [vmem:[#allocation3 + $0xaf8] sm:$0xff]
    %v520 = vld [vmem:[#allocation3 + $0xb00] sm:$0xff]
    %v521 = vld [vmem:[#allocation3 + $0xb08] sm:$0xff]
    %v522 = vld [vmem:[#allocation3 + $0xb10] sm:$0xff]
    %v523 = vld [vmem:[#allocation3 + $0xb18] sm:$0xff]
    %v524 = vld [vmem:[#allocation3 + $0xb20] sm:$0xff]
    %v525 = vld [vmem:[#allocation3 + $0xb28] sm:$0xff]
    %v526 = vld [vmem:[#allocation3 + $0xb30] sm:$0xff]
    %v527 = vld [vmem:[#allocation3 + $0xb38] sm:$0xff]
    %v528 = vld [vmem:[#allocation3 + $0xb40] sm:$0xff]
    %v529 = vld [vmem:[#allocation3 + $0xb48] sm:$0xff]
    %v530 = vld [vmem:[#allocation3 + $0xb50] sm:$0xff]
    %v531 = vld [vmem:[#allocation3 + $0xb58] sm:$0xff]
    %v532 = vld [vmem:[#allocation3 + $0xb60] sm:$0xff]
    %v533 = vld [vmem:[#allocation3 + $0xb68] sm:$0xff]
    %v534 = vld [vmem:[#allocation3 + $0xb70] sm:$0xff]
    %v535 = vld [vmem:[#allocation3 + $0xb78] sm:$0xff]
    %v536 = vld [vmem:[#allocation3 + $0xb80] sm:$0xff]
    %v537 = vld [vmem:[#allocation3 + $0xb88] sm:$0xff]
    %v538 = vld [vmem:[#allocation3 + $0xb90] sm:$0xff]
    %v539 = vld [vmem:[#allocation3 + $0xb98] sm:$0xff]
    %v540 = vld [vmem:[#allocation3 + $0xba0] sm:$0xff]
    %v541 = vld [vmem:[#allocation3 + $0xba8] sm:$0xff]
    %v542 = vld [vmem:[#allocation3 + $0xbb0] sm:$0xff]
    %v543 = vld [vmem:[#allocation3 + $0xbb8] sm:$0xff]
    %v544 = vld [vmem:[#allocation3 + $0xbc0] sm:$0xff]
    %v545 = vld [vmem:[#allocation3 + $0xbc8] sm:$0xff]
    %v546 = vld [vmem:[#allocation3 + $0xbd0] sm:$0xff]
    %v547 = vld [vmem:[#allocation3 + $0xbd8] sm:$0xff]
    %v548 = vld [vmem:[#allocation3 + $0xbe0] sm:$0xff]
    %v549 = vld [vmem:[#allocation3 + $0xbe8] sm:$0xff]
    %v550 = vld [vmem:[#allocation3 + $0xbf0] sm:$0xff]
    %v551 = vld [vmem:[#allocation3 + $0xbf8] sm:$0xff]
    %v552 = vunpack.c.l.bf16 %v168
    %v553 = vunpack.c.h.bf16 %v168
    %v554 = vunpack.c.l.bf16 %v169
    %v555 = vunpack.c.h.bf16 %v169
    %v556 = vunpack.c.l.bf16 %v170
    %v557 = vunpack.c.h.bf16 %v170
    %v558 = vunpack.c.l.bf16 %v171
    %v559 = vunpack.c.h.bf16 %v171
    %v560 = vunpack.c.l.bf16 %v172
    %v561 = vunpack.c.h.bf16 %v172
    %v562 = vunpack.c.l.bf16 %v173
    %v563 = vunpack.c.h.bf16 %v173
    %v564 = vunpack.c.l.bf16 %v174
    %v565 = vunpack.c.h.bf16 %v174
    %v566 = vunpack.c.l.bf16 %v175
    %v567 = vunpack.c.h.bf16 %v175
    %v568 = vunpack.c.l.bf16 %v176
    %v569 = vunpack.c.h.bf16 %v176
    %v570 = vunpack.c.l.bf16 %v177
    %v571 = vunpack.c.h.bf16 %v177
    %v572 = vunpack.c.l.bf16 %v178
    %v573 = vunpack.c.h.bf16 %v178
    %v574 = vunpack.c.l.bf16 %v179
    %v575 = vunpack.c.h.bf16 %v179
    %v576 = vunpack.c.l.bf16 %v180
    %v577 = vunpack.c.h.bf16 %v180
    %v578 = vunpack.c.l.bf16 %v181
    %v579 = vunpack.c.h.bf16 %v181
    %v580 = vunpack.c.l.bf16 %v182
    %v581 = vunpack.c.h.bf16 %v182
    %v582 = vunpack.c.l.bf16 %v183
    %v583 = vunpack.c.h.bf16 %v183
    %v584 = vunpack.c.l.bf16 %v184
    %v585 = vunpack.c.h.bf16 %v184
    %v586 = vunpack.c.l.bf16 %v185
    %v587 = vunpack.c.h.bf16 %v185
    %v588 = vunpack.c.l.bf16 %v186
    %v589 = vunpack.c.h.bf16 %v186
    %v590 = vunpack.c.l.bf16 %v187
    %v591 = vunpack.c.h.bf16 %v187
    %v592 = vunpack.c.l.bf16 %v188
    %v593 = vunpack.c.h.bf16 %v188
    %v594 = vunpack.c.l.bf16 %v189
    %v595 = vunpack.c.h.bf16 %v189
    %v596 = vunpack.c.l.bf16 %v190
    %v597 = vunpack.c.h.bf16 %v190
    %v598 = vunpack.c.l.bf16 %v191
    %v599 = vunpack.c.h.bf16 %v191
    %v600 = vunpack.c.l.bf16 %v192
    %v601 = vunpack.c.h.bf16 %v192
    %v602 = vunpack.c.l.bf16 %v193
    %v603 = vunpack.c.h.bf16 %v193
    %v604 = vunpack.c.l.bf16 %v194
    %v605 = vunpack.c.h.bf16 %v194
    %v606 = vunpack.c.l.bf16 %v195
    %v607 = vunpack.c.h.bf16 %v195
    %v608 = vunpack.c.l.bf16 %v196
    %v609 = vunpack.c.h.bf16 %v196
    %v610 = vunpack.c.l.bf16 %v197
    %v611 = vunpack.c.h.bf16 %v197
    %v612 = vunpack.c.l.bf16 %v198
    %v613 = vunpack.c.h.bf16 %v198
    %v614 = vunpack.c.l.bf16 %v199
    %v615 = vunpack.c.h.bf16 %v199
    %v616 = vunpack.c.l.bf16 %v200
    %v617 = vunpack.c.h.bf16 %v200
    %v618 = vunpack.c.l.bf16 %v201
    %v619 = vunpack.c.h.bf16 %v201
    %v620 = vunpack.c.l.bf16 %v202
    %v621 = vunpack.c.h.bf16 %v202
    %v622 = vunpack.c.l.bf16 %v203
    %v623 = vunpack.c.h.bf16 %v203
    %v624 = vunpack.c.l.bf16 %v204
    %v625 = vunpack.c.h.bf16 %v204
    %v626 = vunpack.c.l.bf16 %v205
    %v627 = vunpack.c.h.bf16 %v205
    %v628 = vunpack.c.l.bf16 %v206
    %v629 = vunpack.c.h.bf16 %v206
    %v630 = vunpack.c.l.bf16 %v207
    %v631 = vunpack.c.h.bf16 %v207
    %v632 = vunpack.c.l.bf16 %v208
    %v633 = vunpack.c.h.bf16 %v208
    %v634 = vunpack.c.l.bf16 %v209
    %v635 = vunpack.c.h.bf16 %v209
    %v636 = vunpack.c.l.bf16 %v210
    %v637 = vunpack.c.h.bf16 %v210
    %v638 = vunpack.c.l.bf16 %v211
    %v639 = vunpack.c.h.bf16 %v211
    %v640 = vunpack.c.l.bf16 %v212
    %v641 = vunpack.c.h.bf16 %v212
    %v642 = vunpack.c.l.bf16 %v213
    %v643 = vunpack.c.h.bf16 %v213
    %v644 = vunpack.c.l.bf16 %v214
    %v645 = vunpack.c.h.bf16 %v214
    %v646 = vunpack.c.l.bf16 %v215
    %v647 = vunpack.c.h.bf16 %v215
    %v648 = vunpack.c.l.bf16 %v216
    %v649 = vunpack.c.h.bf16 %v216
    %v650 = vunpack.c.l.bf16 %v217
    %v651 = vunpack.c.h.bf16 %v217
    %v652 = vunpack.c.l.bf16 %v218
    %v653 = vunpack.c.h.bf16 %v218
    %v654 = vunpack.c.l.bf16 %v219
    %v655 = vunpack.c.h.bf16 %v219
    %v656 = vunpack.c.l.bf16 %v220
    %v657 = vunpack.c.h.bf16 %v220
    %v658 = vunpack.c.l.bf16 %v221
    %v659 = vunpack.c.h.bf16 %v221
    %v660 = vunpack.c.l.bf16 %v222
    %v661 = vunpack.c.h.bf16 %v222
    %v662 = vunpack.c.l.bf16 %v223
    %v663 = vunpack.c.h.bf16 %v223
    %v664 = vunpack.c.l.bf16 %v224
    %v665 = vunpack.c.h.bf16 %v224
    %v666 = vunpack.c.l.bf16 %v225
    %v667 = vunpack.c.h.bf16 %v225
    %v668 = vunpack.c.l.bf16 %v226
    %v669 = vunpack.c.h.bf16 %v226
    %v670 = vunpack.c.l.bf16 %v227
    %v671 = vunpack.c.h.bf16 %v227
    %v672 = vunpack.c.l.bf16 %v228
    %v673 = vunpack.c.h.bf16 %v228
    %v674 = vunpack.c.l.bf16 %v229
    %v675 = vunpack.c.h.bf16 %v229
    %v676 = vunpack.c.l.bf16 %v230
    %v677 = vunpack.c.h.bf16 %v230
    %v678 = vunpack.c.l.bf16 %v231
    %v679 = vunpack.c.h.bf16 %v231
    %v680 = vunpack.c.l.bf16 %v232
    %v681 = vunpack.c.h.bf16 %v232
    %v682 = vunpack.c.l.bf16 %v233
    %v683 = vunpack.c.h.bf16 %v233
    %v684 = vunpack.c.l.bf16 %v234
    %v685 = vunpack.c.h.bf16 %v234
    %v686 = vunpack.c.l.bf16 %v235
    %v687 = vunpack.c.h.bf16 %v235
    %v688 = vunpack.c.l.bf16 %v236
    %v689 = vunpack.c.h.bf16 %v236
    %v690 = vunpack.c.l.bf16 %v237
    %v691 = vunpack.c.h.bf16 %v237
    %v692 = vunpack.c.l.bf16 %v238
    %v693 = vunpack.c.h.bf16 %v238
    %v694 = vunpack.c.l.bf16 %v239
    %v695 = vunpack.c.h.bf16 %v239
    %v696 = vunpack.c.l.bf16 %v240
    %v697 = vunpack.c.h.bf16 %v240
    %v698 = vunpack.c.l.bf16 %v241
    %v699 = vunpack.c.h.bf16 %v241
    %v700 = vunpack.c.l.bf16 %v242
    %v701 = vunpack.c.h.bf16 %v242
    %v702 = vunpack.c.l.bf16 %v243
    %v703 = vunpack.c.h.bf16 %v243
    %v704 = vunpack.c.l.bf16 %v244
    %v705 = vunpack.c.h.bf16 %v244
    %v706 = vunpack.c.l.bf16 %v245
    %v707 = vunpack.c.h.bf16 %v245
    %v708 = vunpack.c.l.bf16 %v246
    %v709 = vunpack.c.h.bf16 %v246
    %v710 = vunpack.c.l.bf16 %v247
    %v711 = vunpack.c.h.bf16 %v247
    %v712 = vunpack.c.l.bf16 %v248
    %v713 = vunpack.c.h.bf16 %v248
    %v714 = vunpack.c.l.bf16 %v249
    %v715 = vunpack.c.h.bf16 %v249
    %v716 = vunpack.c.l.bf16 %v250
    %v717 = vunpack.c.h.bf16 %v250
    %v718 = vunpack.c.l.bf16 %v251
    %v719 = vunpack.c.h.bf16 %v251
    %v720 = vunpack.c.l.bf16 %v252
    %v721 = vunpack.c.h.bf16 %v252
    %v722 = vunpack.c.l.bf16 %v253
    %v723 = vunpack.c.h.bf16 %v253
    %v724 = vunpack.c.l.bf16 %v254
    %v725 = vunpack.c.h.bf16 %v254
    %v726 = vunpack.c.l.bf16 %v255
    %v727 = vunpack.c.h.bf16 %v255
    %v728 = vunpack.c.l.bf16 %v256
    %v729 = vunpack.c.h.bf16 %v256
    %v730 = vunpack.c.l.bf16 %v257
    %v731 = vunpack.c.h.bf16 %v257
    %v732 = vunpack.c.l.bf16 %v258
    %v733 = vunpack.c.h.bf16 %v258
    %v734 = vunpack.c.l.bf16 %v259
    %v735 = vunpack.c.h.bf16 %v259
    %v736 = vunpack.c.l.bf16 %v260
    %v737 = vunpack.c.h.bf16 %v260
    %v738 = vunpack.c.l.bf16 %v261
    %v739 = vunpack.c.h.bf16 %v261
    %v740 = vunpack.c.l.bf16 %v262
    %v741 = vunpack.c.h.bf16 %v262
    %v742 = vunpack.c.l.bf16 %v263
    %v743 = vunpack.c.h.bf16 %v263
    %v744 = vunpack.c.l.bf16 %v264
    %v745 = vunpack.c.h.bf16 %v264
    %v746 = vunpack.c.l.bf16 %v265
    %v747 = vunpack.c.h.bf16 %v265
    %v748 = vunpack.c.l.bf16 %v266
    %v749 = vunpack.c.h.bf16 %v266
    %v750 = vunpack.c.l.bf16 %v267
    %v751 = vunpack.c.h.bf16 %v267
    %v752 = vunpack.c.l.bf16 %v268
    %v753 = vunpack.c.h.bf16 %v268
    %v754 = vunpack.c.l.bf16 %v269
    %v755 = vunpack.c.h.bf16 %v269
    %v756 = vunpack.c.l.bf16 %v270
    %v757 = vunpack.c.h.bf16 %v270
    %v758 = vunpack.c.l.bf16 %v271
    %v759 = vunpack.c.h.bf16 %v271
    %v760 = vunpack.c.l.bf16 %v272
    %v761 = vunpack.c.h.bf16 %v272
    %v762 = vunpack.c.l.bf16 %v273
    %v763 = vunpack.c.h.bf16 %v273
    %v764 = vunpack.c.l.bf16 %v274
    %v765 = vunpack.c.h.bf16 %v274
    %v766 = vunpack.c.l.bf16 %v275
    %v767 = vunpack.c.h.bf16 %v275
    %v768 = vunpack.c.l.bf16 %v276
    %v769 = vunpack.c.h.bf16 %v276
    %v770 = vunpack.c.l.bf16 %v277
    %v771 = vunpack.c.h.bf16 %v277
    %v772 = vunpack.c.l.bf16 %v278
    %v773 = vunpack.c.h.bf16 %v278
    %v774 = vunpack.c.l.bf16 %v279
    %v775 = vunpack.c.h.bf16 %v279
    %v776 = vunpack.c.l.bf16 %v280
    %v777 = vunpack.c.h.bf16 %v280
    %v778 = vunpack.c.l.bf16 %v281
    %v779 = vunpack.c.h.bf16 %v281
    %v780 = vunpack.c.l.bf16 %v282
    %v781 = vunpack.c.h.bf16 %v282
    %v782 = vunpack.c.l.bf16 %v283
    %v783 = vunpack.c.h.bf16 %v283
    %v784 = vunpack.c.l.bf16 %v284
    %v785 = vunpack.c.h.bf16 %v284
    %v786 = vunpack.c.l.bf16 %v285
    %v787 = vunpack.c.h.bf16 %v285
    %v788 = vunpack.c.l.bf16 %v286
    %v789 = vunpack.c.h.bf16 %v286
    %v790 = vunpack.c.l.bf16 %v287
    %v791 = vunpack.c.h.bf16 %v287
    %v792 = vunpack.c.l.bf16 %v288
    %v793 = vunpack.c.h.bf16 %v288
    %v794 = vunpack.c.l.bf16 %v289
    %v795 = vunpack.c.h.bf16 %v289
    %v796 = vunpack.c.l.bf16 %v290
    %v797 = vunpack.c.h.bf16 %v290
    %v798 = vunpack.c.l.bf16 %v291
    %v799 = vunpack.c.h.bf16 %v291
    %v800 = vunpack.c.l.bf16 %v292
    %v801 = vunpack.c.h.bf16 %v292
    %v802 = vunpack.c.l.bf16 %v293
    %v803 = vunpack.c.h.bf16 %v293
    %v804 = vunpack.c.l.bf16 %v294
    %v805 = vunpack.c.h.bf16 %v294
    %v806 = vunpack.c.l.bf16 %v295
    %v807 = vunpack.c.h.bf16 %v295
    %v808 = vunpack.c.l.bf16 %v296
    %v809 = vunpack.c.h.bf16 %v296
    %v810 = vunpack.c.l.bf16 %v297
    %v811 = vunpack.c.h.bf16 %v297
    %v812 = vunpack.c.l.bf16 %v298
    %v813 = vunpack.c.h.bf16 %v298
    %v814 = vunpack.c.l.bf16 %v299
    %v815 = vunpack.c.h.bf16 %v299
    %v816 = vunpack.c.l.bf16 %v300
    %v817 = vunpack.c.h.bf16 %v300
    %v818 = vunpack.c.l.bf16 %v301
    %v819 = vunpack.c.h.bf16 %v301
    %v820 = vunpack.c.l.bf16 %v302
    %v821 = vunpack.c.h.bf16 %v302
    %v822 = vunpack.c.l.bf16 %v303
    %v823 = vunpack.c.h.bf16 %v303
    %v824 = vunpack.c.l.bf16 %v304
    %v825 = vunpack.c.h.bf16 %v304
    %v826 = vunpack.c.l.bf16 %v305
    %v827 = vunpack.c.h.bf16 %v305
    %v828 = vunpack.c.l.bf16 %v306
    %v829 = vunpack.c.h.bf16 %v306
    %v830 = vunpack.c.l.bf16 %v307
    %v831 = vunpack.c.h.bf16 %v307
    %v832 = vunpack.c.l.bf16 %v308
    %v833 = vunpack.c.h.bf16 %v308
    %v834 = vunpack.c.l.bf16 %v309
    %v835 = vunpack.c.h.bf16 %v309
    %v836 = vunpack.c.l.bf16 %v310
    %v837 = vunpack.c.h.bf16 %v310
    %v838 = vunpack.c.l.bf16 %v311
    %v839 = vunpack.c.h.bf16 %v311
    %v840 = vunpack.c.l.bf16 %v312
    %v841 = vunpack.c.h.bf16 %v312
    %v842 = vunpack.c.l.bf16 %v313
    %v843 = vunpack.c.h.bf16 %v313
    %v844 = vunpack.c.l.bf16 %v314
    %v845 = vunpack.c.h.bf16 %v314
    %v846 = vunpack.c.l.bf16 %v315
    %v847 = vunpack.c.h.bf16 %v315
    %v848 = vunpack.c.l.bf16 %v316
    %v849 = vunpack.c.h.bf16 %v316
    %v850 = vunpack.c.l.bf16 %v317
    %v851 = vunpack.c.h.bf16 %v317
    %v852 = vunpack.c.l.bf16 %v318
    %v853 = vunpack.c.h.bf16 %v318
    %v854 = vunpack.c.l.bf16 %v319
    %v855 = vunpack.c.h.bf16 %v319
    %v856 = vunpack.c.l.bf16 %v320
    %v857 = vunpack.c.h.bf16 %v320
    %v858 = vunpack.c.l.bf16 %v321
    %v859 = vunpack.c.h.bf16 %v321
    %v860 = vunpack.c.l.bf16 %v322
    %v861 = vunpack.c.h.bf16 %v322
    %v862 = vunpack.c.l.bf16 %v323
    %v863 = vunpack.c.h.bf16 %v323
    %v864 = vunpack.c.l.bf16 %v324
    %v865 = vunpack.c.h.bf16 %v324
    %v866 = vunpack.c.l.bf16 %v325
    %v867 = vunpack.c.h.bf16 %v325
    %v868 = vunpack.c.l.bf16 %v326
    %v869 = vunpack.c.h.bf16 %v326
    %v870 = vunpack.c.l.bf16 %v327
    %v871 = vunpack.c.h.bf16 %v327
    %v872 = vunpack.c.l.bf16 %v328
    %v873 = vunpack.c.h.bf16 %v328
    %v874 = vunpack.c.l.bf16 %v329
    %v875 = vunpack.c.h.bf16 %v329
    %v876 = vunpack.c.l.bf16 %v330
    %v877 = vunpack.c.h.bf16 %v330
    %v878 = vunpack.c.l.bf16 %v331
    %v879 = vunpack.c.h.bf16 %v331
    %v880 = vunpack.c.l.bf16 %v332
    %v881 = vunpack.c.h.bf16 %v332
    %v882 = vunpack.c.l.bf16 %v333
    %v883 = vunpack.c.h.bf16 %v333
    %v884 = vunpack.c.l.bf16 %v334
    %v885 = vunpack.c.h.bf16 %v334
    %v886 = vunpack.c.l.bf16 %v335
    %v887 = vunpack.c.h.bf16 %v335
    %v888 = vunpack.c.l.bf16 %v336
    %v889 = vunpack.c.h.bf16 %v336
    %v890 = vunpack.c.l.bf16 %v337
    %v891 = vunpack.c.h.bf16 %v337
    %v892 = vunpack.c.l.bf16 %v338
    %v893 = vunpack.c.h.bf16 %v338
    %v894 = vunpack.c.l.bf16 %v339
    %v895 = vunpack.c.h.bf16 %v339
    %v896 = vunpack.c.l.bf16 %v340
    %v897 = vunpack.c.h.bf16 %v340
    %v898 = vunpack.c.l.bf16 %v341
    %v899 = vunpack.c.h.bf16 %v341
    %v900 = vunpack.c.l.bf16 %v342
    %v901 = vunpack.c.h.bf16 %v342
    %v902 = vunpack.c.l.bf16 %v343
    %v903 = vunpack.c.h.bf16 %v343
    %v904 = vunpack.c.l.bf16 %v344
    %v905 = vunpack.c.h.bf16 %v344
    %v906 = vunpack.c.l.bf16 %v345
    %v907 = vunpack.c.h.bf16 %v345
    %v908 = vunpack.c.l.bf16 %v346
    %v909 = vunpack.c.h.bf16 %v346
    %v910 = vunpack.c.l.bf16 %v347
    %v911 = vunpack.c.h.bf16 %v347
    %v912 = vunpack.c.l.bf16 %v348
    %v913 = vunpack.c.h.bf16 %v348
    %v914 = vunpack.c.l.bf16 %v349
    %v915 = vunpack.c.h.bf16 %v349
    %v916 = vunpack.c.l.bf16 %v350
    %v917 = vunpack.c.h.bf16 %v350
    %v918 = vunpack.c.l.bf16 %v351
    %v919 = vunpack.c.h.bf16 %v351
    %v920 = vunpack.c.l.bf16 %v352
    %v921 = vunpack.c.h.bf16 %v352
    %v922 = vunpack.c.l.bf16 %v353
    %v923 = vunpack.c.h.bf16 %v353
    %v924 = vunpack.c.l.bf16 %v354
    %v925 = vunpack.c.h.bf16 %v354
    %v926 = vunpack.c.l.bf16 %v355
    %v927 = vunpack.c.h.bf16 %v355
    %v928 = vunpack.c.l.bf16 %v356
    %v929 = vunpack.c.h.bf16 %v356
    %v930 = vunpack.c.l.bf16 %v357
    %v931 = vunpack.c.h.bf16 %v357
    %v932 = vunpack.c.l.bf16 %v358
    %v933 = vunpack.c.h.bf16 %v358
    %v934 = vunpack.c.l.bf16 %v359
    %v935 = vunpack.c.h.bf16 %v359
    %v936 = vunpack.c.l.bf16 %v360
    %v937 = vunpack.c.h.bf16 %v360
    %v938 = vunpack.c.l.bf16 %v361
    %v939 = vunpack.c.h.bf16 %v361
    %v940 = vunpack.c.l.bf16 %v362
    %v941 = vunpack.c.h.bf16 %v362
    %v942 = vunpack.c.l.bf16 %v363
    %v943 = vunpack.c.h.bf16 %v363
    %v944 = vunpack.c.l.bf16 %v364
    %v945 = vunpack.c.h.bf16 %v364
    %v946 = vunpack.c.l.bf16 %v365
    %v947 = vunpack.c.h.bf16 %v365
    %v948 = vunpack.c.l.bf16 %v366
    %v949 = vunpack.c.h.bf16 %v366
    %v950 = vunpack.c.l.bf16 %v367
    %v951 = vunpack.c.h.bf16 %v367
    %v952 = vunpack.c.l.bf16 %v368
    %v953 = vunpack.c.h.bf16 %v368
    %v954 = vunpack.c.l.bf16 %v369
    %v955 = vunpack.c.h.bf16 %v369
    %v956 = vunpack.c.l.bf16 %v370
    %v957 = vunpack.c.h.bf16 %v370
    %v958 = vunpack.c.l.bf16 %v371
    %v959 = vunpack.c.h.bf16 %v371
    %v960 = vunpack.c.l.bf16 %v372
    %v961 = vunpack.c.h.bf16 %v372
    %v962 = vunpack.c.l.bf16 %v373
    %v963 = vunpack.c.h.bf16 %v373
    %v964 = vunpack.c.l.bf16 %v374
    %v965 = vunpack.c.h.bf16 %v374
    %v966 = vunpack.c.l.bf16 %v375
    %v967 = vunpack.c.h.bf16 %v375
    %v968 = vunpack.c.l.bf16 %v376
    %v969 = vunpack.c.h.bf16 %v376
    %v970 = vunpack.c.l.bf16 %v377
    %v971 = vunpack.c.h.bf16 %v377
    %v972 = vunpack.c.l.bf16 %v378
    %v973 = vunpack.c.h.bf16 %v378
    %v974 = vunpack.c.l.bf16 %v379
    %v975 = vunpack.c.h.bf16 %v379
    %v976 = vunpack.c.l.bf16 %v380
    %v977 = vunpack.c.h.bf16 %v380
    %v978 = vunpack.c.l.bf16 %v381
    %v979 = vunpack.c.h.bf16 %v381
    %v980 = vunpack.c.l.bf16 %v382
    %v981 = vunpack.c.h.bf16 %v382
    %v982 = vunpack.c.l.bf16 %v383
    %v983 = vunpack.c.h.bf16 %v383
    %v984 = vunpack.c.l.bf16 %v384
    %v985 = vunpack.c.h.bf16 %v384
    %v986 = vunpack.c.l.bf16 %v385
    %v987 = vunpack.c.h.bf16 %v385
    %v988 = vunpack.c.l.bf16 %v386
    %v989 = vunpack.c.h.bf16 %v386
    %v990 = vunpack.c.l.bf16 %v387
    %v991 = vunpack.c.h.bf16 %v387
    %v992 = vunpack.c.l.bf16 %v388
    %v993 = vunpack.c.h.bf16 %v388
    %v994 = vunpack.c.l.bf16 %v389
    %v995 = vunpack.c.h.bf16 %v389
    %v996 = vunpack.c.l.bf16 %v390
    %v997 = vunpack.c.h.bf16 %v390
    %v998 = vunpack.c.l.bf16 %v391
    %v999 = vunpack.c.h.bf16 %v391
    %v1000 = vunpack.c.l.bf16 %v392
    %v1001 = vunpack.c.h.bf16 %v392
    %v1002 = vunpack.c.l.bf16 %v393
    %v1003 = vunpack.c.h.bf16 %v393
    %v1004 = vunpack.c.l.bf16 %v394
    %v1005 = vunpack.c.h.bf16 %v394
    %v1006 = vunpack.c.l.bf16 %v395
    %v1007 = vunpack.c.h.bf16 %v395
    %v1008 = vunpack.c.l.bf16 %v396
    %v1009 = vunpack.c.h.bf16 %v396
    %v1010 = vunpack.c.l.bf16 %v397
    %v1011 = vunpack.c.h.bf16 %v397
    %v1012 = vunpack.c.l.bf16 %v398
    %v1013 = vunpack.c.h.bf16 %v398
    %v1014 = vunpack.c.l.bf16 %v399
    %v1015 = vunpack.c.h.bf16 %v399
    %v1016 = vunpack.c.l.bf16 %v400
    %v1017 = vunpack.c.h.bf16 %v400
    %v1018 = vunpack.c.l.bf16 %v401
    %v1019 = vunpack.c.h.bf16 %v401
    %v1020 = vunpack.c.l.bf16 %v402
    %v1021 = vunpack.c.h.bf16 %v402
    %v1022 = vunpack.c.l.bf16 %v403
    %v1023 = vunpack.c.h.bf16 %v403
    %v1024 = vunpack.c.l.bf16 %v404
    %v1025 = vunpack.c.h.bf16 %v404
    %v1026 = vunpack.c.l.bf16 %v405
    %v1027 = vunpack.c.h.bf16 %v405
    %v1028 = vunpack.c.l.bf16 %v406
    %v1029 = vunpack.c.h.bf16 %v406
    %v1030 = vunpack.c.l.bf16 %v407
    %v1031 = vunpack.c.h.bf16 %v407
    %v1032 = vunpack.c.l.bf16 %v408
    %v1033 = vunpack.c.h.bf16 %v408
    %v1034 = vunpack.c.l.bf16 %v409
    %v1035 = vunpack.c.h.bf16 %v409
    %v1036 = vunpack.c.l.bf16 %v410
    %v1037 = vunpack.c.h.bf16 %v410
    %v1038 = vunpack.c.l.bf16 %v411
    %v1039 = vunpack.c.h.bf16 %v411
    %v1040 = vunpack.c.l.bf16 %v412
    %v1041 = vunpack.c.h.bf16 %v412
    %v1042 = vunpack.c.l.bf16 %v413
    %v1043 = vunpack.c.h.bf16 %v413
    %v1044 = vunpack.c.l.bf16 %v414
    %v1045 = vunpack.c.h.bf16 %v414
    %v1046 = vunpack.c.l.bf16 %v415
    %v1047 = vunpack.c.h.bf16 %v415
    %v1048 = vunpack.c.l.bf16 %v416
    %v1049 = vunpack.c.h.bf16 %v416
    %v1050 = vunpack.c.l.bf16 %v417
    %v1051 = vunpack.c.h.bf16 %v417
    %v1052 = vunpack.c.l.bf16 %v418
    %v1053 = vunpack.c.h.bf16 %v418
    %v1054 = vunpack.c.l.bf16 %v419
    %v1055 = vunpack.c.h.bf16 %v419
    %v1056 = vunpack.c.l.bf16 %v420
    %v1057 = vunpack.c.h.bf16 %v420
    %v1058 = vunpack.c.l.bf16 %v421
    %v1059 = vunpack.c.h.bf16 %v421
    %v1060 = vunpack.c.l.bf16 %v422
    %v1061 = vunpack.c.h.bf16 %v422
    %v1062 = vunpack.c.l.bf16 %v423
    %v1063 = vunpack.c.h.bf16 %v423
    %v1064 = vunpack.c.l.bf16 %v424
    %v1065 = vunpack.c.h.bf16 %v424
    %v1066 = vunpack.c.l.bf16 %v425
    %v1067 = vunpack.c.h.bf16 %v425
    %v1068 = vunpack.c.l.bf16 %v426
    %v1069 = vunpack.c.h.bf16 %v426
    %v1070 = vunpack.c.l.bf16 %v427
    %v1071 = vunpack.c.h.bf16 %v427
    %v1072 = vunpack.c.l.bf16 %v428
    %v1073 = vunpack.c.h.bf16 %v428
    %v1074 = vunpack.c.l.bf16 %v429
    %v1075 = vunpack.c.h.bf16 %v429
    %v1076 = vunpack.c.l.bf16 %v430
    %v1077 = vunpack.c.h.bf16 %v430
    %v1078 = vunpack.c.l.bf16 %v431
    %v1079 = vunpack.c.h.bf16 %v431
    %v1080 = vunpack.c.l.bf16 %v432
    %v1081 = vunpack.c.h.bf16 %v432
    %v1082 = vunpack.c.l.bf16 %v433
    %v1083 = vunpack.c.h.bf16 %v433
    %v1084 = vunpack.c.l.bf16 %v434
    %v1085 = vunpack.c.h.bf16 %v434
    %v1086 = vunpack.c.l.bf16 %v435
    %v1087 = vunpack.c.h.bf16 %v435
    %v1088 = vunpack.c.l.bf16 %v436
    %v1089 = vunpack.c.h.bf16 %v436
    %v1090 = vunpack.c.l.bf16 %v437
    %v1091 = vunpack.c.h.bf16 %v437
    %v1092 = vunpack.c.l.bf16 %v438
    %v1093 = vunpack.c.h.bf16 %v438
    %v1094 = vunpack.c.l.bf16 %v439
    %v1095 = vunpack.c.h.bf16 %v439
    %v1096 = vunpack.c.l.bf16 %v440
    %v1097 = vunpack.c.h.bf16 %v440
    %v1098 = vunpack.c.l.bf16 %v441
    %v1099 = vunpack.c.h.bf16 %v441
    %v1100 = vunpack.c.l.bf16 %v442
    %v1101 = vunpack.c.h.bf16 %v442
    %v1102 = vunpack.c.l.bf16 %v443
    %v1103 = vunpack.c.h.bf16 %v443
    %v1104 = vunpack.c.l.bf16 %v444
    %v1105 = vunpack.c.h.bf16 %v444
    %v1106 = vunpack.c.l.bf16 %v445
    %v1107 = vunpack.c.h.bf16 %v445
    %v1108 = vunpack.c.l.bf16 %v446
    %v1109 = vunpack.c.h.bf16 %v446
    %v1110 = vunpack.c.l.bf16 %v447
    %v1111 = vunpack.c.h.bf16 %v447
    %v1112 = vunpack.c.l.bf16 %v448
    %v1113 = vunpack.c.h.bf16 %v448
    %v1114 = vunpack.c.l.bf16 %v449
    %v1115 = vunpack.c.h.bf16 %v449
    %v1116 = vunpack.c.l.bf16 %v450
    %v1117 = vunpack.c.h.bf16 %v450
    %v1118 = vunpack.c.l.bf16 %v451
    %v1119 = vunpack.c.h.bf16 %v451
    %v1120 = vunpack.c.l.bf16 %v452
    %v1121 = vunpack.c.h.bf16 %v452
    %v1122 = vunpack.c.l.bf16 %v453
    %v1123 = vunpack.c.h.bf16 %v453
    %v1124 = vunpack.c.l.bf16 %v454
    %v1125 = vunpack.c.h.bf16 %v454
    %v1126 = vunpack.c.l.bf16 %v455
    %v1127 = vunpack.c.h.bf16 %v455
    %v1128 = vunpack.c.l.bf16 %v456
    %v1129 = vunpack.c.h.bf16 %v456
    %v1130 = vunpack.c.l.bf16 %v457
    %v1131 = vunpack.c.h.bf16 %v457
    %v1132 = vunpack.c.l.bf16 %v458
    %v1133 = vunpack.c.h.bf16 %v458
    %v1134 = vunpack.c.l.bf16 %v459
    %v1135 = vunpack.c.h.bf16 %v459
    %v1136 = vunpack.c.l.bf16 %v460
    %v1137 = vunpack.c.h.bf16 %v460
    %v1138 = vunpack.c.l.bf16 %v461
    %v1139 = vunpack.c.h.bf16 %v461
    %v1140 = vunpack.c.l.bf16 %v462
    %v1141 = vunpack.c.h.bf16 %v462
    %v1142 = vunpack.c.l.bf16 %v463
    %v1143 = vunpack.c.h.bf16 %v463
    %v1144 = vunpack.c.l.bf16 %v464
    %v1145 = vunpack.c.h.bf16 %v464
    %v1146 = vunpack.c.l.bf16 %v465
    %v1147 = vunpack.c.h.bf16 %v465
    %v1148 = vunpack.c.l.bf16 %v466
    %v1149 = vunpack.c.h.bf16 %v466
    %v1150 = vunpack.c.l.bf16 %v467
    %v1151 = vunpack.c.h.bf16 %v467
    %v1152 = vunpack.c.l.bf16 %v468
    %v1153 = vunpack.c.h.bf16 %v468
    %v1154 = vunpack.c.l.bf16 %v469
    %v1155 = vunpack.c.h.bf16 %v469
    %v1156 = vunpack.c.l.bf16 %v470
    %v1157 = vunpack.c.h.bf16 %v470
    %v1158 = vunpack.c.l.bf16 %v471
    %v1159 = vunpack.c.h.bf16 %v471
    %v1160 = vunpack.c.l.bf16 %v472
    %v1161 = vunpack.c.h.bf16 %v472
    %v1162 = vunpack.c.l.bf16 %v473
    %v1163 = vunpack.c.h.bf16 %v473
    %v1164 = vunpack.c.l.bf16 %v474
    %v1165 = vunpack.c.h.bf16 %v474
    %v1166 = vunpack.c.l.bf16 %v475
    %v1167 = vunpack.c.h.bf16 %v475
    %v1168 = vunpack.c.l.bf16 %v476
    %v1169 = vunpack.c.h.bf16 %v476
    %v1170 = vunpack.c.l.bf16 %v477
    %v1171 = vunpack.c.h.bf16 %v477
    %v1172 = vunpack.c.l.bf16 %v478
    %v1173 = vunpack.c.h.bf16 %v478
    %v1174 = vunpack.c.l.bf16 %v479
    %v1175 = vunpack.c.h.bf16 %v479
    %v1176 = vunpack.c.l.bf16 %v480
    %v1177 = vunpack.c.h.bf16 %v480
    %v1178 = vunpack.c.l.bf16 %v481
    %v1179 = vunpack.c.h.bf16 %v481
    %v1180 = vunpack.c.l.bf16 %v482
    %v1181 = vunpack.c.h.bf16 %v482
    %v1182 = vunpack.c.l.bf16 %v483
    %v1183 = vunpack.c.h.bf16 %v483
    %v1184 = vunpack.c.l.bf16 %v484
    %v1185 = vunpack.c.h.bf16 %v484
    %v1186 = vunpack.c.l.bf16 %v485
    %v1187 = vunpack.c.h.bf16 %v485
    %v1188 = vunpack.c.l.bf16 %v486
    %v1189 = vunpack.c.h.bf16 %v486
    %v1190 = vunpack.c.l.bf16 %v487
    %v1191 = vunpack.c.h.bf16 %v487
    %v1192 = vunpack.c.l.bf16 %v488
    %v1193 = vunpack.c.h.bf16 %v488
    %v1194 = vunpack.c.l.bf16 %v489
    %v1195 = vunpack.c.h.bf16 %v489
    %v1196 = vunpack.c.l.bf16 %v490
    %v1197 = vunpack.c.h.bf16 %v490
    %v1198 = vunpack.c.l.bf16 %v491
    %v1199 = vunpack.c.h.bf16 %v491
    %v1200 = vunpack.c.l.bf16 %v492
    %v1201 = vunpack.c.h.bf16 %v492
    %v1202 = vunpack.c.l.bf16 %v493
    %v1203 = vunpack.c.h.bf16 %v493
    %v1204 = vunpack.c.l.bf16 %v494
    %v1205 = vunpack.c.h.bf16 %v494
    %v1206 = vunpack.c.l.bf16 %v495
    %v1207 = vunpack.c.h.bf16 %v495
    %v1208 = vunpack.c.l.bf16 %v496
    %v1209 = vunpack.c.h.bf16 %v496
    %v1210 = vunpack.c.l.bf16 %v497
    %v1211 = vunpack.c.h.bf16 %v497
    %v1212 = vunpack.c.l.bf16 %v498
    %v1213 = vunpack.c.h.bf16 %v498
    %v1214 = vunpack.c.l.bf16 %v499
    %v1215 = vunpack.c.h.bf16 %v499
    %v1216 = vunpack.c.l.bf16 %v500
    %v1217 = vunpack.c.h.bf16 %v500
    %v1218 = vunpack.c.l.bf16 %v501
    %v1219 = vunpack.c.h.bf16 %v501
    %v1220 = vunpack.c.l.bf16 %v502
    %v1221 = vunpack.c.h.bf16 %v502
    %v1222 = vunpack.c.l.bf16 %v503
    %v1223 = vunpack.c.h.bf16 %v503
    %v1224 = vunpack.c.l.bf16 %v504
    %v1225 = vunpack.c.h.bf16 %v504
    %v1226 = vunpack.c.l.bf16 %v505
    %v1227 = vunpack.c.h.bf16 %v505
    %v1228 = vunpack.c.l.bf16 %v506
    %v1229 = vunpack.c.h.bf16 %v506
    %v1230 = vunpack.c.l.bf16 %v507
    %v1231 = vunpack.c.h.bf16 %v507
    %v1232 = vunpack.c.l.bf16 %v508
    %v1233 = vunpack.c.h.bf16 %v508
    %v1234 = vunpack.c.l.bf16 %v509
    %v1235 = vunpack.c.h.bf16 %v509
    %v1236 = vunpack.c.l.bf16 %v510
    %v1237 = vunpack.c.h.bf16 %v510
    %v1238 = vunpack.c.l.bf16 %v511
    %v1239 = vunpack.c.h.bf16 %v511
    %v1240 = vunpack.c.l.bf16 %v512
    %v1241 = vunpack.c.h.bf16 %v512
    %v1242 = vunpack.c.l.bf16 %v513
    %v1243 = vunpack.c.h.bf16 %v513
    %v1244 = vunpack.c.l.bf16 %v514
    %v1245 = vunpack.c.h.bf16 %v514
    %v1246 = vunpack.c.l.bf16 %v515
    %v1247 = vunpack.c.h.bf16 %v515
    %v1248 = vunpack.c.l.bf16 %v516
    %v1249 = vunpack.c.h.bf16 %v516
    %v1250 = vunpack.c.l.bf16 %v517
    %v1251 = vunpack.c.h.bf16 %v517
    %v1252 = vunpack.c.l.bf16 %v518
    %v1253 = vunpack.c.h.bf16 %v518
    %v1254 = vunpack.c.l.bf16 %v519
    %v1255 = vunpack.c.h.bf16 %v519
    %v1256 = vunpack.c.l.bf16 %v520
    %v1257 = vunpack.c.h.bf16 %v520
    %v1258 = vunpack.c.l.bf16 %v521
    %v1259 = vunpack.c.h.bf16 %v521
    %v1260 = vunpack.c.l.bf16 %v522
    %v1261 = vunpack.c.h.bf16 %v522
    %v1262 = vunpack.c.l.bf16 %v523
    %v1263 = vunpack.c.h.bf16 %v523
    %v1264 = vunpack.c.l.bf16 %v524
    %v1265 = vunpack.c.h.bf16 %v524
    %v1266 = vunpack.c.l.bf16 %v525
    %v1267 = vunpack.c.h.bf16 %v525
    %v1268 = vunpack.c.l.bf16 %v526
    %v1269 = vunpack.c.h.bf16 %v526
    %v1270 = vunpack.c.l.bf16 %v527
    %v1271 = vunpack.c.h.bf16 %v527
    %v1272 = vunpack.c.l.bf16 %v528
    %v1273 = vunpack.c.h.bf16 %v528
    %v1274 = vunpack.c.l.bf16 %v529
    %v1275 = vunpack.c.h.bf16 %v529
    %v1276 = vunpack.c.l.bf16 %v530
    %v1277 = vunpack.c.h.bf16 %v530
    %v1278 = vunpack.c.l.bf16 %v531
    %v1279 = vunpack.c.h.bf16 %v531
    %v1280 = vunpack.c.l.bf16 %v532
    %v1281 = vunpack.c.h.bf16 %v532
    %v1282 = vunpack.c.l.bf16 %v533
    %v1283 = vunpack.c.h.bf16 %v533
    %v1284 = vunpack.c.l.bf16 %v534
    %v1285 = vunpack.c.h.bf16 %v534
    %v1286 = vunpack.c.l.bf16 %v535
    %v1287 = vunpack.c.h.bf16 %v535
    %v1288 = vunpack.c.l.bf16 %v536
    %v1289 = vunpack.c.h.bf16 %v536
    %v1290 = vunpack.c.l.bf16 %v537
    %v1291 = vunpack.c.h.bf16 %v537
    %v1292 = vunpack.c.l.bf16 %v538
    %v1293 = vunpack.c.h.bf16 %v538
    %v1294 = vunpack.c.l.bf16 %v539
    %v1295 = vunpack.c.h.bf16 %v539
    %v1296 = vunpack.c.l.bf16 %v540
    %v1297 = vunpack.c.h.bf16 %v540
    %v1298 = vunpack.c.l.bf16 %v541
    %v1299 = vunpack.c.h.bf16 %v541
    %v1300 = vunpack.c.l.bf16 %v542
    %v1301 = vunpack.c.h.bf16 %v542
    %v1302 = vunpack.c.l.bf16 %v543
    %v1303 = vunpack.c.h.bf16 %v543
    %v1304 = vunpack.c.l.bf16 %v544
    %v1305 = vunpack.c.h.bf16 %v544
    %v1306 = vunpack.c.l.bf16 %v545
    %v1307 = vunpack.c.h.bf16 %v545
    %v1308 = vunpack.c.l.bf16 %v546
    %v1309 = vunpack.c.h.bf16 %v546
    %v1310 = vunpack.c.l.bf16 %v547
    %v1311 = vunpack.c.h.bf16 %v547
    %v1312 = vunpack.c.l.bf16 %v548
    %v1313 = vunpack.c.h.bf16 %v548
    %v1314 = vunpack.c.l.bf16 %v549
    %v1315 = vunpack.c.h.bf16 %v549
    %v1316 = vunpack.c.l.bf16 %v550
    %v1317 = vunpack.c.h.bf16 %v550
    %v1318 = vunpack.c.l.bf16 %v551
    %v1319 = vunpack.c.h.bf16 %v551
    %v1320 = vld [vmem:[#allocation7] sm:$0xff]
    %v1321 = vld [vmem:[#allocation7 + $0x8] sm:$0xf]
    %v1322 = vld [vmem:[#allocation7 + $0xc] sm:$0xff]
    %v1323 = vld [vmem:[#allocation7 + $0x14] sm:$0xf]
    %v1324 = vld [vmem:[#allocation7 + $0x18] sm:$0xff]
    %v1325 = vld [vmem:[#allocation7 + $0x20] sm:$0xf]
    %v1326 = vld [vmem:[#allocation7 + $0x24] sm:$0xff]
    %v1327 = vld [vmem:[#allocation7 + $0x2c] sm:$0xf]
    %v1328 = vld [vmem:[#allocation7 + $0x30] sm:$0xff]
    %v1329 = vld [vmem:[#allocation7 + $0x38] sm:$0xf]
    %v1330 = vld [vmem:[#allocation7 + $0x3c] sm:$0xff]
    %v1331 = vld [vmem:[#allocation7 + $0x44] sm:$0xf]
    %v1332 = vld [vmem:[#allocation7 + $0x48] sm:$0xff]
    %v1333 = vld [vmem:[#allocation7 + $0x50] sm:$0xf]
    %v1334 = vld [vmem:[#allocation7 + $0x54] sm:$0xff]
    %v1335 = vld [vmem:[#allocation7 + $0x5c] sm:$0xf]
    %v1336 = vld [vmem:[#allocation7 + $0x60] sm:$0xff]
    %v1337 = vld [vmem:[#allocation7 + $0x68] sm:$0xf]
    %v1338 = vld [vmem:[#allocation7 + $0x6c] sm:$0xff]
    %v1339 = vld [vmem:[#allocation7 + $0x74] sm:$0xf]
    %v1340 = vld [vmem:[#allocation7 + $0x78] sm:$0xff]
    %v1341 = vld [vmem:[#allocation7 + $0x80] sm:$0xf]
    %v1342 = vld [vmem:[#allocation7 + $0x84] sm:$0xff]
    %v1343 = vld [vmem:[#allocation7 + $0x8c] sm:$0xf]
    %v1344 = vld [vmem:[#allocation7 + $0x90] sm:$0xff]
    %v1345 = vld [vmem:[#allocation7 + $0x98] sm:$0xf]
    %v1346 = vld [vmem:[#allocation7 + $0x9c] sm:$0xff]
    %v1347 = vld [vmem:[#allocation7 + $0xa4] sm:$0xf]
    %v1348 = vld [vmem:[#allocation7 + $0xa8] sm:$0xff]
    %v1349 = vld [vmem:[#allocation7 + $0xb0] sm:$0xf]
    %v1350 = vld [vmem:[#allocation7 + $0xb4] sm:$0xff]
    %v1351 = vld [vmem:[#allocation7 + $0xbc] sm:$0xf]
    %v1352 = vunpack.c.l.bf16 %v1320
    %v1353 = vunpack.c.h.bf16 %v1320
    %v1354 = vunpack.c.l.bf16 %v1321
    %v1355 = vunpack.c.l.bf16 %v1322
    %v1356 = vunpack.c.h.bf16 %v1322
    %v1357 = vunpack.c.l.bf16 %v1323
    %v1358 = vunpack.c.l.bf16 %v1324
    %v1359 = vunpack.c.h.bf16 %v1324
    %v1360 = vunpack.c.l.bf16 %v1325
    %v1361 = vunpack.c.l.bf16 %v1326
    %v1362 = vunpack.c.h.bf16 %v1326
    %v1363 = vunpack.c.l.bf16 %v1327
    %v1364 = vunpack.c.l.bf16 %v1328
    %v1365 = vunpack.c.h.bf16 %v1328
    %v1366 = vunpack.c.l.bf16 %v1329
    %v1367 = vunpack.c.l.bf16 %v1330
    %v1368 = vunpack.c.h.bf16 %v1330
    %v1369 = vunpack.c.l.bf16 %v1331
    %v1370 = vunpack.c.l.bf16 %v1332
    %v1371 = vunpack.c.h.bf16 %v1332
    %v1372 = vunpack.c.l.bf16 %v1333
    %v1373 = vunpack.c.l.bf16 %v1334
    %v1374 = vunpack.c.h.bf16 %v1334
    %v1375 = vunpack.c.l.bf16 %v1335
    %v1376 = vunpack.c.l.bf16 %v1336
    %v1377 = vunpack.c.h.bf16 %v1336
    %v1378 = vunpack.c.l.bf16 %v1337
    %v1379 = vunpack.c.l.bf16 %v1338
    %v1380 = vunpack.c.h.bf16 %v1338
    %v1381 = vunpack.c.l.bf16 %v1339
    %v1382 = vunpack.c.l.bf16 %v1340
    %v1383 = vunpack.c.h.bf16 %v1340
    %v1384 = vunpack.c.l.bf16 %v1341
    %v1385 = vunpack.c.l.bf16 %v1342
    %v1386 = vunpack.c.h.bf16 %v1342
    %v1387 = vunpack.c.l.bf16 %v1343
    %v1388 = vunpack.c.l.bf16 %v1344
    %v1389 = vunpack.c.h.bf16 %v1344
    %v1390 = vunpack.c.l.bf16 %v1345
    %v1391 = vunpack.c.l.bf16 %v1346
    %v1392 = vunpack.c.h.bf16 %v1346
    %v1393 = vunpack.c.l.bf16 %v1347
    %v1394 = vunpack.c.l.bf16 %v1348
    %v1395 = vunpack.c.h.bf16 %v1348
    %v1396 = vunpack.c.l.bf16 %v1349
    %v1397 = vunpack.c.l.bf16 %v1350
    %v1398 = vunpack.c.h.bf16 %v1350
    %v1399 = vunpack.c.l.bf16 %v1351
    %v1400 = vld [vmem:[#allocation10] sm:$0xff]
    %v1401 = vld [vmem:[#allocation10 + $0x8] sm:$0xf]
    %v1402 = vld [vmem:[#allocation10 + $0xc] sm:$0xff]
    %v1403 = vld [vmem:[#allocation10 + $0x14] sm:$0xf]
    %v1404 = vld [vmem:[#allocation10 + $0x18] sm:$0xff]
    %v1405 = vld [vmem:[#allocation10 + $0x20] sm:$0xf]
    %v1406 = vld [vmem:[#allocation10 + $0x24] sm:$0xff]
    %v1407 = vld [vmem:[#allocation10 + $0x2c] sm:$0xf]
    %v1408 = vld [vmem:[#allocation10 + $0x30] sm:$0xff]
    %v1409 = vld [vmem:[#allocation10 + $0x38] sm:$0xf]
    %v1410 = vld [vmem:[#allocation10 + $0x3c] sm:$0xff]
    %v1411 = vld [vmem:[#allocation10 + $0x44] sm:$0xf]
    %v1412 = vld [vmem:[#allocation10 + $0x48] sm:$0xff]
    %v1413 = vld [vmem:[#allocation10 + $0x50] sm:$0xf]
    %v1414 = vld [vmem:[#allocation10 + $0x54] sm:$0xff]
    %v1415 = vld [vmem:[#allocation10 + $0x5c] sm:$0xf]
    %v1416 = vld [vmem:[#allocation10 + $0x60] sm:$0xff]
    %v1417 = vld [vmem:[#allocation10 + $0x68] sm:$0xf]
    %v1418 = vld [vmem:[#allocation10 + $0x6c] sm:$0xff]
    %v1419 = vld [vmem:[#allocation10 + $0x74] sm:$0xf]
    %v1420 = vld [vmem:[#allocation10 + $0x78] sm:$0xff]
    %v1421 = vld [vmem:[#allocation10 + $0x80] sm:$0xf]
    %v1422 = vld [vmem:[#allocation10 + $0x84] sm:$0xff]
    %v1423 = vld [vmem:[#allocation10 + $0x8c] sm:$0xf]
    %v1424 = vld [vmem:[#allocation10 + $0x90] sm:$0xff]
    %v1425 = vld [vmem:[#allocation10 + $0x98] sm:$0xf]
    %v1426 = vld [vmem:[#allocation10 + $0x9c] sm:$0xff]
    %v1427 = vld [vmem:[#allocation10 + $0xa4] sm:$0xf]
    %v1428 = vld [vmem:[#allocation10 + $0xa8] sm:$0xff]
    %v1429 = vld [vmem:[#allocation10 + $0xb0] sm:$0xf]
    %v1430 = vld [vmem:[#allocation10 + $0xb4] sm:$0xff]
    %v1431 = vld [vmem:[#allocation10 + $0xbc] sm:$0xf]
    %v1432 = vunpack.c.l.bf16 %v1400
    %v1433 = vunpack.c.h.bf16 %v1400
    %v1434 = vunpack.c.l.bf16 %v1401
    %v1435 = vunpack.c.l.bf16 %v1402
    %v1436 = vunpack.c.h.bf16 %v1402
    %v1437 = vunpack.c.l.bf16 %v1403
    %v1438 = vunpack.c.l.bf16 %v1404
    %v1439 = vunpack.c.h.bf16 %v1404
    %v1440 = vunpack.c.l.bf16 %v1405
    %v1441 = vunpack.c.l.bf16 %v1406
    %v1442 = vunpack.c.h.bf16 %v1406
    %v1443 = vunpack.c.l.bf16 %v1407
    %v1444 = vunpack.c.l.bf16 %v1408
    %v1445 = vunpack.c.h.bf16 %v1408
    %v1446 = vunpack.c.l.bf16 %v1409
    %v1447 = vunpack.c.l.bf16 %v1410
    %v1448 = vunpack.c.h.bf16 %v1410
    %v1449 = vunpack.c.l.bf16 %v1411
    %v1450 = vunpack.c.l.bf16 %v1412
    %v1451 = vunpack.c.h.bf16 %v1412
    %v1452 = vunpack.c.l.bf16 %v1413
    %v1453 = vunpack.c.l.bf16 %v1414
    %v1454 = vunpack.c.h.bf16 %v1414
    %v1455 = vunpack.c.l.bf16 %v1415
    %v1456 = vunpack.c.l.bf16 %v1416
    %v1457 = vunpack.c.h.bf16 %v1416
    %v1458 = vunpack.c.l.bf16 %v1417
    %v1459 = vunpack.c.l.bf16 %v1418
    %v1460 = vunpack.c.h.bf16 %v1418
    %v1461 = vunpack.c.l.bf16 %v1419
    %v1462 = vunpack.c.l.bf16 %v1420
    %v1463 = vunpack.c.h.bf16 %v1420
    %v1464 = vunpack.c.l.bf16 %v1421
    %v1465 = vunpack.c.l.bf16 %v1422
    %v1466 = vunpack.c.h.bf16 %v1422
    %v1467 = vunpack.c.l.bf16 %v1423
    %v1468 = vunpack.c.l.bf16 %v1424
    %v1469 = vunpack.c.h.bf16 %v1424
    %v1470 = vunpack.c.l.bf16 %v1425
    %v1471 = vunpack.c.l.bf16 %v1426
    %v1472 = vunpack.c.h.bf16 %v1426
    %v1473 = vunpack.c.l.bf16 %v1427
    %v1474 = vunpack.c.l.bf16 %v1428
    %v1475 = vunpack.c.h.bf16 %v1428
    %v1476 = vunpack.c.l.bf16 %v1429
    %v1477 = vunpack.c.l.bf16 %v1430
    %v1478 = vunpack.c.h.bf16 %v1430
    %v1479 = vunpack.c.l.bf16 %v1431
    %v1480 = vld [vmem:[#allocation13] sm:$0xf]
    %v1481 = vld [vmem:[#allocation13 + $0x4] sm:$0xf]
    %v1482 = vld [vmem:[#allocation13 + $0x8] sm:$0xf]
    %v1483 = vld [vmem:[#allocation13 + $0xc] sm:$0xf]
    %v1484 = vld [vmem:[#allocation13 + $0x10] sm:$0xf]
    %v1485 = vld [vmem:[#allocation13 + $0x14] sm:$0xf]
    %v1486 = vld [vmem:[#allocation13 + $0x18] sm:$0xf]
    %v1487 = vld [vmem:[#allocation13 + $0x1c] sm:$0xf]
    %v1488 = vld [vmem:[#allocation13 + $0x20] sm:$0xf]
    %v1489 = vld [vmem:[#allocation13 + $0x24] sm:$0xf]
    %v1490 = vld [vmem:[#allocation13 + $0x28] sm:$0xf]
    %v1491 = vld [vmem:[#allocation13 + $0x2c] sm:$0xf]
    %v1492 = vld [vmem:[#allocation13 + $0x30] sm:$0xf]
    %v1493 = vld [vmem:[#allocation13 + $0x34] sm:$0xf]
    %v1494 = vld [vmem:[#allocation13 + $0x38] sm:$0xf]
    %v1495 = vld [vmem:[#allocation13 + $0x3c] sm:$0xf]
    %v1496 = vunpack.c.l.bf16 %v1480
    %v1497 = vunpack.c.l.bf16 %v1481
    %v1498 = vunpack.c.l.bf16 %v1482
    %v1499 = vunpack.c.l.bf16 %v1483
    %v1500 = vunpack.c.l.bf16 %v1484
    %v1501 = vunpack.c.l.bf16 %v1485
    %v1502 = vunpack.c.l.bf16 %v1486
    %v1503 = vunpack.c.l.bf16 %v1487
    %v1504 = vunpack.c.l.bf16 %v1488
    %v1505 = vunpack.c.l.bf16 %v1489
    %v1506 = vunpack.c.l.bf16 %v1490
    %v1507 = vunpack.c.l.bf16 %v1491
    %v1508 = vunpack.c.l.bf16 %v1492
    %v1509 = vunpack.c.l.bf16 %v1493
    %v1510 = vunpack.c.l.bf16 %v1494
    %v1511 = vunpack.c.l.bf16 %v1495
    %v1512 = vld [vmem:[#allocation5] sm:$0x3f]
    %v1514 = vlaneseq
    %v1515 = vshrl.u32 %v1514, 7
    %v1516 = vsub.s32 0, %v1515
    %v1517 = vrot.slane %v1512, %v1516
    %v1518 = vlaneseq
    %v1519 = vshrl.u32 %v1518, 7
    %v1520 = vsub.s32 1, %v1519
    %v1521 = vrot.slane %v1512, %v1520
    %v1522 = vlaneseq
    %v1523 = vshrl.u32 %v1522, 7
    %v1524 = vsub.s32 2, %v1523
    %v1525 = vrot.slane %v1512, %v1524
    %v1526 = vlaneseq
    %v1527 = vshrl.u32 %v1526, 7
    %v1528 = vsub.s32 3, %v1527
    %v1529 = vrot.slane %v1512, %v1528
    %v1530 = vlaneseq
    %v1531 = vshrl.u32 %v1530, 7
    %v1532 = vsub.s32 4, %v1531
    %v1533 = vrot.slane %v1512, %v1532
    %v1534 = vlaneseq
    %v1535 = vshrl.u32 %v1534, 7
    %v1536 = vsub.s32 5, %v1535
    %v1537 = vrot.slane %v1512, %v1536
    %v1546 = vcombine.high %v164, %v164
    %v1548 = vunpack.c.l.s4 1983009808
    %v1549 = vunpack.c.0.s8 %v1548
    %v1550 = vlaneseq
    %v1551 = vshrl.u32 %v1550, 7
    %v1552 = vsub.s32 %v1549, %v1551
    %v1553 = vrot.slane %v164, %v1552
    %v1555 = vunpack.c.l.s4 1983009808
    %v1556 = vunpack.c.0.s8 %v1555
    %v1557 = vlaneseq
    %v1558 = vshrl.u32 %v1557, 7
    %v1559 = vsub.s32 %v1556, %v1558
    %v1560 = vrot.slane %v1546, %v1559
    %v1561 = vcombine.high %v1553, %v1553
    %v1562 = vcombine.high %v1560, %v1560
    %v1563 = vcombine.high %v165, %v165
    %v1565 = vunpack.c.l.s4 1983009808
    %v1566 = vunpack.c.0.s8 %v1565
    %v1567 = vlaneseq
    %v1568 = vshrl.u32 %v1567, 7
    %v1569 = vsub.s32 %v1566, %v1568
    %v1570 = vrot.slane %v165, %v1569
    %v1572 = vunpack.c.l.s4 1983009808
    %v1573 = vunpack.c.0.s8 %v1572
    %v1574 = vlaneseq
    %v1575 = vshrl.u32 %v1574, 7
    %v1576 = vsub.s32 %v1573, %v1575
    %v1577 = vrot.slane %v1563, %v1576
    %v1578 = vcombine.high %v1570, %v1570
    %v1579 = vcombine.high %v1577, %v1577
    %1588 = vmatprep.subr.mxu0 %v553
    %1589 = vmatpush1.msra.mxu0 %v552
    %1590 = vmatprep.subr.mxu0 %v559
    %1591 = vmatpush1.msra.mxu0 %v558
    %1592 = vmatprep.subr.mxu0 %v565
    %1593 = vmatpush1.msra.mxu0 %v564
    %1594 = vmatprep.subr.mxu0 %v571
    %1595 = vmatpush1.msra.mxu0 %v570
    %1596 = vmatprep.subr.mxu0 %v577
    %1597 = vmatpush1.msra.mxu0 %v576
    %1598 = vmatprep.subr.mxu0 %v583
    %1599 = vmatpush1.msra.mxu0 %v582
    %1600 = vmatprep.subr.mxu0 %v589
    %1601 = vmatpush1.msra.mxu0 %v588
    %1602 = vmatprep.subr.mxu0 %v595
    %1603 = vmatpush1.msra.mxu0 %v594
    %1604 = vmatprep.subr.mxu0 %v601
    %1605 = vmatpush1.msra.mxu0 %v600
    %1606 = vmatprep.subr.mxu0 %v607
    %1607 = vmatpush1.msra.mxu0 %v606
    %1608 = vmatprep.subr.mxu0 %v613
    %1609 = vmatpush1.msra.mxu0 %v612
    %1610 = vmatprep.subr.mxu0 %v619
    %1611 = vmatpush1.msra.mxu0 %v618
    %1612 = vmatprep.subr.mxu0 %v625
    %1613 = vmatpush1.msra.mxu0 %v624
    %1614 = vmatprep.subr.mxu0 %v631
    %1615 = vmatpush1.msra.mxu0 %v630
    %1616 = vmatprep.subr.mxu0 %v637
    %1617 = vmatpush1.msra.mxu0 %v636
    %1618 = vmatprep.subr.mxu0 %v643
    %1619 = vmatpush1.msra.mxu0 %v642
    %1620 = vmatprep.subr.mxu0 %v649
    %1621 = vmatpush1.msra.mxu0 %v648
    %1622 = vmatprep.subr.mxu0 %v655
    %1623 = vmatpush1.msra.mxu0 %v654
    %1624 = vmatprep.subr.mxu0 %v661
    %1625 = vmatpush1.msra.mxu0 %v660
    %1626 = vmatprep.subr.mxu0 %v667
    %1627 = vmatpush1.msra.mxu0 %v666
    %1628 = vmatprep.subr.mxu0 %v673
    %1629 = vmatpush1.msra.mxu0 %v672
    %1630 = vmatprep.subr.mxu0 %v679
    %1631 = vmatpush1.msra.mxu0 %v678
    %1632 = vmatprep.subr.mxu0 %v685
    %1633 = vmatpush1.msra.mxu0 %v684
    %1634 = vmatprep.subr.mxu0 %v691
    %1635 = vmatpush1.msra.mxu0 %v690
    %1636 = vmatprep.subr.mxu0 %v697
    %1637 = vmatpush1.msra.mxu0 %v696
    %1638 = vmatprep.subr.mxu0 %v703
    %1639 = vmatpush1.msra.mxu0 %v702
    %1640 = vmatprep.subr.mxu0 %v709
    %1641 = vmatpush1.msra.mxu0 %v708
    %1642 = vmatprep.subr.mxu0 %v715
    %1643 = vmatpush1.msra.mxu0 %v714
    %1644 = vmatprep.subr.mxu0 %v721
    %1645 = vmatpush1.msra.mxu0 %v720
    %1646 = vmatprep.subr.mxu0 %v727
    %1647 = vmatpush1.msra.mxu0 %v726
    %1648 = vmatprep.subr.mxu0 %v733
    %1649 = vmatpush1.msra.mxu0 %v732
    %1650 = vmatprep.subr.mxu0 %v739
    %1651 = vmatpush1.msra.mxu0 %v738
    %1652 = vmatprep.mubr.f32.mxu0 %v1561
    %1653 = vmatmul.mubr.f32.gmra.mrb[0].mxu0 %v1553
    %v1654 = vpop.f32.mrb[0].mxu0
    %v1655 = vadd.f32 %v1517, %v1654
    %v1656 = vpop.f32.mrb[0].mxu0
    %v1657 = vadd.f32 %v1521, %v1656
    %1658 = vdwg.mxu0
    %1659 = vmatprep.subr.mxu0 %v745
    %1660 = vmatpush1.msra.mxu0 %v744
    %1661 = vmatprep.subr.mxu0 %v751
    %1662 = vmatpush1.msra.mxu0 %v750
    %1663 = vmatprep.subr.mxu0 %v757
    %1664 = vmatpush1.msra.mxu0 %v756
    %1665 = vmatprep.subr.mxu0 %v763
    %1666 = vmatpush1.msra.mxu0 %v762
    %1667 = vmatprep.subr.mxu0 %v769
    %1668 = vmatpush1.msra.mxu0 %v768
    %1669 = vmatprep.subr.mxu0 %v775
    %1670 = vmatpush1.msra.mxu0 %v774
    %1671 = vmatprep.subr.mxu0 %v781
    %1672 = vmatpush1.msra.mxu0 %v780
    %1673 = vmatprep.subr.mxu0 %v787
    %1674 = vmatpush1.msra.mxu0 %v786
    %1675 = vmatprep.subr.mxu0 %v793
    %1676 = vmatpush1.msra.mxu0 %v792
    %1677 = vmatprep.subr.mxu0 %v799
    %1678 = vmatpush1.msra.mxu0 %v798
    %1679 = vmatprep.subr.mxu0 %v805
    %1680 = vmatpush1.msra.mxu0 %v804
    %1681 = vmatprep.subr.mxu0 %v811
    %1682 = vmatpush1.msra.mxu0 %v810
    %1683 = vmatprep.subr.mxu0 %v817
    %1684 = vmatpush1.msra.mxu0 %v816
    %1685 = vmatprep.subr.mxu0 %v823
    %1686 = vmatpush1.msra.mxu0 %v822
    %1687 = vmatprep.subr.mxu0 %v829
    %1688 = vmatpush1.msra.mxu0 %v828
    %1689 = vmatprep.subr.mxu0 %v835
    %1690 = vmatpush1.msra.mxu0 %v834
    %1691 = vmatprep.subr.mxu0 %v841
    %1692 = vmatpush1.msra.mxu0 %v840
    %1693 = vmatprep.subr.mxu0 %v847
    %1694 = vmatpush1.msra.mxu0 %v846
    %1695 = vmatprep.subr.mxu0 %v853
    %1696 = vmatpush1.msra.mxu0 %v852
    %1697 = vmatprep.subr.mxu0 %v859
    %1698 = vmatpush1.msra.mxu0 %v858
    %1699 = vmatprep.subr.mxu0 %v865
    %1700 = vmatpush1.msra.mxu0 %v864
    %1701 = vmatprep.subr.mxu0 %v871
    %1702 = vmatpush1.msra.mxu0 %v870
    %1703 = vmatprep.subr.mxu0 %v877
    %1704 = vmatpush1.msra.mxu0 %v876
    %1705 = vmatprep.subr.mxu0 %v883
    %1706 = vmatpush1.msra.mxu0 %v882
    %1707 = vmatprep.subr.mxu0 %v889
    %1708 = vmatpush1.msra.mxu0 %v888
    %1709 = vmatprep.subr.mxu0 %v895
    %1710 = vmatpush1.msra.mxu0 %v894
    %1711 = vmatprep.subr.mxu0 %v901
    %1712 = vmatpush1.msra.mxu0 %v900
    %1713 = vmatprep.subr.mxu0 %v907
    %1714 = vmatpush1.msra.mxu0 %v906
    %1715 = vmatprep.subr.mxu0 %v913
    %1716 = vmatpush1.msra.mxu0 %v912
    %1717 = vmatprep.subr.mxu0 %v919
    %1718 = vmatpush1.msra.mxu0 %v918
    %1719 = vmatprep.subr.mxu0 %v925
    %1720 = vmatpush1.msra.mxu0 %v924
    %1721 = vmatprep.subr.mxu0 %v931
    %1722 = vmatpush1.msra.mxu0 %v930
    %1723 = vmatprep.mubr.f32.mxu0 %v1562
    %1724 = vmatmul.mubr.f32.gmra.mrb[0].mxu0 %v1560
    %v1725 = vpop.f32.mrb[0].mxu0
    %v1726 = vadd.f32 %v1655, %v1725
    %v1727 = vpop.f32.mrb[0].mxu0
    %v1728 = vadd.f32 %v1657, %v1727
    %1729 = vdwg.mxu0
    %1730 = vmatprep.subr.mxu0 %v937
    %1731 = vmatpush1.msra.mxu0 %v936
    %1732 = vmatprep.subr.mxu0 %v943
    %1733 = vmatpush1.msra.mxu0 %v942
    %1734 = vmatprep.subr.mxu0 %v949
    %1735 = vmatpush1.msra.mxu0 %v948
    %1736 = vmatprep.subr.mxu0 %v955
    %1737 = vmatpush1.msra.mxu0 %v954
    %1738 = vmatprep.subr.mxu0 %v961
    %1739 = vmatpush1.msra.mxu0 %v960
    %1740 = vmatprep.subr.mxu0 %v967
    %1741 = vmatpush1.msra.mxu0 %v966
    %1742 = vmatprep.subr.mxu0 %v973
    %1743 = vmatpush1.msra.mxu0 %v972
    %1744 = vmatprep.subr.mxu0 %v979
    %1745 = vmatpush1.msra.mxu0 %v978
    %1746 = vmatprep.subr.mxu0 %v985
    %1747 = vmatpush1.msra.mxu0 %v984
    %1748 = vmatprep.subr.mxu0 %v991
    %1749 = vmatpush1.msra.mxu0 %v990
    %1750 = vmatprep.subr.mxu0 %v997
    %1751 = vmatpush1.msra.mxu0 %v996
    %1752 = vmatprep.subr.mxu0 %v1003
    %1753 = vmatpush1.msra.mxu0 %v1002
    %1754 = vmatprep.subr.mxu0 %v1009
    %1755 = vmatpush1.msra.mxu0 %v1008
    %1756 = vmatprep.subr.mxu0 %v1015
    %1757 = vmatpush1.msra.mxu0 %v1014
    %1758 = vmatprep.subr.mxu0 %v1021
    %1759 = vmatpush1.msra.mxu0 %v1020
    %1760 = vmatprep.subr.mxu0 %v1027
    %1761 = vmatpush1.msra.mxu0 %v1026
    %1762 = vmatprep.subr.mxu0 %v1033
    %1763 = vmatpush1.msra.mxu0 %v1032
    %1764 = vmatprep.subr.mxu0 %v1039
    %1765 = vmatpush1.msra.mxu0 %v1038
    %1766 = vmatprep.subr.mxu0 %v1045
    %1767 = vmatpush1.msra.mxu0 %v1044
    %1768 = vmatprep.subr.mxu0 %v1051
    %1769 = vmatpush1.msra.mxu0 %v1050
    %1770 = vmatprep.subr.mxu0 %v1057
    %1771 = vmatpush1.msra.mxu0 %v1056
    %1772 = vmatprep.subr.mxu0 %v1063
    %1773 = vmatpush1.msra.mxu0 %v1062
    %1774 = vmatprep.subr.mxu0 %v1069
    %1775 = vmatpush1.msra.mxu0 %v1068
    %1776 = vmatprep.subr.mxu0 %v1075
    %1777 = vmatpush1.msra.mxu0 %v1074
    %1778 = vmatprep.subr.mxu0 %v1081
    %1779 = vmatpush1.msra.mxu0 %v1080
    %1780 = vmatprep.subr.mxu0 %v1087
    %1781 = vmatpush1.msra.mxu0 %v1086
    %1782 = vmatprep.subr.mxu0 %v1093
    %1783 = vmatpush1.msra.mxu0 %v1092
    %1784 = vmatprep.subr.mxu0 %v1099
    %1785 = vmatpush1.msra.mxu0 %v1098
    %1786 = vmatprep.subr.mxu0 %v1105
    %1787 = vmatpush1.msra.mxu0 %v1104
    %1788 = vmatprep.subr.mxu0 %v1111
    %1789 = vmatpush1.msra.mxu0 %v1110
    %1790 = vmatprep.subr.mxu0 %v1117
    %1791 = vmatpush1.msra.mxu0 %v1116
    %1792 = vmatprep.subr.mxu0 %v1123
    %1793 = vmatpush1.msra.mxu0 %v1122
    %1794 = vmatprep.mubr.f32.mxu0 %v1578
    %1795 = vmatmul.mubr.f32.gmra.mrb[0].mxu0 %v1570
    %v1796 = vpop.f32.mrb[0].mxu0
    %v1797 = vadd.f32 %v1726, %v1796
    %v1798 = vpop.f32.mrb[0].mxu0
    %v1799 = vadd.f32 %v1728, %v1798
    %1800 = vdwg.mxu0
    %1801 = vmatprep.subr.mxu0 %v1129
    %1802 = vmatpush1.msra.mxu0 %v1128
    %1803 = vmatprep.subr.mxu0 %v1135
    %1804 = vmatpush1.msra.mxu0 %v1134
    %1805 = vmatprep.subr.mxu0 %v1141
    %1806 = vmatpush1.msra.mxu0 %v1140
    %1807 = vmatprep.subr.mxu0 %v1147
    %1808 = vmatpush1.msra.mxu0 %v1146
    %1809 = vmatprep.subr.mxu0 %v1153
    %1810 = vmatpush1.msra.mxu0 %v1152
    %1811 = vmatprep.subr.mxu0 %v1159
    %1812 = vmatpush1.msra.mxu0 %v1158
    %1813 = vmatprep.subr.mxu0 %v1165
    %1814 = vmatpush1.msra.mxu0 %v1164
    %1815 = vmatprep.subr.mxu0 %v1171
    %1816 = vmatpush1.msra.mxu0 %v1170
    %1817 = vmatprep.subr.mxu0 %v1177
    %1818 = vmatpush1.msra.mxu0 %v1176
    %1819 = vmatprep.subr.mxu0 %v1183
    %1820 = vmatpush1.msra.mxu0 %v1182
    %1821 = vmatprep.subr.mxu0 %v1189
    %1822 = vmatpush1.msra.mxu0 %v1188
    %1823 = vmatprep.subr.mxu0 %v1195
    %1824 = vmatpush1.msra.mxu0 %v1194
    %1825 = vmatprep.subr.mxu0 %v1201
    %1826 = vmatpush1.msra.mxu0 %v1200
    %1827 = vmatprep.subr.mxu0 %v1207
    %1828 = vmatpush1.msra.mxu0 %v1206
    %1829 = vmatprep.subr.mxu0 %v1213
    %1830 = vmatpush1.msra.mxu0 %v1212
    %1831 = vmatprep.subr.mxu0 %v1219
    %1832 = vmatpush1.msra.mxu0 %v1218
    %1833 = vmatprep.subr.mxu0 %v1225
    %1834 = vmatpush1.msra.mxu0 %v1224
    %1835 = vmatprep.subr.mxu0 %v1231
    %1836 = vmatpush1.msra.mxu0 %v1230
    %1837 = vmatprep.subr.mxu0 %v1237
    %1838 = vmatpush1.msra.mxu0 %v1236
    %1839 = vmatprep.subr.mxu0 %v1243
    %1840 = vmatpush1.msra.mxu0 %v1242
    %1841 = vmatprep.subr.mxu0 %v1249
    %1842 = vmatpush1.msra.mxu0 %v1248
    %1843 = vmatprep.subr.mxu0 %v1255
    %1844 = vmatpush1.msra.mxu0 %v1254
    %1845 = vmatprep.subr.mxu0 %v1261
    %1846 = vmatpush1.msra.mxu0 %v1260
    %1847 = vmatprep.subr.mxu0 %v1267
    %1848 = vmatpush1.msra.mxu0 %v1266
    %1849 = vmatprep.subr.mxu0 %v1273
    %1850 = vmatpush1.msra.mxu0 %v1272
    %1851 = vmatprep.subr.mxu0 %v1279
    %1852 = vmatpush1.msra.mxu0 %v1278
    %1853 = vmatprep.subr.mxu0 %v1285
    %1854 = vmatpush1.msra.mxu0 %v1284
    %1855 = vmatprep.subr.mxu0 %v1291
    %1856 = vmatpush1.msra.mxu0 %v1290
    %1857 = vmatprep.subr.mxu0 %v1297
    %1858 = vmatpush1.msra.mxu0 %v1296
    %1859 = vmatprep.subr.mxu0 %v1303
    %1860 = vmatpush1.msra.mxu0 %v1302
    %1861 = vmatprep.subr.mxu0 %v1309
    %1862 = vmatpush1.msra.mxu0 %v1308
    %1863 = vmatprep.subr.mxu0 %v1315
    %1864 = vmatpush1.msra.mxu0 %v1314
    %1865 = vmatprep.mubr.f32.mxu0 %v1579
    %1866 = vmatmul.mubr.f32.gmra.mrb[0].mxu0 %v1577
    %v1867 = vpop.f32.mrb[0].mxu0
    %v1868 = vadd.f32 %v1797, %v1867
    %v1869 = vpop.f32.mrb[0].mxu0
    %v1870 = vadd.f32 %v1799, %v1869
    %1871 = vdwg.mxu0
    %1872 = vmatprep.subr.mxu0 %v555
    %1873 = vmatpush1.msra.mxu0 %v554
    %1874 = vmatprep.subr.mxu0 %v561
    %1875 = vmatpush1.msra.mxu0 %v560
    %1876 = vmatprep.subr.mxu0 %v567
    %1877 = vmatpush1.msra.mxu0 %v566
    %1878 = vmatprep.subr.mxu0 %v573
    %1879 = vmatpush1.msra.mxu0 %v572
    %1880 = vmatprep.subr.mxu0 %v579
    %1881 = vmatpush1.msra.mxu0 %v578
    %1882 = vmatprep.subr.mxu0 %v585
    %1883 = vmatpush1.msra.mxu0 %v584
    %1884 = vmatprep.subr.mxu0 %v591
    %1885 = vmatpush1.msra.mxu0 %v590
    %1886 = vmatprep.subr.mxu0 %v597
    %1887 = vmatpush1.msra.mxu0 %v596
    %1888 = vmatprep.subr.mxu0 %v603
    %1889 = vmatpush1.msra.mxu0 %v602
    %1890 = vmatprep.subr.mxu0 %v609
    %1891 = vmatpush1.msra.mxu0 %v608
    %1892 = vmatprep.subr.mxu0 %v615
    %1893 = vmatpush1.msra.mxu0 %v614
    %1894 = vmatprep.subr.mxu0 %v621
    %1895 = vmatpush1.msra.mxu0 %v620
    %1896 = vmatprep.subr.mxu0 %v627
    %1897 = vmatpush1.msra.mxu0 %v626
    %1898 = vmatprep.subr.mxu0 %v633
    %1899 = vmatpush1.msra.mxu0 %v632
    %1900 = vmatprep.subr.mxu0 %v639
    %1901 = vmatpush1.msra.mxu0 %v638
    %1902 = vmatprep.subr.mxu0 %v645
    %1903 = vmatpush1.msra.mxu0 %v644
    %1904 = vmatprep.subr.mxu0 %v651
    %1905 = vmatpush1.msra.mxu0 %v650
    %1906 = vmatprep.subr.mxu0 %v657
    %1907 = vmatpush1.msra.mxu0 %v656
    %1908 = vmatprep.subr.mxu0 %v663
    %1909 = vmatpush1.msra.mxu0 %v662
    %1910 = vmatprep.subr.mxu0 %v669
    %1911 = vmatpush1.msra.mxu0 %v668
    %1912 = vmatprep.subr.mxu0 %v675
    %1913 = vmatpush1.msra.mxu0 %v674
    %1914 = vmatprep.subr.mxu0 %v681
    %1915 = vmatpush1.msra.mxu0 %v680
    %1916 = vmatprep.subr.mxu0 %v687
    %1917 = vmatpush1.msra.mxu0 %v686
    %1918 = vmatprep.subr.mxu0 %v693
    %1919 = vmatpush1.msra.mxu0 %v692
    %1920 = vmatprep.subr.mxu0 %v699
    %1921 = vmatpush1.msra.mxu0 %v698
    %1922 = vmatprep.subr.mxu0 %v705
    %1923 = vmatpush1.msra.mxu0 %v704
    %1924 = vmatprep.subr.mxu0 %v711
    %1925 = vmatpush1.msra.mxu0 %v710
    %1926 = vmatprep.subr.mxu0 %v717
    %1927 = vmatpush1.msra.mxu0 %v716
    %1928 = vmatprep.subr.mxu0 %v723
    %1929 = vmatpush1.msra.mxu0 %v722
    %1930 = vmatprep.subr.mxu0 %v729
    %1931 = vmatpush1.msra.mxu0 %v728
    %1932 = vmatprep.subr.mxu0 %v735
    %1933 = vmatpush1.msra.mxu0 %v734
    %1934 = vmatprep.subr.mxu0 %v741
    %1935 = vmatpush1.msra.mxu0 %v740
    %1936 = vmatprep.mubr.f32.mxu0 %v1561
    %1937 = vmatmul.mubr.f32.gmra.mrb[0].mxu0 %v1553
    %v1938 = vpop.f32.mrb[0].mxu0
    %v1939 = vadd.f32 %v1525, %v1938
    %v1940 = vpop.f32.mrb[0].mxu0
    %v1941 = vadd.f32 %v1529, %v1940
    %1942 = vdwg.mxu0
    %1943 = vmatprep.subr.mxu0 %v747
    %1944 = vmatpush1.msra.mxu0 %v746
    %1945 = vmatprep.subr.mxu0 %v753
    %1946 = vmatpush1.msra.mxu0 %v752
    %1947 = vmatprep.subr.mxu0 %v759
    %1948 = vmatpush1.msra.mxu0 %v758
    %1949 = vmatprep.subr.mxu0 %v765
    %1950 = vmatpush1.msra.mxu0 %v764
    %1951 = vmatprep.subr.mxu0 %v771
    %1952 = vmatpush1.msra.mxu0 %v770
    %1953 = vmatprep.subr.mxu0 %v777
    %1954 = vmatpush1.msra.mxu0 %v776
    %1955 = vmatprep.subr.mxu0 %v783
    %1956 = vmatpush1.msra.mxu0 %v782
    %1957 = vmatprep.subr.mxu0 %v789
    %1958 = vmatpush1.msra.mxu0 %v788
    %1959 = vmatprep.subr.mxu0 %v795
    %1960 = vmatpush1.msra.mxu0 %v794
    %1961 = vmatprep.subr.mxu0 %v801
    %1962 = vmatpush1.msra.mxu0 %v800
    %1963 = vmatprep.subr.mxu0 %v807
    %1964 = vmatpush1.msra.mxu0 %v806
    %1965 = vmatprep.subr.mxu0 %v813
    %1966 = vmatpush1.msra.mxu0 %v812
    %1967 = vmatprep.subr.mxu0 %v819
    %1968 = vmatpush1.msra.mxu0 %v818
    %1969 = vmatprep.subr.mxu0 %v825
    %1970 = vmatpush1.msra.mxu0 %v824
    %1971 = vmatprep.subr.mxu0 %v831
    %1972 = vmatpush1.msra.mxu0 %v830
    %1973 = vmatprep.subr.mxu0 %v837
    %1974 = vmatpush1.msra.mxu0 %v836
    %1975 = vmatprep.subr.mxu0 %v843
    %1976 = vmatpush1.msra.mxu0 %v842
    %1977 = vmatprep.subr.mxu0 %v849
    %1978 = vmatpush1.msra.mxu0 %v848
    %1979 = vmatprep.subr.mxu0 %v855
    %1980 = vmatpush1.msra.mxu0 %v854
    %1981 = vmatprep.subr.mxu0 %v861
    %1982 = vmatpush1.msra.mxu0 %v860
    %1983 = vmatprep.subr.mxu0 %v867
    %1984 = vmatpush1.msra.mxu0 %v866
    %1985 = vmatprep.subr.mxu0 %v873
    %1986 = vmatpush1.msra.mxu0 %v872
    %1987 = vmatprep.subr.mxu0 %v879
    %1988 = vmatpush1.msra.mxu0 %v878
    %1989 = vmatprep.subr.mxu0 %v885
    %1990 = vmatpush1.msra.mxu0 %v884
    %1991 = vmatprep.subr.mxu0 %v891
    %1992 = vmatpush1.msra.mxu0 %v890
    %1993 = vmatprep.subr.mxu0 %v897
    %1994 = vmatpush1.msra.mxu0 %v896
    %1995 = vmatprep.subr.mxu0 %v903
    %1996 = vmatpush1.msra.mxu0 %v902
    %1997 = vmatprep.subr.mxu0 %v909
    %1998 = vmatpush1.msra.mxu0 %v908
    %1999 = vmatprep.subr.mxu0 %v915
    %2000 = vmatpush1.msra.mxu0 %v914
    %2001 = vmatprep.subr.mxu0 %v921
    %2002 = vmatpush1.msra.mxu0 %v920
    %2003 = vmatprep.subr.mxu0 %v927
    %2004 = vmatpush1.msra.mxu0 %v926
    %2005 = vmatprep.subr.mxu0 %v933
    %2006 = vmatpush1.msra.mxu0 %v932
    %2007 = vmatprep.mubr.f32.mxu0 %v1562
    %2008 = vmatmul.mubr.f32.gmra.mrb[0].mxu0 %v1560
    %v2009 = vpop.f32.mrb[0].mxu0
    %v2010 = vadd.f32 %v1939, %v2009
    %v2011 = vpop.f32.mrb[0].mxu0
    %v2012 = vadd.f32 %v1941, %v2011
    %2013 = vdwg.mxu0
    %2014 = vmatprep.subr.mxu0 %v939
    %2015 = vmatpush1.msra.mxu0 %v938
    %2016 = vmatprep.subr.mxu0 %v945
    %2017 = vmatpush1.msra.mxu0 %v944
    %2018 = vmatprep.subr.mxu0 %v951
    %2019 = vmatpush1.msra.mxu0 %v950
    %2020 = vmatprep.subr.mxu0 %v957
    %2021 = vmatpush1.msra.mxu0 %v956
    %2022 = vmatprep.subr.mxu0 %v963
    %2023 = vmatpush1.msra.mxu0 %v962
    %2024 = vmatprep.subr.mxu0 %v969
    %2025 = vmatpush1.msra.mxu0 %v968
    %2026 = vmatprep.subr.mxu0 %v975
    %2027 = vmatpush1.msra.mxu0 %v974
    %2028 = vmatprep.subr.mxu0 %v981
    %2029 = vmatpush1.msra.mxu0 %v980
    %2030 = vmatprep.subr.mxu0 %v987
    %2031 = vmatpush1.msra.mxu0 %v986
    %2032 = vmatprep.subr.mxu0 %v993
    %2033 = vmatpush1.msra.mxu0 %v992
    %2034 = vmatprep.subr.mxu0 %v999
    %2035 = vmatpush1.msra.mxu0 %v998
    %2036 = vmatprep.subr.mxu0 %v1005
    %2037 = vmatpush1.msra.mxu0 %v1004
    %2038 = vmatprep.subr.mxu0 %v1011
    %2039 = vmatpush1.msra.mxu0 %v1010
    %2040 = vmatprep.subr.mxu0 %v1017
    %2041 = vmatpush1.msra.mxu0 %v1016
    %2042 = vmatprep.subr.mxu0 %v1023
    %2043 = vmatpush1.msra.mxu0 %v1022
    %2044 = vmatprep.subr.mxu0 %v1029
    %2045 = vmatpush1.msra.mxu0 %v1028
    %2046 = vmatprep.subr.mxu0 %v1035
    %2047 = vmatpush1.msra.mxu0 %v1034
    %2048 = vmatprep.subr.mxu0 %v1041
    %2049 = vmatpush1.msra.mxu0 %v1040
    %2050 = vmatprep.subr.mxu0 %v1047
    %2051 = vmatpush1.msra.mxu0 %v1046
    %2052 = vmatprep.subr.mxu0 %v1053
    %2053 = vmatpush1.msra.mxu0 %v1052
    %2054 = vmatprep.subr.mxu0 %v1059
    %2055 = vmatpush1.msra.mxu0 %v1058
    %2056 = vmatprep.subr.mxu0 %v1065
    %2057 = vmatpush1.msra.mxu0 %v1064
    %2058 = vmatprep.subr.mxu0 %v1071
    %2059 = vmatpush1.msra.mxu0 %v1070
    %2060 = vmatprep.subr.mxu0 %v1077
    %2061 = vmatpush1.msra.mxu0 %v1076
    %2062 = vmatprep.subr.mxu0 %v1083
    %2063 = vmatpush1.msra.mxu0 %v1082
    %2064 = vmatprep.subr.mxu0 %v1089
    %2065 = vmatpush1.msra.mxu0 %v1088
    %2066 = vmatprep.subr.mxu0 %v1095
    %2067 = vmatpush1.msra.mxu0 %v1094
    %2068 = vmatprep.subr.mxu0 %v1101
    %2069 = vmatpush1.msra.mxu0 %v1100
    %2070 = vmatprep.subr.mxu0 %v1107
    %2071 = vmatpush1.msra.mxu0 %v1106
    %2072 = vmatprep.subr.mxu0 %v1113
    %2073 = vmatpush1.msra.mxu0 %v1112
    %2074 = vmatprep.subr.mxu0 %v1119
    %2075 = vmatpush1.msra.mxu0 %v1118
    %2076 = vmatprep.subr.mxu0 %v1125
    %2077 = vmatpush1.msra.mxu0 %v1124
    %2078 = vmatprep.mubr.f32.mxu0 %v1578
    %2079 = vmatmul.mubr.f32.gmra.mrb[0].mxu0 %v1570
    %v2080 = vpop.f32.mrb[0].mxu0
    %v2081 = vadd.f32 %v2010, %v2080
    %v2082 = vpop.f32.mrb[0].mxu0
    %v2083 = vadd.f32 %v2012, %v2082
    %2084 = vdwg.mxu0
    %2085 = vmatprep.subr.mxu0 %v1131
    %2086 = vmatpush1.msra.mxu0 %v1130
    %2087 = vmatprep.subr.mxu0 %v1137
    %2088 = vmatpush1.msra.mxu0 %v1136
    %2089 = vmatprep.subr.mxu0 %v1143
    %2090 = vmatpush1.msra.mxu0 %v1142
    %2091 = vmatprep.subr.mxu0 %v1149
    %2092 = vmatpush1.msra.mxu0 %v1148
    %2093 = vmatprep.subr.mxu0 %v1155
    %2094 = vmatpush1.msra.mxu0 %v1154
    %2095 = vmatprep.subr.mxu0 %v1161
    %2096 = vmatpush1.msra.mxu0 %v1160
    %2097 = vmatprep.subr.mxu0 %v1167
    %2098 = vmatpush1.msra.mxu0 %v1166
    %2099 = vmatprep.subr.mxu0 %v1173
    %2100 = vmatpush1.msra.mxu0 %v1172
    %2101 = vmatprep.subr.mxu0 %v1179
    %2102 = vmatpush1.msra.mxu0 %v1178
    %2103 = vmatprep.subr.mxu0 %v1185
    %2104 = vmatpush1.msra.mxu0 %v1184
    %2105 = vmatprep.subr.mxu0 %v1191
    %2106 = vmatpush1.msra.mxu0 %v1190
    %2107 = vmatprep.subr.mxu0 %v1197
    %2108 = vmatpush1.msra.mxu0 %v1196
    %2109 = vmatprep.subr.mxu0 %v1203
    %2110 = vmatpush1.msra.mxu0 %v1202
    %2111 = vmatprep.subr.mxu0 %v1209
    %2112 = vmatpush1.msra.mxu0 %v1208
    %2113 = vmatprep.subr.mxu0 %v1215
    %2114 = vmatpush1.msra.mxu0 %v1214
    %2115 = vmatprep.subr.mxu0 %v1221
    %2116 = vmatpush1.msra.mxu0 %v1220
    %2117 = vmatprep.subr.mxu0 %v1227
    %2118 = vmatpush1.msra.mxu0 %v1226
    %2119 = vmatprep.subr.mxu0 %v1233
    %2120 = vmatpush1.msra.mxu0 %v1232
    %2121 = vmatprep.subr.mxu0 %v1239
    %2122 = vmatpush1.msra.mxu0 %v1238
    %2123 = vmatprep.subr.mxu0 %v1245
    %2124 = vmatpush1.msra.mxu0 %v1244
    %2125 = vmatprep.subr.mxu0 %v1251
    %2126 = vmatpush1.msra.mxu0 %v1250
    %2127 = vmatprep.subr.mxu0 %v1257
    %2128 = vmatpush1.msra.mxu0 %v1256
    %2129 = vmatprep.subr.mxu0 %v1263
    %2130 = vmatpush1.msra.mxu0 %v1262
    %2131 = vmatprep.subr.mxu0 %v1269
    %2132 = vmatpush1.msra.mxu0 %v1268
    %2133 = vmatprep.subr.mxu0 %v1275
    %2134 = vmatpush1.msra.mxu0 %v1274
    %2135 = vmatprep.subr.mxu0 %v1281
    %2136 = vmatpush1.msra.mxu0 %v1280
    %2137 = vmatprep.subr.mxu0 %v1287
    %2138 = vmatpush1.msra.mxu0 %v1286
    %2139 = vmatprep.subr.mxu0 %v1293
    %2140 = vmatpush1.msra.mxu0 %v1292
    %2141 = vmatprep.subr.mxu0 %v1299
    %2142 = vmatpush1.msra.mxu0 %v1298
    %2143 = vmatprep.subr.mxu0 %v1305
    %2144 = vmatpush1.msra.mxu0 %v1304
    %2145 = vmatprep.subr.mxu0 %v1311
    %2146 = vmatpush1.msra.mxu0 %v1310
    %2147 = vmatprep.subr.mxu0 %v1317
    %2148 = vmatpush1.msra.mxu0 %v1316
    %2149 = vmatprep.mubr.f32.mxu0 %v1579
    %2150 = vmatmul.mubr.f32.gmra.mrb[0].mxu0 %v1577
    %v2151 = vpop.f32.mrb[0].mxu0
    %v2152 = vadd.f32 %v2081, %v2151
    %v2153 = vpop.f32.mrb[0].mxu0
    %v2154 = vadd.f32 %v2083, %v2153
    %2155 = vdwg.mxu0
    %2156 = vmatprep.subr.mxu0 %v557
    %2157 = vmatpush1.msra.mxu0 %v556
    %2158 = vmatprep.subr.mxu0 %v563
    %2159 = vmatpush1.msra.mxu0 %v562
    %2160 = vmatprep.subr.mxu0 %v569
    %2161 = vmatpush1.msra.mxu0 %v568
    %2162 = vmatprep.subr.mxu0 %v575
    %2163 = vmatpush1.msra.mxu0 %v574
    %2164 = vmatprep.subr.mxu0 %v581
    %2165 = vmatpush1.msra.mxu0 %v580
    %2166 = vmatprep.subr.mxu0 %v587
    %2167 = vmatpush1.msra.mxu0 %v586
    %2168 = vmatprep.subr.mxu0 %v593
    %2169 = vmatpush1.msra.mxu0 %v592
    %2170 = vmatprep.subr.mxu0 %v599
    %2171 = vmatpush1.msra.mxu0 %v598
    %2172 = vmatprep.subr.mxu0 %v605
    %2173 = vmatpush1.msra.mxu0 %v604
    %2174 = vmatprep.subr.mxu0 %v611
    %2175 = vmatpush1.msra.mxu0 %v610
    %2176 = vmatprep.subr.mxu0 %v617
    %2177 = vmatpush1.msra.mxu0 %v616
    %2178 = vmatprep.subr.mxu0 %v623
    %2179 = vmatpush1.msra.mxu0 %v622
    %2180 = vmatprep.subr.mxu0 %v629
    %2181 = vmatpush1.msra.mxu0 %v628
    %2182 = vmatprep.subr.mxu0 %v635
    %2183 = vmatpush1.msra.mxu0 %v634
    %2184 = vmatprep.subr.mxu0 %v641
    %2185 = vmatpush1.msra.mxu0 %v640
    %2186 = vmatprep.subr.mxu0 %v647
    %2187 = vmatpush1.msra.mxu0 %v646
    %2188 = vmatprep.subr.mxu0 %v653
    %2189 = vmatpush1.msra.mxu0 %v652
    %2190 = vmatprep.subr.mxu0 %v659
    %2191 = vmatpush1.msra.mxu0 %v658
    %2192 = vmatprep.subr.mxu0 %v665
    %2193 = vmatpush1.msra.mxu0 %v664
    %2194 = vmatprep.subr.mxu0 %v671
    %2195 = vmatpush1.msra.mxu0 %v670
    %2196 = vmatprep.subr.mxu0 %v677
    %2197 = vmatpush1.msra.mxu0 %v676
    %2198 = vmatprep.subr.mxu0 %v683
    %2199 = vmatpush1.msra.mxu0 %v682
    %2200 = vmatprep.subr.mxu0 %v689
    %2201 = vmatpush1.msra.mxu0 %v688
    %2202 = vmatprep.subr.mxu0 %v695
    %2203 = vmatpush1.msra.mxu0 %v694
    %2204 = vmatprep.subr.mxu0 %v701
    %2205 = vmatpush1.msra.mxu0 %v700
    %2206 = vmatprep.subr.mxu0 %v707
    %2207 = vmatpush1.msra.mxu0 %v706
    %2208 = vmatprep.subr.mxu0 %v713
    %2209 = vmatpush1.msra.mxu0 %v712
    %2210 = vmatprep.subr.mxu0 %v719
    %2211 = vmatpush1.msra.mxu0 %v718
    %2212 = vmatprep.subr.mxu0 %v725
    %2213 = vmatpush1.msra.mxu0 %v724
    %2214 = vmatprep.subr.mxu0 %v731
    %2215 = vmatpush1.msra.mxu0 %v730
    %2216 = vmatprep.subr.mxu0 %v737
    %2217 = vmatpush1.msra.mxu0 %v736
    %2218 = vmatprep.subr.mxu0 %v743
    %2219 = vmatpush1.msra.mxu0 %v742
    %2220 = vmatprep.mubr.f32.mxu0 %v1561
    %2221 = vmatmul.mubr.f32.gmra.mrb[0].mxu0 %v1553
    %v2222 = vpop.f32.mrb[0].mxu0
    %v2223 = vadd.f32 %v1533, %v2222
    %v2224 = vpop.f32.mrb[0].mxu0
    %v2225 = vadd.f32 %v1537, %v2224
    %2226 = vdwg.mxu0
    %2227 = vmatprep.subr.mxu0 %v749
    %2228 = vmatpush1.msra.mxu0 %v748
    %2229 = vmatprep.subr.mxu0 %v755
    %2230 = vmatpush1.msra.mxu0 %v754
    %2231 = vmatprep.subr.mxu0 %v761
    %2232 = vmatpush1.msra.mxu0 %v760
    %2233 = vmatprep.subr.mxu0 %v767
    %2234 = vmatpush1.msra.mxu0 %v766
    %2235 = vmatprep.subr.mxu0 %v773
    %2236 = vmatpush1.msra.mxu0 %v772
    %2237 = vmatprep.subr.mxu0 %v779
    %2238 = vmatpush1.msra.mxu0 %v778
    %2239 = vmatprep.subr.mxu0 %v785
    %2240 = vmatpush1.msra.mxu0 %v784
    %2241 = vmatprep.subr.mxu0 %v791
    %2242 = vmatpush1.msra.mxu0 %v790
    %2243 = vmatprep.subr.mxu0 %v797
    %2244 = vmatpush1.msra.mxu0 %v796
    %2245 = vmatprep.subr.mxu0 %v803
    %2246 = vmatpush1.msra.mxu0 %v802
    %2247 = vmatprep.subr.mxu0 %v809
    %2248 = vmatpush1.msra.mxu0 %v808
    %2249 = vmatprep.subr.mxu0 %v815
    %2250 = vmatpush1.msra.mxu0 %v814
    %2251 = vmatprep.subr.mxu0 %v821
    %2252 = vmatpush1.msra.mxu0 %v820
    %2253 = vmatprep.subr.mxu0 %v827
    %2254 = vmatpush1.msra.mxu0 %v826
    %2255 = vmatprep.subr.mxu0 %v833
    %2256 = vmatpush1.msra.mxu0 %v832
    %2257 = vmatprep.subr.mxu0 %v839
    %2258 = vmatpush1.msra.mxu0 %v838
    %2259 = vmatprep.subr.mxu0 %v845
    %2260 = vmatpush1.msra.mxu0 %v844
    %2261 = vmatprep.subr.mxu0 %v851
    %2262 = vmatpush1.msra.mxu0 %v850
    %2263 = vmatprep.subr.mxu0 %v857
    %2264 = vmatpush1.msra.mxu0 %v856
    %2265 = vmatprep.subr.mxu0 %v863
    %2266 = vmatpush1.msra.mxu0 %v862
    %2267 = vmatprep.subr.mxu0 %v869
    %2268 = vmatpush1.msra.mxu0 %v868
    %2269 = vmatprep.subr.mxu0 %v875
    %2270 = vmatpush1.msra.mxu0 %v874
    %2271 = vmatprep.subr.mxu0 %v881
    %2272 = vmatpush1.msra.mxu0 %v880
    %2273 = vmatprep.subr.mxu0 %v887
    %2274 = vmatpush1.msra.mxu0 %v886
    %2275 = vmatprep.subr.mxu0 %v893
    %2276 = vmatpush1.msra.mxu0 %v892
    %2277 = vmatprep.subr.mxu0 %v899
    %2278 = vmatpush1.msra.mxu0 %v898
    %2279 = vmatprep.subr.mxu0 %v905
    %2280 = vmatpush1.msra.mxu0 %v904
    %2281 = vmatprep.subr.mxu0 %v911
    %2282 = vmatpush1.msra.mxu0 %v910
    %2283 = vmatprep.subr.mxu0 %v917
    %2284 = vmatpush1.msra.mxu0 %v916
    %2285 = vmatprep.subr.mxu0 %v923
    %2286 = vmatpush1.msra.mxu0 %v922
    %2287 = vmatprep.subr.mxu0 %v929
    %2288 = vmatpush1.msra.mxu0 %v928
    %2289 = vmatprep.subr.mxu0 %v935
    %2290 = vmatpush1.msra.mxu0 %v934
    %2291 = vmatprep.mubr.f32.mxu0 %v1562
    %2292 = vmatmul.mubr.f32.gmra.mrb[0].mxu0 %v1560
    %v2293 = vpop.f32.mrb[0].mxu0
    %v2294 = vadd.f32 %v2223, %v2293
    %v2295 = vpop.f32.mrb[0].mxu0
    %v2296 = vadd.f32 %v2225, %v2295
    %2297 = vdwg.mxu0
    %2298 = vmatprep.subr.mxu0 %v941
    %2299 = vmatpush1.msra.mxu0 %v940
    %2300 = vmatprep.subr.mxu0 %v947
    %2301 = vmatpush1.msra.mxu0 %v946
    %2302 = vmatprep.subr.mxu0 %v953
    %2303 = vmatpush1.msra.mxu0 %v952
    %2304 = vmatprep.subr.mxu0 %v959
    %2305 = vmatpush1.msra.mxu0 %v958
    %2306 = vmatprep.subr.mxu0 %v965
    %2307 = vmatpush1.msra.mxu0 %v964
    %2308 = vmatprep.subr.mxu0 %v971
    %2309 = vmatpush1.msra.mxu0 %v970
    %2310 = vmatprep.subr.mxu0 %v977
    %2311 = vmatpush1.msra.mxu0 %v976
    %2312 = vmatprep.subr.mxu0 %v983
    %2313 = vmatpush1.msra.mxu0 %v982
    %2314 = vmatprep.subr.mxu0 %v989
    %2315 = vmatpush1.msra.mxu0 %v988
    %2316 = vmatprep.subr.mxu0 %v995
    %2317 = vmatpush1.msra.mxu0 %v994
    %2318 = vmatprep.subr.mxu0 %v1001
    %2319 = vmatpush1.msra.mxu0 %v1000
    %2320 = vmatprep.subr.mxu0 %v1007
    %2321 = vmatpush1.msra.mxu0 %v1006
    %2322 = vmatprep.subr.mxu0 %v1013
    %2323 = vmatpush1.msra.mxu0 %v1012
    %2324 = vmatprep.subr.mxu0 %v1019
    %2325 = vmatpush1.msra.mxu0 %v1018
    %2326 = vmatprep.subr.mxu0 %v1025
    %2327 = vmatpush1.msra.mxu0 %v1024
    %2328 = vmatprep.subr.mxu0 %v1031
    %2329 = vmatpush1.msra.mxu0 %v1030
    %2330 = vmatprep.subr.mxu0 %v1037
    %2331 = vmatpush1.msra.mxu0 %v1036
    %2332 = vmatprep.subr.mxu0 %v1043
    %2333 = vmatpush1.msra.mxu0 %v1042
    %2334 = vmatprep.subr.mxu0 %v1049
    %2335 = vmatpush1.msra.mxu0 %v1048
    %2336 = vmatprep.subr.mxu0 %v1055
    %2337 = vmatpush1.msra.mxu0 %v1054
    %2338 = vmatprep.subr.mxu0 %v1061
    %2339 = vmatpush1.msra.mxu0 %v1060
    %2340 = vmatprep.subr.mxu0 %v1067
    %2341 = vmatpush1.msra.mxu0 %v1066
    %2342 = vmatprep.subr.mxu0 %v1073
    %2343 = vmatpush1.msra.mxu0 %v1072
    %2344 = vmatprep.subr.mxu0 %v1079
    %2345 = vmatpush1.msra.mxu0 %v1078
    %2346 = vmatprep.subr.mxu0 %v1085
    %2347 = vmatpush1.msra.mxu0 %v1084
    %2348 = vmatprep.subr.mxu0 %v1091
    %2349 = vmatpush1.msra.mxu0 %v1090
    %2350 = vmatprep.subr.mxu0 %v1097
    %2351 = vmatpush1.msra.mxu0 %v1096
    %2352 = vmatprep.subr.mxu0 %v1103
    %2353 = vmatpush1.msra.mxu0 %v1102
    %2354 = vmatprep.subr.mxu0 %v1109
    %2355 = vmatpush1.msra.mxu0 %v1108
    %2356 = vmatprep.subr.mxu0 %v1115
    %2357 = vmatpush1.msra.mxu0 %v1114
    %2358 = vmatprep.subr.mxu0 %v1121
    %2359 = vmatpush1.msra.mxu0 %v1120
    %2360 = vmatprep.subr.mxu0 %v1127
    %2361 = vmatpush1.msra.mxu0 %v1126
    %2362 = vmatprep.mubr.f32.mxu0 %v1578
    %2363 = vmatmul.mubr.f32.gmra.mrb[0].mxu0 %v1570
    %v2364 = vpop.f32.mrb[0].mxu0
    %v2365 = vadd.f32 %v2294, %v2364
    %v2366 = vpop.f32.mrb[0].mxu0
    %v2367 = vadd.f32 %v2296, %v2366
    %2368 = vdwg.mxu0
    %2369 = vmatprep.subr.mxu0 %v1133
    %2370 = vmatpush1.msra.mxu0 %v1132
    %2371 = vmatprep.subr.mxu0 %v1139
    %2372 = vmatpush1.msra.mxu0 %v1138
    %2373 = vmatprep.subr.mxu0 %v1145
    %2374 = vmatpush1.msra.mxu0 %v1144
    %2375 = vmatprep.subr.mxu0 %v1151
    %2376 = vmatpush1.msra.mxu0 %v1150
    %2377 = vmatprep.subr.mxu0 %v1157
    %2378 = vmatpush1.msra.mxu0 %v1156
    %2379 = vmatprep.subr.mxu0 %v1163
    %2380 = vmatpush1.msra.mxu0 %v1162
    %2381 = vmatprep.subr.mxu0 %v1169
    %2382 = vmatpush1.msra.mxu0 %v1168
    %2383 = vmatprep.subr.mxu0 %v1175
    %2384 = vmatpush1.msra.mxu0 %v1174
    %2385 = vmatprep.subr.mxu0 %v1181
    %2386 = vmatpush1.msra.mxu0 %v1180
    %2387 = vmatprep.subr.mxu0 %v1187
    %2388 = vmatpush1.msra.mxu0 %v1186
    %2389 = vmatprep.subr.mxu0 %v1193
    %2390 = vmatpush1.msra.mxu0 %v1192
    %2391 = vmatprep.subr.mxu0 %v1199
    %2392 = vmatpush1.msra.mxu0 %v1198
    %2393 = vmatprep.subr.mxu0 %v1205
    %2394 = vmatpush1.msra.mxu0 %v1204
    %2395 = vmatprep.subr.mxu0 %v1211
    %2396 = vmatpush1.msra.mxu0 %v1210
    %2397 = vmatprep.subr.mxu0 %v1217
    %2398 = vmatpush1.msra.mxu0 %v1216
    %2399 = vmatprep.subr.mxu0 %v1223
    %2400 = vmatpush1.msra.mxu0 %v1222
    %2401 = vmatprep.subr.mxu0 %v1229
    %2402 = vmatpush1.msra.mxu0 %v1228
    %2403 = vmatprep.subr.mxu0 %v1235
    %2404 = vmatpush1.msra.mxu0 %v1234
    %2405 = vmatprep.subr.mxu0 %v1241
    %2406 = vmatpush1.msra.mxu0 %v1240
    %2407 = vmatprep.subr.mxu0 %v1247
    %2408 = vmatpush1.msra.mxu0 %v1246
    %2409 = vmatprep.subr.mxu0 %v1253
    %2410 = vmatpush1.msra.mxu0 %v1252
    %2411 = vmatprep.subr.mxu0 %v1259
    %2412 = vmatpush1.msra.mxu0 %v1258
    %2413 = vmatprep.subr.mxu0 %v1265
    %2414 = vmatpush1.msra.mxu0 %v1264
    %2415 = vmatprep.subr.mxu0 %v1271
    %2416 = vmatpush1.msra.mxu0 %v1270
    %2417 = vmatprep.subr.mxu0 %v1277
    %2418 = vmatpush1.msra.mxu0 %v1276
    %2419 = vmatprep.subr.mxu0 %v1283
    %2420 = vmatpush1.msra.mxu0 %v1282
    %2421 = vmatprep.subr.mxu0 %v1289
    %2422 = vmatpush1.msra.mxu0 %v1288
    %2423 = vmatprep.subr.mxu0 %v1295
    %2424 = vmatpush1.msra.mxu0 %v1294
    %2425 = vmatprep.subr.mxu0 %v1301
    %2426 = vmatpush1.msra.mxu0 %v1300
    %2427 = vmatprep.subr.mxu0 %v1307
    %2428 = vmatpush1.msra.mxu0 %v1306
    %2429 = vmatprep.subr.mxu0 %v1313
    %2430 = vmatpush1.msra.mxu0 %v1312
    %2431 = vmatprep.subr.mxu0 %v1319
    %2432 = vmatpush1.msra.mxu0 %v1318
    %2433 = vmatprep.mubr.f32.mxu0 %v1579
    %2434 = vmatmul.mubr.f32.gmra.mrb[0].mxu0 %v1577
    %v2435 = vpop.f32.mrb[0].mxu0
    %v2436 = vadd.f32 %v2365, %v2435
    %v2437 = vpop.f32.mrb[0].mxu0
    %v2438 = vadd.f32 %v2367, %v2437
    %2439 = vdwg.mxu0
    %v2440 = vld [vmem:[#allocation8] sm:$0x7]
    %v2442 = vlaneseq
    %v2443 = vshrl.u32 %v2442, 7
    %v2444 = vsub.s32 0, %v2443
    %v2445 = vrot.slane %v2440, %v2444
    %v2446 = vlaneseq
    %v2447 = vshrl.u32 %v2446, 7
    %v2448 = vsub.s32 1, %v2447
    %v2449 = vrot.slane %v2440, %v2448
    %v2450 = vlaneseq
    %v2451 = vshrl.u32 %v2450, 7
    %v2452 = vsub.s32 2, %v2451
    %v2453 = vrot.slane %v2440, %v2452
    %2457 = vmatprep.subr.mxu0 %v1353
    %2458 = vmatpush1.msra.mxu0 %v1352
    %2459 = vmatprep.subr.mxu0 %v1356
    %2460 = vmatpush1.msra.mxu0 %v1355
    %2461 = vmatprep.subr.mxu0 %v1359
    %2462 = vmatpush1.msra.mxu0 %v1358
    %2463 = vmatprep.subr.mxu0 %v1362
    %2464 = vmatpush1.msra.mxu0 %v1361
    %2465 = vmatprep.subr.mxu0 %v1365
    %2466 = vmatpush1.msra.mxu0 %v1364
    %2467 = vmatprep.subr.mxu0 %v1368
    %2468 = vmatpush1.msra.mxu0 %v1367
    %2469 = vmatprep.subr.mxu0 %v1371
    %2470 = vmatpush1.msra.mxu0 %v1370
    %2471 = vmatprep.subr.mxu0 %v1374
    %2472 = vmatpush1.msra.mxu0 %v1373
    %2473 = vmatprep.subr.mxu0 %v1377
    %2474 = vmatpush1.msra.mxu0 %v1376
    %2475 = vmatprep.subr.mxu0 %v1380
    %2476 = vmatpush1.msra.mxu0 %v1379
    %2477 = vmatprep.subr.mxu0 %v1383
    %2478 = vmatpush1.msra.mxu0 %v1382
    %2479 = vmatprep.subr.mxu0 %v1386
    %2480 = vmatpush1.msra.mxu0 %v1385
    %2481 = vmatprep.subr.mxu0 %v1389
    %2482 = vmatpush1.msra.mxu0 %v1388
    %2483 = vmatprep.subr.mxu0 %v1392
    %2484 = vmatpush1.msra.mxu0 %v1391
    %2485 = vmatprep.subr.mxu0 %v1395
    %2486 = vmatpush1.msra.mxu0 %v1394
    %2487 = vmatprep.subr.mxu0 %v1398
    %2488 = vmatpush1.msra.mxu0 %v1397
    %2489 = vmatprep.subr.mxu0 0.0
    %2490 = vmatpush1.msra.mxu0 0.0
    %2491 = vmatprep.subr.mxu0 0.0
    %2492 = vmatpush1.msra.mxu0 0.0
    %2493 = vmatprep.subr.mxu0 0.0
    %2494 = vmatpush1.msra.mxu0 0.0
    %2495 = vmatprep.subr.mxu0 0.0
    %2496 = vmatpush1.msra.mxu0 0.0
    %2497 = vmatprep.subr.mxu0 0.0
    %2498 = vmatpush1.msra.mxu0 0.0
    %2499 = vmatprep.subr.mxu0 0.0
    %2500 = vmatpush1.msra.mxu0 0.0
    %2501 = vmatprep.subr.mxu0 0.0
    %2502 = vmatpush1.msra.mxu0 0.0
    %2503 = vmatprep.subr.mxu0 0.0
    %2504 = vmatpush1.msra.mxu0 0.0
    %2505 = vmatprep.subr.mxu0 0.0
    %2506 = vmatpush1.msra.mxu0 0.0
    %2507 = vmatprep.subr.mxu0 0.0
    %2508 = vmatpush1.msra.mxu0 0.0
    %2509 = vmatprep.subr.mxu0 0.0
    %2510 = vmatpush1.msra.mxu0 0.0
    %2511 = vmatprep.subr.mxu0 0.0
    %2512 = vmatpush1.msra.mxu0 0.0
    %2513 = vmatprep.subr.mxu0 0.0
    %2514 = vmatpush1.msra.mxu0 0.0
    %2515 = vmatprep.subr.mxu0 0.0
    %2516 = vmatpush1.msra.mxu0 0.0
    %2517 = vmatprep.subr.mxu0 0.0
    %2518 = vmatpush1.msra.mxu0 0.0
    %2519 = vmatprep.subr.mxu0 0.0
    %2520 = vmatpush1.msra.mxu0 0.0
    %2521 = vmatprep.mubr.f32.mxu0 0.0
    %2522 = vmatmul.mubr.f32.gmra.mrb[0].mxu0 %v166
    %v2523 = vpop.f32.mrb[0].mxu0
    %v2524 = vadd.f32 %v2445, %v2523
    %v2525 = vpop.f32.mrb[0].mxu0
    %v2526 = vadd.f32 %v2449, %v2525
    %2527 = vdwg.mxu0
    %2528 = vmatprep.subr.mxu0 0.0
    %2529 = vmatpush1.msra.mxu0 %v1354
    %2530 = vmatprep.subr.mxu0 0.0
    %2531 = vmatpush1.msra.mxu0 %v1357
    %2532 = vmatprep.subr.mxu0 0.0
    %2533 = vmatpush1.msra.mxu0 %v1360
    %2534 = vmatprep.subr.mxu0 0.0
    %2535 = vmatpush1.msra.mxu0 %v1363
    %2536 = vmatprep.subr.mxu0 0.0
    %2537 = vmatpush1.msra.mxu0 %v1366
    %2538 = vmatprep.subr.mxu0 0.0
    %2539 = vmatpush1.msra.mxu0 %v1369
    %2540 = vmatprep.subr.mxu0 0.0
    %2541 = vmatpush1.msra.mxu0 %v1372
    %2542 = vmatprep.subr.mxu0 0.0
    %2543 = vmatpush1.msra.mxu0 %v1375
    %2544 = vmatprep.subr.mxu0 0.0
    %2545 = vmatpush1.msra.mxu0 %v1378
    %2546 = vmatprep.subr.mxu0 0.0
    %2547 = vmatpush1.msra.mxu0 %v1381
    %2548 = vmatprep.subr.mxu0 0.0
    %2549 = vmatpush1.msra.mxu0 %v1384
    %2550 = vmatprep.subr.mxu0 0.0
    %2551 = vmatpush1.msra.mxu0 %v1387
    %2552 = vmatprep.subr.mxu0 0.0
    %2553 = vmatpush1.msra.mxu0 %v1390
    %2554 = vmatprep.subr.mxu0 0.0
    %2555 = vmatpush1.msra.mxu0 %v1393
    %2556 = vmatprep.subr.mxu0 0.0
    %2557 = vmatpush1.msra.mxu0 %v1396
    %2558 = vmatprep.subr.mxu0 0.0
    %2559 = vmatpush1.msra.mxu0 %v1399
    %2560 = vmatprep.subr.mxu0 0.0
    %2561 = vmatpush1.msra.mxu0 0.0
    %2562 = vmatprep.subr.mxu0 0.0
    %2563 = vmatpush1.msra.mxu0 0.0
    %2564 = vmatprep.subr.mxu0 0.0
    %2565 = vmatpush1.msra.mxu0 0.0
    %2566 = vmatprep.subr.mxu0 0.0
    %2567 = vmatpush1.msra.mxu0 0.0
    %2568 = vmatprep.subr.mxu0 0.0
    %2569 = vmatpush1.msra.mxu0 0.0
    %2570 = vmatprep.subr.mxu0 0.0
    %2571 = vmatpush1.msra.mxu0 0.0
    %2572 = vmatprep.subr.mxu0 0.0
    %2573 = vmatpush1.msra.mxu0 0.0
    %2574 = vmatprep.subr.mxu0 0.0
    %2575 = vmatpush1.msra.mxu0 0.0
    %2576 = vmatprep.subr.mxu0 0.0
    %2577 = vmatpush1.msra.mxu0 0.0
    %2578 = vmatprep.subr.mxu0 0.0
    %2579 = vmatpush1.msra.mxu0 0.0
    %2580 = vmatprep.subr.mxu0 0.0
    %2581 = vmatpush1.msra.mxu0 0.0
    %2582 = vmatprep.subr.mxu0 0.0
    %2583 = vmatpush1.msra.mxu0 0.0
    %2584 = vmatprep.subr.mxu0 0.0
    %2585 = vmatpush1.msra.mxu0 0.0
    %2586 = vmatprep.subr.mxu0 0.0
    %2587 = vmatpush1.msra.mxu0 0.0
    %2588 = vmatprep.subr.mxu0 0.0
    %2589 = vmatpush1.msra.mxu0 0.0
    %2590 = vmatprep.subr.mxu0 0.0
    %2591 = vmatpush1.msra.mxu0 0.0
    %2592 = vmatprep.mubr.f32.mxu0 0.0
    %2593 = vmatmul.mubr.f32.gmra.mrb[0].mxu0 %v166
    %v2594 = vpop.f32.mrb[0].mxu0
    %v2595 = vadd.f32 %v2453, %v2594
    %v2596 = vpop.f32.mrb[0].mxu0
    %2597 = vdwg.mxu0
    %v2598 = vld [vmem:[#allocation11] sm:$0x7]
    %v2600 = vlaneseq
    %v2601 = vshrl.u32 %v2600, 7
    %v2602 = vsub.s32 0, %v2601
    %v2603 = vrot.slane %v2598, %v2602
    %v2604 = vlaneseq
    %v2605 = vshrl.u32 %v2604, 7
    %v2606 = vsub.s32 1, %v2605
    %v2607 = vrot.slane %v2598, %v2606
    %v2608 = vlaneseq
    %v2609 = vshrl.u32 %v2608, 7
    %v2610 = vsub.s32 2, %v2609
    %v2611 = vrot.slane %v2598, %v2610
    %2615 = vmatprep.subr.mxu0 %v1433
    %2616 = vmatpush1.msra.mxu0 %v1432
    %2617 = vmatprep.subr.mxu0 %v1436
    %2618 = vmatpush1.msra.mxu0 %v1435
    %2619 = vmatprep.subr.mxu0 %v1439
    %2620 = vmatpush1.msra.mxu0 %v1438
    %2621 = vmatprep.subr.mxu0 %v1442
    %2622 = vmatpush1.msra.mxu0 %v1441
    %2623 = vmatprep.subr.mxu0 %v1445
    %2624 = vmatpush1.msra.mxu0 %v1444
    %2625 = vmatprep.subr.mxu0 %v1448
    %2626 = vmatpush1.msra.mxu0 %v1447
    %2627 = vmatprep.subr.mxu0 %v1451
    %2628 = vmatpush1.msra.mxu0 %v1450
    %2629 = vmatprep.subr.mxu0 %v1454
    %2630 = vmatpush1.msra.mxu0 %v1453
    %2631 = vmatprep.subr.mxu0 %v1457
    %2632 = vmatpush1.msra.mxu0 %v1456
    %2633 = vmatprep.subr.mxu0 %v1460
    %2634 = vmatpush1.msra.mxu0 %v1459
    %2635 = vmatprep.subr.mxu0 %v1463
    %2636 = vmatpush1.msra.mxu0 %v1462
    %2637 = vmatprep.subr.mxu0 %v1466
    %2638 = vmatpush1.msra.mxu0 %v1465
    %2639 = vmatprep.subr.mxu0 %v1469
    %2640 = vmatpush1.msra.mxu0 %v1468
    %2641 = vmatprep.subr.mxu0 %v1472
    %2642 = vmatpush1.msra.mxu0 %v1471
    %2643 = vmatprep.subr.mxu0 %v1475
    %2644 = vmatpush1.msra.mxu0 %v1474
    %2645 = vmatprep.subr.mxu0 %v1478
    %2646 = vmatpush1.msra.mxu0 %v1477
    %2647 = vmatprep.subr.mxu0 0.0
    %2648 = vmatpush1.msra.mxu0 0.0
    %2649 = vmatprep.subr.mxu0 0.0
    %2650 = vmatpush1.msra.mxu0 0.0
    %2651 = vmatprep.subr.mxu0 0.0
    %2652 = vmatpush1.msra.mxu0 0.0
    %2653 = vmatprep.subr.mxu0 0.0
    %2654 = vmatpush1.msra.mxu0 0.0
    %2655 = vmatprep.subr.mxu0 0.0
    %2656 = vmatpush1.msra.mxu0 0.0
    %2657 = vmatprep.subr.mxu0 0.0
    %2658 = vmatpush1.msra.mxu0 0.0
    %2659 = vmatprep.subr.mxu0 0.0
    %2660 = vmatpush1.msra.mxu0 0.0
    %2661 = vmatprep.subr.mxu0 0.0
    %2662 = vmatpush1.msra.mxu0 0.0
    %2663 = vmatprep.subr.mxu0 0.0
    %2664 = vmatpush1.msra.mxu0 0.0
    %2665 = vmatprep.subr.mxu0 0.0
    %2666 = vmatpush1.msra.mxu0 0.0
    %2667 = vmatprep.subr.mxu0 0.0
    %2668 = vmatpush1.msra.mxu0 0.0
    %2669 = vmatprep.subr.mxu0 0.0
    %2670 = vmatpush1.msra.mxu0 0.0
    %2671 = vmatprep.subr.mxu0 0.0
    %2672 = vmatpush1.msra.mxu0 0.0
    %2673 = vmatprep.subr.mxu0 0.0
    %2674 = vmatpush1.msra.mxu0 0.0
    %2675 = vmatprep.subr.mxu0 0.0
    %2676 = vmatpush1.msra.mxu0 0.0
    %2677 = vmatprep.subr.mxu0 0.0
    %2678 = vmatpush1.msra.mxu0 0.0
    %2679 = vmatprep.mubr.f32.mxu0 0.0
    %2680 = vmatmul.mubr.f32.gmra.mrb[0].mxu0 %v167
    %v2681 = vpop.f32.mrb[0].mxu0
    %v2682 = vadd.f32 %v2603, %v2681
    %v2683 = vpop.f32.mrb[0].mxu0
    %v2684 = vadd.f32 %v2607, %v2683
    %2685 = vdwg.mxu0
    %2686 = vmatprep.subr.mxu0 0.0
    %2687 = vmatpush1.msra.mxu0 %v1434
    %2688 = vmatprep.subr.mxu0 0.0
    %2689 = vmatpush1.msra.mxu0 %v1437
    %2690 = vmatprep.subr.mxu0 0.0
    %2691 = vmatpush1.msra.mxu0 %v1440
    %2692 = vmatprep.subr.mxu0 0.0
    %2693 = vmatpush1.msra.mxu0 %v1443
    %2694 = vmatprep.subr.mxu0 0.0
    %2695 = vmatpush1.msra.mxu0 %v1446
    %2696 = vmatprep.subr.mxu0 0.0
    %2697 = vmatpush1.msra.mxu0 %v1449
    %2698 = vmatprep.subr.mxu0 0.0
    %2699 = vmatpush1.msra.mxu0 %v1452
    %2700 = vmatprep.subr.mxu0 0.0
    %2701 = vmatpush1.msra.mxu0 %v1455
    %2702 = vmatprep.subr.mxu0 0.0
    %2703 = vmatpush1.msra.mxu0 %v1458
    %2704 = vmatprep.subr.mxu0 0.0
    %2705 = vmatpush1.msra.mxu0 %v1461
    %2706 = vmatprep.subr.mxu0 0.0
    %2707 = vmatpush1.msra.mxu0 %v1464
    %2708 = vmatprep.subr.mxu0 0.0
    %2709 = vmatpush1.msra.mxu0 %v1467
    %2710 = vmatprep.subr.mxu0 0.0
    %2711 = vmatpush1.msra.mxu0 %v1470
    %2712 = vmatprep.subr.mxu0 0.0
    %2713 = vmatpush1.msra.mxu0 %v1473
    %2714 = vmatprep.subr.mxu0 0.0
    %2715 = vmatpush1.msra.mxu0 %v1476
    %2716 = vmatprep.subr.mxu0 0.0
    %2717 = vmatpush1.msra.mxu0 %v1479
    %2718 = vmatprep.subr.mxu0 0.0
    %2719 = vmatpush1.msra.mxu0 0.0
    %2720 = vmatprep.subr.mxu0 0.0
    %2721 = vmatpush1.msra.mxu0 0.0
    %2722 = vmatprep.subr.mxu0 0.0
    %2723 = vmatpush1.msra.mxu0 0.0
    %2724 = vmatprep.subr.mxu0 0.0
    %2725 = vmatpush1.msra.mxu0 0.0
    %2726 = vmatprep.subr.mxu0 0.0
    %2727 = vmatpush1.msra.mxu0 0.0
    %2728 = vmatprep.subr.mxu0 0.0
    %2729 = vmatpush1.msra.mxu0 0.0
    %2730 = vmatprep.subr.mxu0 0.0
    %2731 = vmatpush1.msra.mxu0 0.0
    %2732 = vmatprep.subr.mxu0 0.0
    %2733 = vmatpush1.msra.mxu0 0.0
    %2734 = vmatprep.subr.mxu0 0.0
    %2735 = vmatpush1.msra.mxu0 0.0
    %2736 = vmatprep.subr.mxu0 0.0
    %2737 = vmatpush1.msra.mxu0 0.0
    %2738 = vmatprep.subr.mxu0 0.0
    %2739 = vmatpush1.msra.mxu0 0.0
    %2740 = vmatprep.subr.mxu0 0.0
    %2741 = vmatpush1.msra.mxu0 0.0
    %2742 = vmatprep.subr.mxu0 0.0
    %2743 = vmatpush1.msra.mxu0 0.0
    %2744 = vmatprep.subr.mxu0 0.0
    %2745 = vmatpush1.msra.mxu0 0.0
    %2746 = vmatprep.subr.mxu0 0.0
    %2747 = vmatpush1.msra.mxu0 0.0
    %2748 = vmatprep.subr.mxu0 0.0
    %2749 = vmatpush1.msra.mxu0 0.0
    %2750 = vmatprep.mubr.f32.mxu0 0.0
    %2751 = vmatmul.mubr.f32.gmra.mrb[0].mxu0 %v167
    %v2752 = vpop.f32.mrb[0].mxu0
    %v2753 = vadd.f32 %v2611, %v2752
    %v2754 = vpop.f32.mrb[0].mxu0
    %2755 = vdwg.mxu0
    %v2756 = vadd.f32 %v1868, %v2524
    %v2757 = vxor.u32 %v2756, 2147483648
    %v2758 = vmul.f32 %v2757, 1.442695
    %v2759 = vpow.pop %v2758
    %v2760 = vadd.f32 %v2759, 1.0
    %v2761 = vrcp.pop %v2760
    %v2762 = vmul.f32 1.0, %v2761
    %v2763 = vadd.f32 %v1870, %v2526
    %v2764 = vxor.u32 %v2763, 2147483648
    %v2765 = vmul.f32 %v2764, 1.442695
    %v2766 = vpow.pop %v2765
    %v2767 = vadd.f32 %v2766, 1.0
    %v2768 = vrcp.pop %v2767
    %v2769 = vmul.f32 1.0, %v2768
    %v2770 = vmul.f32 %v2762, %v2595
    %v2771 = vadd.f32 %v2152, %v2770
    %v2772 = vtanh.pop %v2771
    %v2773 = vsub.f32 1.0, %v2769
    %v2774 = vmul.f32 %v2773, %v2772
    %v2775 = vmul.f32 %v2769, %v166
    %v2776 = vadd.f32 %v2774, %v2775
    %v2777 = vadd.f32 %v2154, %v2682
    %v2778 = vxor.u32 %v2777, 2147483648
    %v2779 = vmul.f32 %v2778, 1.442695
    %v2780 = vpow.pop %v2779
    %v2781 = vadd.f32 %v2780, 1.0
    %v2782 = vrcp.pop %v2781
    %v2783 = vmul.f32 1.0, %v2782
    %v2784 = vadd.f32 %v2436, %v2684
    %v2785 = vxor.u32 %v2784, 2147483648
    %v2786 = vmul.f32 %v2785, 1.442695
    %v2787 = vpow.pop %v2786
    %v2788 = vadd.f32 %v2787, 1.0
    %v2789 = vrcp.pop %v2788
    %v2790 = vmul.f32 1.0, %v2789
    %v2791 = vmul.f32 %v2783, %v2753
    %v2792 = vadd.f32 %v2438, %v2791
    %v2793 = vtanh.pop %v2792
    %v2794 = vsub.f32 1.0, %v2790
    %v2795 = vmul.f32 %v2794, %v2793
    %v2796 = vmul.f32 %v2790, %v167
    %v2797 = vadd.f32 %v2795, %v2796
    %v2798 = vld [vmem:[#allocation14] sm:$0x1]
    %v2800 = vlaneseq
    %v2801 = vshrl.u32 %v2800, 7
    %v2802 = vsub.s32 0, %v2801
    %v2803 = vrot.slane %v2798, %v2802
    %2805 = vmatprep.subr.mxu0 0.0
    %2806 = vmatpush1.msra.mxu0 %v1496
    %2807 = vmatprep.subr.mxu0 0.0
    %2808 = vmatpush1.msra.mxu0 %v1497
    %2809 = vmatprep.subr.mxu0 0.0
    %2810 = vmatpush1.msra.mxu0 %v1498
    %2811 = vmatprep.subr.mxu0 0.0
    %2812 = vmatpush1.msra.mxu0 %v1499
    %2813 = vmatprep.subr.mxu0 0.0
    %2814 = vmatpush1.msra.mxu0 %v1500
    %2815 = vmatprep.subr.mxu0 0.0
    %2816 = vmatpush1.msra.mxu0 %v1501
    %2817 = vmatprep.subr.mxu0 0.0
    %2818 = vmatpush1.msra.mxu0 %v1502
    %2819 = vmatprep.subr.mxu0 0.0
    %2820 = vmatpush1.msra.mxu0 %v1503
    %2821 = vmatprep.subr.mxu0 0.0
    %2822 = vmatpush1.msra.mxu0 %v1504
    %2823 = vmatprep.subr.mxu0 0.0
    %2824 = vmatpush1.msra.mxu0 %v1505
    %2825 = vmatprep.subr.mxu0 0.0
    %2826 = vmatpush1.msra.mxu0 %v1506
    %2827 = vmatprep.subr.mxu0 0.0
    %2828 = vmatpush1.msra.mxu0 %v1507
    %2829 = vmatprep.subr.mxu0 0.0
    %2830 = vmatpush1.msra.mxu0 %v1508
    %2831 = vmatprep.subr.mxu0 0.0
    %2832 = vmatpush1.msra.mxu0 %v1509
    %2833 = vmatprep.subr.mxu0 0.0
    %2834 = vmatpush1.msra.mxu0 %v1510
    %2835 = vmatprep.subr.mxu0 0.0
    %2836 = vmatpush1.msra.mxu0 %v1511
    %2837 = vmatprep.subr.mxu0 0.0
    %2838 = vmatpush1.msra.mxu0 0.0
    %2839 = vmatprep.subr.mxu0 0.0
    %2840 = vmatpush1.msra.mxu0 0.0
    %2841 = vmatprep.subr.mxu0 0.0
    %2842 = vmatpush1.msra.mxu0 0.0
    %2843 = vmatprep.subr.mxu0 0.0
    %2844 = vmatpush1.msra.mxu0 0.0
    %2845 = vmatprep.subr.mxu0 0.0
    %2846 = vmatpush1.msra.mxu0 0.0
    %2847 = vmatprep.subr.mxu0 0.0
    %2848 = vmatpush1.msra.mxu0 0.0
    %2849 = vmatprep.subr.mxu0 0.0
    %2850 = vmatpush1.msra.mxu0 0.0
    %2851 = vmatprep.subr.mxu0 0.0
    %2852 = vmatpush1.msra.mxu0 0.0
    %2853 = vmatprep.subr.mxu0 0.0
    %2854 = vmatpush1.msra.mxu0 0.0
    %2855 = vmatprep.subr.mxu0 0.0
    %2856 = vmatpush1.msra.mxu0 0.0
    %2857 = vmatprep.subr.mxu0 0.0
    %2858 = vmatpush1.msra.mxu0 0.0
    %2859 = vmatprep.subr.mxu0 0.0
    %2860 = vmatpush1.msra.mxu0 0.0
    %2861 = vmatprep.subr.mxu0 0.0
    %2862 = vmatpush1.msra.mxu0 0.0
    %2863 = vmatprep.subr.mxu0 0.0
    %2864 = vmatpush1.msra.mxu0 0.0
    %2865 = vmatprep.subr.mxu0 0.0
    %2866 = vmatpush1.msra.mxu0 0.0
    %2867 = vmatprep.subr.mxu0 0.0
    %2868 = vmatpush1.msra.mxu0 0.0
    %2869 = vmatprep.mubr.f32.mxu0 0.0
    %2870 = vmatmul.mubr.f32.gmra.mrb[0].mxu0 %v2776
    %v2871 = vpop.f32.mrb[0].mxu0
    %v2872 = vadd.f32 %v2803, %v2871
    %v2873 = vpop.f32.mrb[0].mxu0
    %2874 = vdwg.mxu0
    %v2875 = vld [vmem:[%s13] sm:$0x3]
    %v2876 = vadd.f32 %v2872, %v2875
    %vm2877 = vcmask 1041408
    %v2878 = vsel %vm2877, %v2876, -inf
    %2879 = vmax.xlane.f32.xlu0 %v2878
    %v2880 = vpop.xlane.xlu0 %2879
    %v2881 = vsub.f32 %v2876, %v2880
    %v2882 = vmul.f32 %v2881, 1.442695
    %v2883 = vpow.pop %v2882
    %v2884 = vsel %vm2877, %v2883, 0.0
    %2885 = vadd.xlane.f32.xlu0 %v2884
    %v2886 = vpop.xlane.xlu0 %2885
    %v2887 = vrcp.pop %v2886
    %v2888 = vmul.f32 %v2883, %v2887
    %v2889 = vlog2.pop %v2886
    %v2890 = vmul.f32 %v2889, 0.6931472
    %v2891 = vsub.f32 %v2881, %v2890
    %v2892 = vmul.f32 %v2891, %v2888
    %v2893 = vsel %vm2877, %v2892, 0.0
    %2894 = vadd.xlane.f32.xlu0 %v2893
    %v2895 = vpop.xlane.xlu0 %2894
    %v2896 = vsub.f32 0.0, %v2895
    %v2897 = vld [vmem:[%s14] sm:$0x3]
    %v2898 = vadd.f32 %v2891, %v2897
    %v2899 = vsel %vm2877, %v2898, -inf
    %2900 = vmax.xlane.f32.xlu0 %v2899
    %v2901 = vpop.xlane.xlu0 %2900
    %v2902 = vlaneseq
    %v2903 = vand.u32 %v2902, 127
    %vm2904 = vcmp.ge.f32.partialorder %v2898, %v2901
    %v2905 = vsel %vm2904, %v2903, 128
    %v2906 = vsel %vm2877, %v2905, 2147483647
    %v2907 = vand.u32 %v2906, 65535
    %v2908 = vshra.s32 %v2906, 16
    %v2909 = vcvt.s32.f32 %v2907
    %v2910 = vcvt.s32.f32 %v2908
    %2911 = vmin.xlane.f32.xlu0 %v2910
    %v2912 = vpop.xlane.xlu0 %2911
    %vm2913 = vcmp.eq.f32.partialorder %v2910, %v2912
    %v2914 = vsel %vm2913, %v2909, inf
    %2915 = vmin.xlane.f32.xlu0 %v2914
    %v2916 = vpop.xlane.xlu0 %2915
    %v2917 = vcvt.f32.s32 %v2916
    %v2918 = vcvt.f32.s32 %v2912
    %v2919 = vshll.u32 %v2918, 16
    %v2920 = vadd.s32 %v2919, %v2917
    %vm2921 = vcmp.eq.s32.totalorder %v2903, %v2920
    %v2922 = vsel %vm2921, 1, 0
    %v2923 = vcvt.s32.f32 %v2922
    %v2924 = vmul.f32 %v2891, %v2923
    %v2925 = vsel %vm2877, %v2924, 0.0
    %2926 = vadd.xlane.f32.xlu0 %v2925
    %v2927 = vpop.xlane.xlu0 %2926
    %v2928 = vld [vmem:[#allocation16] sm:$0x1]
    %v2930 = vlaneseq
    %v2931 = vshrl.u32 %v2930, 7
    %v2932 = vsub.s32 0, %v2931
    %v2933 = vrot.slane %v2928, %v2932
    %v2935 = vmul.f32 %v2797, %v2933
    %v2936 = vsel %vm2877, %v2935, 0.0
    %2937 = vadd.xlane.f32.xlu0 %v2936
    %v2938 = vpop.xlane.xlu0 %2937
    %v2939 = vld [vmem:[#allocation2] sm:$0x1]
    %v2941 = vlaneseq
    %v2942 = vshrl.u32 %v2941, 7
    %v2943 = vsub.s32 0, %v2942
    %v2944 = vrot.slane %v2939, %v2943
    %v2946 = vadd.f32 %v2938, %v2944
    %2947 = vst [vmem:[%s15] sm:$0x3] %v2776
    %2948 = vst [vmem:[%s15 + $0x2] sm:$0x3] %v2797
    %2949 = vst [vmem:[%s15 + $0x4] sm:$0x3] %v2888
    %vm2950 = vcmp.eq.s32.totalorder %v2903, 0
    %v2951 = vcvt.s32.f32 %v2920
    %vm2952 = vcmp.eq.s32.totalorder %v2903, 1
    %vm2953 = vcmp.eq.s32.totalorder %v2903, 2
    %vm2954 = vcmp.eq.s32.totalorder %v2903, 3
    %2956 = vset.pattern.permute.xlu0 0
    %2957 = vperm.xlu0 %2956, %v2946
    %v2958 = vpop.permute.xlu0 %2957
    %v2960 = vsel %vm2954, %v2958, 0.0
    %v2961 = vsel %vm2953, %v2896, %v2960
    %v2962 = vsel %vm2952, %v2927, %v2961
    %v2963 = vsel %vm2950, %v2951, %v2962
    %2964 = vst [vmem:[%s15 + $0x6] sm:$0x3] %v2963
    // Predicated region
    $region98: #{forward.1} parent=1 // pred_check
      _
    $region99: #{forward.1} parent=1 // pred_check_branch
      %2966 = sbr.rel (0) target = $region101
    $region100: #{forward.1} parent=1 // pred_region
      _
    $region101: #{forward.1} parent=1 // pred_fallthru
      _
    // Predicated region
    $region102: #{forward.1} parent=1 // pred_check
      _
    $region103: #{forward.1} parent=1 // pred_check_branch
      %2968 = sbr.rel (0) target = $region105
    $region104: #{forward.1} parent=1 // pred_region
      _
    $region105: #{forward.1} parent=1 // pred_fallthru
      _
    %2969 = vsyncpa [#allocation4], 1
    %2970 = vsyncpa [#allocation6], 1
    %2971 = vsyncpa [#allocation9], 1
    %2972 = vsyncpa [#allocation12], 1
    %2973 = vsyncpa [#allocation15], 1

</llo_original>
